<compile_context>
chip_gen: v5e
topology: v5e:2x2
jax: 0.10.0
libtpu: 0.0.40
codegen_flags: <defaults>
</compile_context>

<pallas_src>
import jax
import jax.numpy as jnp
from jax import lax
from jax.experimental import pallas as pl
from jax.experimental.pallas import tpu as pltpu


# ----------------------------- in-kernel math -----------------------------

def _layer_norm(x, gamma, beta, eps=1e-6):
    mean = jnp.mean(x, axis=-1, keepdims=True)
    var = jnp.mean((x - mean) ** 2, axis=-1, keepdims=True)
    return (x - mean) * lax.rsqrt(var + eps) * gamma + beta


def _mha(xq, xkv, bias, wq, bq, wk, bk, wv, bv, wo, bo):
    """Multi-head attention with heads as a leading batch dimension.

    xq:  (Tq, d) fp32 query-side activations
    xkv: (Lk, d) fp32 key/value-side activations
    bias: additive fp32 mask (0 keep / -1e9 block), broadcastable to (H, Tq, Lk)
    wq/wk/wv: (H, d, dk) bf16   bq/bk/bv: (H, 1, dk) fp32
    wo: (H, dk, d) bf16         bo: (1, d) fp32
    """
    H, d, dk = wq.shape
    Tq = xq.shape[0]
    Lk = xkv.shape[0]
    scale = 1.0 / jnp.sqrt(jnp.float32(dk))

    xq_b = jnp.broadcast_to(xq.astype(jnp.bfloat16)[None], (H, Tq, d))
    xkv_b = jnp.broadcast_to(xkv.astype(jnp.bfloat16)[None], (H, Lk, d))

    # Batched per-head projections (bf16 MXU, fp32 accumulation).
    q = jnp.einsum('hld,hdk->hlk', xq_b, wq,
                   preferred_element_type=jnp.float32) + bq
    q = q * scale                                  # fold 1/sqrt(dk) into q once
    k = jnp.einsum('hld,hdk->hlk', xkv_b, wk,
                   preferred_element_type=jnp.float32) + bk
    v = jnp.einsum('hld,hdk->hlk', xkv_b, wv,
                   preferred_element_type=jnp.float32) + bv

    # Scores + softmax in fp32.
    s = jnp.einsum('hqd,hkd->hqk', q.astype(jnp.bfloat16), k.astype(jnp.bfloat16),
                   preferred_element_type=jnp.float32)
    s = s + bias                                   # additive mask, applied once
    s = s - jnp.max(s, axis=-1, keepdims=True)
    p = jnp.exp(s)
    p = p * pl.reciprocal(jnp.sum(p, axis=-1, keepdims=True), approx=True)

    # Context and output projection; sum over heads == concat(ctx_h) @ Wo.
    ctx = jnp.einsum('hqk,hkd->hqd', p.astype(jnp.bfloat16), v.astype(jnp.bfloat16),
                     preferred_element_type=jnp.float32)
    out_h = jnp.einsum('hqd,hdm->hqm', ctx.astype(jnp.bfloat16), wo,
                       preferred_element_type=jnp.float32)
    return jnp.sum(out_h, axis=0) + bo


def _decoder_layer_kernel(
        x_tile_ref, x_full_ref, mem_ref, emask_ref,
        sa_wq, sa_bq, sa_wk, sa_bk, sa_wv, sa_bv, sa_wo, sa_bo,
        ca_wq, ca_bq, ca_wk, ca_bk, ca_wv, ca_bv, ca_wo, ca_bo,
        ff_w1, ff_b1, ff_w2, ff_b2,
        g0, be0, g1, be1, g2, be2,
        out_ref):
    qi = pl.program_id(1)

    x = x_tile_ref[0]          # (TQ, d)   query tile / residual stream
    x_full = x_full_ref[0]     # (Lq, d)   full sequence (self-attn K/V)
    mem = mem_ref[0]           # (Lk, d)   encoder memory

    TQ = x.shape[0]
    Lq = x_full.shape[0]

    # Causal keep-mask generated in-kernel (triu(k=1)==0  ->  col <= row).
    row = qi * TQ + lax.broadcasted_iota(jnp.int32, (TQ, Lq), 0)
    col = lax.broadcasted_iota(jnp.int32, (TQ, Lq), 1)
    causal_bias = jnp.where(col <= row, 0.0, -1e9).astype(jnp.float32)   # (TQ, Lq)
    enc_bias = jnp.where(emask_ref[...] > 0, 0.0, -1e9).astype(jnp.float32)  # (1, Lk)

    # Sublayer 0: pre-norm masked self-attention + residual (dropout = identity).
    y_q = _layer_norm(x, g0[...], be0[...])
    y_kv = _layer_norm(x_full, g0[...], be0[...])
    x = x + _mha(y_q, y_kv, causal_bias,
                 sa_wq[...], sa_bq[...], sa_wk[...], sa_bk[...],
                 sa_wv[...], sa_bv[...], sa_wo[...], sa_bo[...])

    # Sublayer 1: pre-norm encoder (cross) attention + residual.
    y = _layer_norm(x, g1[...], be1[...])
    x = x + _mha(y, mem, enc_bias,
                 ca_wq[...], ca_bq[...], ca_wk[...], ca_bk[...],
                 ca_wv[...], ca_bv[...], ca_wo[...], ca_bo[...])

    # Sublayer 2: pre-norm position-wise feed-forward + residual.
    y = _layer_norm(x, g2[...], be2[...]).astype(jnp.bfloat16)
    h = jnp.maximum(
        jnp.dot(y, ff_w1[...], preferred_element_type=jnp.float32) + ff_b1[...], 0.0)
    x = x + jnp.dot(h.astype(jnp.bfloat16), ff_w2[...],
                    preferred_element_type=jnp.float32) + ff_b2[...]

    out_ref[0] = x


# --------------------------- param preparation ------------------------------

def _split_heads_in(w, b, num_heads):
    d = w.shape[0]
    dk = d // num_heads
    w_h = w.reshape(d, num_heads, dk).transpose(1, 0, 2)   # (H, d, dk)
    b_h = b.reshape(1, num_heads, dk).transpose(1, 0, 2)   # (H, 1, dk)
    return w_h, b_h


def _split_heads_out(wo, num_heads):
    d = wo.shape[1]
    dk = wo.shape[0] // num_heads
    return wo.reshape(num_heads, dk, d)                    # (H, dk, d)


def prepare_kernel_params(params, num_heads):
    """Reshape attention weights per-head and cast all weight matrices to bf16."""
    (sa_wq, sa_bq, sa_wk, sa_bk, sa_wv, sa_bv, sa_wo, sa_bo,
     ca_wq, ca_bq, ca_wk, ca_bk, ca_wv, ca_bv, ca_wo, ca_bo,
     ff_w1, ff_b1, ff_w2, ff_b2,
     g0, be0, g1, be1, g2, be2) = params

    def attn(wq, bq, wk, bk, wv, bv, wo, bo):
        wq_h, bq_h = _split_heads_in(wq, bq, num_heads)
        wk_h, bk_h = _split_heads_in(wk, bk, num_heads)
        wv_h, bv_h = _split_heads_in(wv, bv, num_heads)
        wo_h = _split_heads_out(wo, num_heads)
        return [wq_h.astype(jnp.bfloat16), bq_h,
                wk_h.astype(jnp.bfloat16), bk_h,
                wv_h.astype(jnp.bfloat16), bv_h,
                wo_h.astype(jnp.bfloat16), bo]

    out = attn(sa_wq, sa_bq, sa_wk, sa_bk, sa_wv, sa_bv, sa_wo, sa_bo)
    out += attn(ca_wq, ca_bq, ca_wk, ca_bk, ca_wv, ca_bv, ca_wo, ca_bo)
    out += [ff_w1.astype(jnp.bfloat16), ff_b1,
            ff_w2.astype(jnp.bfloat16), ff_b2]
    out += [g0, be0, g1, be1, g2, be2]
    return out


# ------------------------------- wrapper -----------------------------------

def decoder_layer(x, memory, enc_mask, params, num_heads, q_tile=128):
    """Fused decoder layer.  The causal decoder mask is generated in-kernel."""
    B, Lq, d = x.shape
    _, Lk, _ = memory.shape

    TQ = min(q_tile, Lq)
    assert Lq % TQ == 0, "Lq must be divisible by the query tile"
    n_qt = Lq // TQ

    emask2d = enc_mask.reshape(1, Lk).astype(jnp.float32)   # (1, Lk) keep-mask
    kparams = prepare_kernel_params(params, num_heads)

    def full_spec(shape):
        rank = len(shape)
        return pl.BlockSpec(shape, lambda b, q, _r=rank: (0,) * _r)

    in_specs = [
        pl.BlockSpec((1, TQ, d), lambda b, q: (b, q, 0)),   # x (query tile / residual)
        pl.BlockSpec((1, Lq, d), lambda b, q: (b, 0, 0)),   # x (full seq for self-attn K/V)
        pl.BlockSpec((1, Lk, d), lambda b, q: (b, 0, 0)),   # encoder memory
        full_spec((1, Lk)),                                 # encoder keep-mask
    ] + [full_spec(tuple(p.shape)) for p in kparams]

    return pl.pallas_call(
        _decoder_layer_kernel,
        out_shape=jax.ShapeDtypeStruct((B, Lq, d), jnp.float32),
        grid=(B, n_qt),
        in_specs=in_specs,
        out_specs=pl.BlockSpec((1, TQ, d), lambda b, q: (b, q, 0)),
        compiler_params=pltpu.CompilerParams(
            dimension_semantics=("parallel", "parallel"),
            vmem_limit_bytes=48 * 1024 * 1024),
    )(x, x, memory, emask2d, *kparams)


# ----------------------- deterministic parameter init ----------------------

def init_params(key, d_model, d_ff):
    keys = jax.random.split(key, 32)
    it = iter(keys)

    def w(shape, scale=0.02):
        return (scale * jax.random.normal(next(it), shape)).astype(jnp.float32)

    def attn_params():
        p = []
        for _ in range(4):                       # Wq, Wk, Wv, Wo
            p.append(w((d_model, d_model)))
            p.append(w((1, d_model)))            # bias
        return p

    sa = attn_params()
    ca = attn_params()
    ff = [w((d_model, d_ff)), w((1, d_ff)), w((d_ff, d_model)), w((1, d_model))]
    ln = []
    for _ in range(3):
        ln.append(jnp.ones((1, d_model), jnp.float32) + w((1, d_model), 0.01))  # gamma
        ln.append(w((1, d_model), 0.01))                                        # beta
    return sa + ca + ff + ln


# ------------------------------ JAX reference -------------------------------

def reference(x, memory, dec_mask, enc_mask, params, num_heads):
    (sa_wq, sa_bq, sa_wk, sa_bk, sa_wv, sa_bv, sa_wo, sa_bo,
     ca_wq, ca_bq, ca_wk, ca_bk, ca_wv, ca_bv, ca_wo, ca_bo,
     ff_w1, ff_b1, ff_w2, ff_b2,
     g0, be0, g1, be1, g2, be2) = params

    def ln(t, g, b, eps=1e-6):
        m = jnp.mean(t, -1, keepdims=True)
        v = jnp.mean((t - m) ** 2, -1, keepdims=True)
        return (t - m) * lax.rsqrt(v + eps) * g + b

    def mha(qin, kvin, mask, wq, bq, wk, bk, wv, bv, wo, bo):
        B, Lq, d = qin.shape
        Lk = kvin.shape[1]
        H = num_heads
        dk = d // H
        q = (qin @ wq + bq).reshape(B, Lq, H, dk).transpose(0, 2, 1, 3)
        k = (kvin @ wk + bk).reshape(B, Lk, H, dk).transpose(0, 2, 1, 3)
        v = (kvin @ wv + bv).reshape(B, Lk, H, dk).transpose(0, 2, 1, 3)
        s = jnp.einsum('bhqd,bhkd->bhqk', q, k) / jnp.sqrt(jnp.float32(dk))
        s = jnp.where(mask[None, None].astype(jnp.float32) > 0, s, -1e9)
        p = jax.nn.softmax(s, -1)
        ctx = jnp.einsum('bhqk,bhkd->bhqd', p, v)
        ctx = ctx.transpose(0, 2, 1, 3).reshape(B, Lq, d)
        return ctx @ wo + bo

    Lq = x.shape[1]
    Lk = memory.shape[1]
    dmask = dec_mask.reshape(Lq, Lq)
    emask = enc_mask.reshape(1, Lk)

    y = ln(x, g0, be0)
    x = x + mha(y, y, dmask, sa_wq, sa_bq, sa_wk, sa_bk, sa_wv, sa_bv, sa_wo, sa_bo)
    y = ln(x, g1, be1)
    x = x + mha(y, memory, emask, ca_wq, ca_bq, ca_wk, ca_bk, ca_wv, ca_bv, ca_wo, ca_bo)
    y = ln(x, g2, be2)
    x = x + jnp.maximum(y @ ff_w1 + ff_b1, 0.0) @ ff_w2 + ff_b2
    return x


# --------------------------------- main -------------------------------------

if __name__ == "__main__":
    B, L_tgt, L_src = 2, 8, 8
    d_model, d_ff, num_heads = 32, 64, 4

    key = jax.random.PRNGKey(0)
    k_x, k_m, k_p = jax.random.split(key, 3)

    x = jax.random.normal(k_x, (B, L_tgt, d_model), jnp.float32)
    memory = jax.random.normal(k_m, (B, L_src, d_model), jnp.float32)
    enc_mask = jnp.ones((1, 1, L_src), jnp.bool_)

    params = init_params(k_p, d_model, d_ff)

    out = decoder_layer(x, memory, enc_mask, params, num_heads)
    out = jax.block_until_ready(out)

    # Reference uses the spec's decoder_mask(): triu(ones, k=1) == 0.
    dec_mask = (jnp.triu(jnp.ones((1, L_tgt, L_tgt), jnp.float32), k=1) == 0)
    ref = reference(x, memory, dec_mask, enc_mask, params, num_heads)

    assert out.shape == (B, L_tgt, d_model)
    max_err = float(jnp.max(jnp.abs(out - ref)))
    # bf16 matmul operands (fp32 accumulation) vs fp32 reference.
    assert jnp.allclose(out, ref, atol=2e-2, rtol=2e-2), max_err

    print("KERNEL_OK")
</pallas_src>

<mosaic_0001>
module attributes {stable_mosaic.version = 11 : i64} {
  func.func @_decoder_layer_kernel(%arg0: i32, %arg1: i32, %arg2: memref<1x8x32xf32, #tpu.memory_space<vmem>>, %arg3: memref<1x8x32xf32, #tpu.memory_space<vmem>>, %arg4: memref<1x8x32xf32, #tpu.memory_space<vmem>>, %arg5: memref<1x8xf32, #tpu.memory_space<vmem>>, %arg6: memref<4x32x8xbf16, #tpu.memory_space<vmem>>, %arg7: memref<4x1x8xf32, #tpu.memory_space<vmem>>, %arg8: memref<4x32x8xbf16, #tpu.memory_space<vmem>>, %arg9: memref<4x1x8xf32, #tpu.memory_space<vmem>>, %arg10: memref<4x32x8xbf16, #tpu.memory_space<vmem>>, %arg11: memref<4x1x8xf32, #tpu.memory_space<vmem>>, %arg12: memref<4x8x32xbf16, #tpu.memory_space<vmem>>, %arg13: memref<1x32xf32, #tpu.memory_space<vmem>>, %arg14: memref<4x32x8xbf16, #tpu.memory_space<vmem>>, %arg15: memref<4x1x8xf32, #tpu.memory_space<vmem>>, %arg16: memref<4x32x8xbf16, #tpu.memory_space<vmem>>, %arg17: memref<4x1x8xf32, #tpu.memory_space<vmem>>, %arg18: memref<4x32x8xbf16, #tpu.memory_space<vmem>>, %arg19: memref<4x1x8xf32, #tpu.memory_space<vmem>>, %arg20: memref<4x8x32xbf16, #tpu.memory_space<vmem>>, %arg21: memref<1x32xf32, #tpu.memory_space<vmem>>, %arg22: memref<32x64xbf16, #tpu.memory_space<vmem>>, %arg23: memref<1x64xf32, #tpu.memory_space<vmem>>, %arg24: memref<64x32xbf16, #tpu.memory_space<vmem>>, %arg25: memref<1x32xf32, #tpu.memory_space<vmem>>, %arg26: memref<1x32xf32, #tpu.memory_space<vmem>>, %arg27: memref<1x32xf32, #tpu.memory_space<vmem>>, %arg28: memref<1x32xf32, #tpu.memory_space<vmem>>, %arg29: memref<1x32xf32, #tpu.memory_space<vmem>>, %arg30: memref<1x32xf32, #tpu.memory_space<vmem>>, %arg31: memref<1x32xf32, #tpu.memory_space<vmem>>, %arg32: memref<1x8x32xf32, #tpu.memory_space<vmem>>) attributes {dimension_semantics = [#tpu.dimension_semantics<parallel>, #tpu.dimension_semantics<parallel>], iteration_bounds = array<i64: 2, 1>, scalar_prefetch = 0 : i64, scratch_operands = 0 : i64, tpu.core_type = #tpu.core_type<tc>, window_params = [{transform_indices = @transform_0, window_bounds = array<i64: 1, 8, 32>}, {transform_indices = @transform_1, window_bounds = array<i64: 1, 8, 32>}, {transform_indices = @transform_2, window_bounds = array<i64: 1, 8, 32>}, {pipeline_mode = #tpu.pipeline_mode<synchronous>, transform_indices = @transform_3, window_bounds = array<i64: 1, 8>}, {pipeline_mode = #tpu.pipeline_mode<synchronous>, transform_indices = @transform_4, window_bounds = array<i64: 4, 32, 8>}, {pipeline_mode = #tpu.pipeline_mode<synchronous>, transform_indices = @transform_5, window_bounds = array<i64: 4, 1, 8>}, {pipeline_mode = #tpu.pipeline_mode<synchronous>, transform_indices = @transform_6, window_bounds = array<i64: 4, 32, 8>}, {pipeline_mode = #tpu.pipeline_mode<synchronous>, transform_indices = @transform_7, window_bounds = array<i64: 4, 1, 8>}, {pipeline_mode = #tpu.pipeline_mode<synchronous>, transform_indices = @transform_8, window_bounds = array<i64: 4, 32, 8>}, {pipeline_mode = #tpu.pipeline_mode<synchronous>, transform_indices = @transform_9, window_bounds = array<i64: 4, 1, 8>}, {pipeline_mode = #tpu.pipeline_mode<synchronous>, transform_indices = @transform_10, window_bounds = array<i64: 4, 8, 32>}, {pipeline_mode = #tpu.pipeline_mode<synchronous>, transform_indices = @transform_11, window_bounds = array<i64: 1, 32>}, {pipeline_mode = #tpu.pipeline_mode<synchronous>, transform_indices = @transform_12, window_bounds = array<i64: 4, 32, 8>}, {pipeline_mode = #tpu.pipeline_mode<synchronous>, transform_indices = @transform_13, window_bounds = array<i64: 4, 1, 8>}, {pipeline_mode = #tpu.pipeline_mode<synchronous>, transform_indices = @transform_14, window_bounds = array<i64: 4, 32, 8>}, {pipeline_mode = #tpu.pipeline_mode<synchronous>, transform_indices = @transform_15, window_bounds = array<i64: 4, 1, 8>}, {pipeline_mode = #tpu.pipeline_mode<synchronous>, transform_indices = @transform_16, window_bounds = array<i64: 4, 32, 8>}, {pipeline_mode = #tpu.pipeline_mode<synchronous>, transform_indices = @transform_17, window_bounds = array<i64: 4, 1, 8>}, {pipeline_mode = #tpu.pipeline_mode<synchronous>, transform_indices = @transform_18, window_bounds = array<i64: 4, 8, 32>}, {pipeline_mode = #tpu.pipeline_mode<synchronous>, transform_indices = @transform_19, window_bounds = array<i64: 1, 32>}, {pipeline_mode = #tpu.pipeline_mode<synchronous>, transform_indices = @transform_20, window_bounds = array<i64: 32, 64>}, {pipeline_mode = #tpu.pipeline_mode<synchronous>, transform_indices = @transform_21, window_bounds = array<i64: 1, 64>}, {pipeline_mode = #tpu.pipeline_mode<synchronous>, transform_indices = @transform_22, window_bounds = array<i64: 64, 32>}, {pipeline_mode = #tpu.pipeline_mode<synchronous>, transform_indices = @transform_23, window_bounds = array<i64: 1, 32>}, {pipeline_mode = #tpu.pipeline_mode<synchronous>, transform_indices = @transform_24, window_bounds = array<i64: 1, 32>}, {pipeline_mode = #tpu.pipeline_mode<synchronous>, transform_indices = @transform_25, window_bounds = array<i64: 1, 32>}, {pipeline_mode = #tpu.pipeline_mode<synchronous>, transform_indices = @transform_26, window_bounds = array<i64: 1, 32>}, {pipeline_mode = #tpu.pipeline_mode<synchronous>, transform_indices = @transform_27, window_bounds = array<i64: 1, 32>}, {pipeline_mode = #tpu.pipeline_mode<synchronous>, transform_indices = @transform_28, window_bounds = array<i64: 1, 32>}, {pipeline_mode = #tpu.pipeline_mode<synchronous>, transform_indices = @transform_29, window_bounds = array<i64: 1, 32>}, {transform_indices = @transform_30, window_bounds = array<i64: 1, 8, 32>}]} {
    %c0 = arith.constant 0 : index
    %c0_0 = arith.constant 0 : index
    %c0_1 = arith.constant 0 : index
    %0 = vector.load %arg2[%c0, %c0_0, %c0_1] : memref<1x8x32xf32, #tpu.memory_space<vmem>>, vector<1x8x32xf32>
    %1 = vector.shape_cast %0 : vector<1x8x32xf32> to vector<8x32xf32>
    %c0_2 = arith.constant 0 : index
    %c0_3 = arith.constant 0 : index
    %c0_4 = arith.constant 0 : index
    %2 = vector.load %arg3[%c0_2, %c0_3, %c0_4] : memref<1x8x32xf32, #tpu.memory_space<vmem>>, vector<1x8x32xf32>
    %3 = vector.shape_cast %2 : vector<1x8x32xf32> to vector<8x32xf32>
    %c0_5 = arith.constant 0 : index
    %c0_6 = arith.constant 0 : index
    %c0_7 = arith.constant 0 : index
    %4 = vector.load %arg4[%c0_5, %c0_6, %c0_7] : memref<1x8x32xf32, #tpu.memory_space<vmem>>, vector<1x8x32xf32>
    %5 = vector.shape_cast %4 : vector<1x8x32xf32> to vector<8x32xf32>
    %c8_i32 = arith.constant 8 : i32
    %6 = arith.muli %arg1, %c8_i32 : i32
    %7 = tpu.iota {dimensions = array<i32: 0>} : vector<8x8xi32>
    %8 = vector.broadcast %6 : i32 to vector<8x8xi32>
    %9 = arith.addi %8, %7 : vector<8x8xi32>
    %10 = tpu.iota {dimensions = array<i32: 1>} : vector<8x8xi32>
    %11 = arith.cmpi sle, %10, %9 : vector<8x8xi32>
    %cst = arith.constant 0.000000e+00 : f32
    %cst_8 = arith.constant -1.000000e+09 : f32
    %12 = vector.broadcast %cst : f32 to vector<8x8xf32>
    %13 = vector.broadcast %cst_8 : f32 to vector<8x8xf32>
    %14 = arith.select %11, %12, %13 : vector<8x8xi1>, vector<8x8xf32>
    %c0_9 = arith.constant 0 : index
    %c0_10 = arith.constant 0 : index
    %15 = vector.load %arg5[%c0_9, %c0_10] : memref<1x8xf32, #tpu.memory_space<vmem>>, vector<1x8xf32>
    %cst_11 = arith.constant 0.000000e+00 : f32
    %16 = vector.broadcast %cst_11 : f32 to vector<1x8xf32>
    %17 = arith.cmpf ogt, %15, %16 : vector<1x8xf32>
    %cst_12 = arith.constant 0.000000e+00 : f32
    %cst_13 = arith.constant -1.000000e+09 : f32
    %18 = vector.broadcast %cst_12 : f32 to vector<1x8xf32>
    %19 = vector.broadcast %cst_13 : f32 to vector<1x8xf32>
    %20 = arith.select %17, %18, %19 : vector<1x8xi1>, vector<1x8xf32>
    %c0_14 = arith.constant 0 : index
    %c0_15 = arith.constant 0 : index
    %21 = vector.load %arg26[%c0_14, %c0_15] : memref<1x32xf32, #tpu.memory_space<vmem>>, vector<1x32xf32>
    %c0_16 = arith.constant 0 : index
    %c0_17 = arith.constant 0 : index
    %22 = vector.load %arg27[%c0_16, %c0_17] : memref<1x32xf32, #tpu.memory_space<vmem>>, vector<1x32xf32>
    %cst_18 = arith.constant dense<0.000000e+00> : vector<8xf32>
    %23 = vector.multi_reduction <add>, %1, %cst_18 [1] : vector<8x32xf32> to vector<8xf32>
    %24 = vector.shape_cast %23 : vector<8xf32> to vector<8x1xf32>
    %cst_19 = arith.constant 3.200000e+01 : f32
    %25 = vector.broadcast %cst_19 : f32 to vector<8x1xf32>
    %26 = arith.divf %24, %25 : vector<8x1xf32>
    %27 = vector.broadcast %26 : vector<8x1xf32> to vector<8x32xf32>
    %28 = arith.subf %1, %27 : vector<8x32xf32>
    %29 = arith.mulf %28, %28 : vector<8x32xf32>
    %cst_20 = arith.constant dense<0.000000e+00> : vector<8xf32>
    %30 = vector.multi_reduction <add>, %29, %cst_20 [1] : vector<8x32xf32> to vector<8xf32>
    %31 = vector.shape_cast %30 : vector<8xf32> to vector<8x1xf32>
    %cst_21 = arith.constant 3.200000e+01 : f32
    %32 = vector.broadcast %cst_21 : f32 to vector<8x1xf32>
    %33 = arith.divf %31, %32 : vector<8x1xf32>
    %34 = vector.broadcast %26 : vector<8x1xf32> to vector<8x32xf32>
    %35 = arith.subf %1, %34 : vector<8x32xf32>
    %cst_22 = arith.constant 9.99999997E-7 : f32
    %36 = vector.broadcast %cst_22 : f32 to vector<8x1xf32>
    %37 = arith.addf %33, %36 : vector<8x1xf32>
    %38 = math.rsqrt %37 : vector<8x1xf32>
    %39 = vector.broadcast %38 : vector<8x1xf32> to vector<8x32xf32>
    %40 = arith.mulf %35, %39 : vector<8x32xf32>
    %41 = vector.broadcast %21 : vector<1x32xf32> to vector<8x32xf32>
    %42 = arith.mulf %40, %41 : vector<8x32xf32>
    %43 = vector.broadcast %22 : vector<1x32xf32> to vector<8x32xf32>
    %44 = arith.addf %42, %43 : vector<8x32xf32>
    %c0_23 = arith.constant 0 : index
    %c0_24 = arith.constant 0 : index
    %45 = vector.load %arg26[%c0_23, %c0_24] : memref<1x32xf32, #tpu.memory_space<vmem>>, vector<1x32xf32>
    %c0_25 = arith.constant 0 : index
    %c0_26 = arith.constant 0 : index
    %46 = vector.load %arg27[%c0_25, %c0_26] : memref<1x32xf32, #tpu.memory_space<vmem>>, vector<1x32xf32>
    %cst_27 = arith.constant dense<0.000000e+00> : vector<8xf32>
    %47 = vector.multi_reduction <add>, %3, %cst_27 [1] : vector<8x32xf32> to vector<8xf32>
    %48 = vector.shape_cast %47 : vector<8xf32> to vector<8x1xf32>
    %cst_28 = arith.constant 3.200000e+01 : f32
    %49 = vector.broadcast %cst_28 : f32 to vector<8x1xf32>
    %50 = arith.divf %48, %49 : vector<8x1xf32>
    %51 = vector.broadcast %50 : vector<8x1xf32> to vector<8x32xf32>
    %52 = arith.subf %3, %51 : vector<8x32xf32>
    %53 = arith.mulf %52, %52 : vector<8x32xf32>
    %cst_29 = arith.constant dense<0.000000e+00> : vector<8xf32>
    %54 = vector.multi_reduction <add>, %53, %cst_29 [1] : vector<8x32xf32> to vector<8xf32>
    %55 = vector.shape_cast %54 : vector<8xf32> to vector<8x1xf32>
    %cst_30 = arith.constant 3.200000e+01 : f32
    %56 = vector.broadcast %cst_30 : f32 to vector<8x1xf32>
    %57 = arith.divf %55, %56 : vector<8x1xf32>
    %58 = vector.broadcast %50 : vector<8x1xf32> to vector<8x32xf32>
    %59 = arith.subf %3, %58 : vector<8x32xf32>
    %cst_31 = arith.constant 9.99999997E-7 : f32
    %60 = vector.broadcast %cst_31 : f32 to vector<8x1xf32>
    %61 = arith.addf %57, %60 : vector<8x1xf32>
    %62 = math.rsqrt %61 : vector<8x1xf32>
    %63 = vector.broadcast %62 : vector<8x1xf32> to vector<8x32xf32>
    %64 = arith.mulf %59, %63 : vector<8x32xf32>
    %65 = vector.broadcast %45 : vector<1x32xf32> to vector<8x32xf32>
    %66 = arith.mulf %64, %65 : vector<8x32xf32>
    %67 = vector.broadcast %46 : vector<1x32xf32> to vector<8x32xf32>
    %68 = arith.addf %66, %67 : vector<8x32xf32>
    %c0_32 = arith.constant 0 : index
    %c0_33 = arith.constant 0 : index
    %c0_34 = arith.constant 0 : index
    %69 = vector.load %arg6[%c0_32, %c0_33, %c0_34] : memref<4x32x8xbf16, #tpu.memory_space<vmem>>, vector<4x32x8xbf16>
    %c0_35 = arith.constant 0 : index
    %c0_36 = arith.constant 0 : index
    %c0_37 = arith.constant 0 : index
    %70 = vector.load %arg7[%c0_35, %c0_36, %c0_37] : memref<4x1x8xf32, #tpu.memory_space<vmem>>, vector<4x1x8xf32>
    %c0_38 = arith.constant 0 : index
    %c0_39 = arith.constant 0 : index
    %c0_40 = arith.constant 0 : index
    %71 = vector.load %arg8[%c0_38, %c0_39, %c0_40] : memref<4x32x8xbf16, #tpu.memory_space<vmem>>, vector<4x32x8xbf16>
    %c0_41 = arith.constant 0 : index
    %c0_42 = arith.constant 0 : index
    %c0_43 = arith.constant 0 : index
    %72 = vector.load %arg9[%c0_41, %c0_42, %c0_43] : memref<4x1x8xf32, #tpu.memory_space<vmem>>, vector<4x1x8xf32>
    %c0_44 = arith.constant 0 : index
    %c0_45 = arith.constant 0 : index
    %c0_46 = arith.constant 0 : index
    %73 = vector.load %arg10[%c0_44, %c0_45, %c0_46] : memref<4x32x8xbf16, #tpu.memory_space<vmem>>, vector<4x32x8xbf16>
    %c0_47 = arith.constant 0 : index
    %c0_48 = arith.constant 0 : index
    %c0_49 = arith.constant 0 : index
    %74 = vector.load %arg11[%c0_47, %c0_48, %c0_49] : memref<4x1x8xf32, #tpu.memory_space<vmem>>, vector<4x1x8xf32>
    %c0_50 = arith.constant 0 : index
    %c0_51 = arith.constant 0 : index
    %c0_52 = arith.constant 0 : index
    %75 = vector.load %arg12[%c0_50, %c0_51, %c0_52] : memref<4x8x32xbf16, #tpu.memory_space<vmem>>, vector<4x8x32xbf16>
    %c0_53 = arith.constant 0 : index
    %c0_54 = arith.constant 0 : index
    %76 = vector.load %arg13[%c0_53, %c0_54] : memref<1x32xf32, #tpu.memory_space<vmem>>, vector<1x32xf32>
    %cst_55 = arith.constant 8.000000e+00 : f32
    %77 = math.sqrt %cst_55 : f32
    %cst_56 = arith.constant 1.000000e+00 : f32
    %78 = arith.divf %cst_56, %77 : f32
    %79 = arith.truncf %44 : vector<8x32xf32> to vector<8x32xbf16>
    %80 = vector.shape_cast %79 : vector<8x32xbf16> to vector<1x8x32xbf16>
    %81 = vector.shape_cast %80 : vector<1x8x32xbf16> to vector<1x8x32xbf16>
    %82 = vector.broadcast %81 : vector<1x8x32xbf16> to vector<4x8x32xbf16>
    %83 = arith.truncf %68 : vector<8x32xf32> to vector<8x32xbf16>
    %84 = vector.shape_cast %83 : vector<8x32xbf16> to vector<1x8x32xbf16>
    %85 = vector.shape_cast %84 : vector<1x8x32xbf16> to vector<1x8x32xbf16>
    %86 = vector.broadcast %85 : vector<1x8x32xbf16> to vector<4x8x32xbf16>
    "tpu.trace_start"() <{level = 10 : i32, message = "hld,hdk->hlk"}> : () -> ()
    %cst_57 = arith.constant dense<0.000000e+00> : vector<4x8x8xf32>
    %87 = tpu.matmul %82, %69, %cst_57 {dimension_numbers = #tpu.dot_dimension_numbers<[2], [1], [1], [2], [0, 0, 0, 1, 1, 2], [0], [0]>} : vector<4x8x32xbf16>, vector<4x32x8xbf16>, vector<4x8x8xf32> -> vector<4x8x8xf32>
    "tpu.trace_stop"() : () -> ()
    %88 = vector.broadcast %70 : vector<4x1x8xf32> to vector<4x8x8xf32>
    %89 = arith.addf %87, %88 : vector<4x8x8xf32>
    %90 = vector.broadcast %78 : f32 to vector<4x8x8xf32>
    %91 = arith.mulf %89, %90 : vector<4x8x8xf32>
    "tpu.trace_start"() <{level = 10 : i32, message = "hld,hdk->hlk"}> : () -> ()
    %cst_58 = arith.constant dense<0.000000e+00> : vector<4x8x8xf32>
    %92 = tpu.matmul %86, %71, %cst_58 {dimension_numbers = #tpu.dot_dimension_numbers<[2], [1], [1], [2], [0, 0, 0, 1, 1, 2], [0], [0]>} : vector<4x8x32xbf16>, vector<4x32x8xbf16>, vector<4x8x8xf32> -> vector<4x8x8xf32>
    "tpu.trace_stop"() : () -> ()
    %93 = vector.broadcast %72 : vector<4x1x8xf32> to vector<4x8x8xf32>
    %94 = arith.addf %92, %93 : vector<4x8x8xf32>
    "tpu.trace_start"() <{level = 10 : i32, message = "hld,hdk->hlk"}> : () -> ()
    %cst_59 = arith.constant dense<0.000000e+00> : vector<4x8x8xf32>
    %95 = tpu.matmul %86, %73, %cst_59 {dimension_numbers = #tpu.dot_dimension_numbers<[2], [1], [1], [2], [0, 0, 0, 1, 1, 2], [0], [0]>} : vector<4x8x32xbf16>, vector<4x32x8xbf16>, vector<4x8x8xf32> -> vector<4x8x8xf32>
    "tpu.trace_stop"() : () -> ()
    %96 = vector.broadcast %74 : vector<4x1x8xf32> to vector<4x8x8xf32>
    %97 = arith.addf %95, %96 : vector<4x8x8xf32>
    %98 = arith.truncf %91 : vector<4x8x8xf32> to vector<4x8x8xbf16>
    %99 = arith.truncf %94 : vector<4x8x8xf32> to vector<4x8x8xbf16>
    "tpu.trace_start"() <{level = 10 : i32, message = "hqd,hkd->hqk"}> : () -> ()
    %cst_60 = arith.constant dense<0.000000e+00> : vector<4x8x8xf32>
    %100 = tpu.matmul %98, %99, %cst_60 {dimension_numbers = #tpu.dot_dimension_numbers<[2], [2], [1], [1], [0, 0, 0, 1, 1, 1], [0], [0]>} : vector<4x8x8xbf16>, vector<4x8x8xbf16>, vector<4x8x8xf32> -> vector<4x8x8xf32>
    "tpu.trace_stop"() : () -> ()
    %101 = vector.shape_cast %14 : vector<8x8xf32> to vector<1x8x8xf32>
    %102 = vector.broadcast %101 : vector<1x8x8xf32> to vector<4x8x8xf32>
    %103 = arith.addf %100, %102 : vector<4x8x8xf32>
    %cst_61 = arith.constant dense<0xFF800000> : vector<4x8xf32>
    %104 = vector.multi_reduction <maximumf>, %103, %cst_61 [2] : vector<4x8x8xf32> to vector<4x8xf32>
    %105 = vector.shape_cast %104 : vector<4x8xf32> to vector<4x8x1xf32>
    %106 = vector.broadcast %105 : vector<4x8x1xf32> to vector<4x8x8xf32>
    %107 = arith.subf %103, %106 : vector<4x8x8xf32>
    %108 = math.exp %107 : vector<4x8x8xf32>
    %cst_62 = arith.constant dense<0.000000e+00> : vector<4x8xf32>
    %109 = vector.multi_reduction <add>, %108, %cst_62 [2] : vector<4x8x8xf32> to vector<4x8xf32>
    %110 = vector.shape_cast %109 : vector<4x8xf32> to vector<4x8x1xf32>
    %111 = tpu.reciprocal %110 {approx = true} : vector<4x8x1xf32> -> vector<4x8x1xf32>
    %112 = vector.broadcast %111 : vector<4x8x1xf32> to vector<4x8x8xf32>
    %113 = arith.mulf %108, %112 : vector<4x8x8xf32>
    %114 = arith.truncf %113 : vector<4x8x8xf32> to vector<4x8x8xbf16>
    %115 = arith.truncf %97 : vector<4x8x8xf32> to vector<4x8x8xbf16>
    "tpu.trace_start"() <{level = 10 : i32, message = "hqk,hkd->hqd"}> : () -> ()
    %cst_63 = arith.constant dense<0.000000e+00> : vector<4x8x8xf32>
    %116 = tpu.matmul %114, %115, %cst_63 {dimension_numbers = #tpu.dot_dimension_numbers<[2], [1], [1], [2], [0, 0, 0, 1, 1, 2], [0], [0]>} : vector<4x8x8xbf16>, vector<4x8x8xbf16>, vector<4x8x8xf32> -> vector<4x8x8xf32>
    "tpu.trace_stop"() : () -> ()
    %117 = arith.truncf %116 : vector<4x8x8xf32> to vector<4x8x8xbf16>
    "tpu.trace_start"() <{level = 10 : i32, message = "hqd,hdm->hqm"}> : () -> ()
    %cst_64 = arith.constant dense<0.000000e+00> : vector<4x8x32xf32>
    %118 = tpu.matmul %117, %75, %cst_64 {dimension_numbers = #tpu.dot_dimension_numbers<[2], [1], [1], [2], [0, 0, 0, 1, 1, 2], [0], [0]>} : vector<4x8x8xbf16>, vector<4x8x32xbf16>, vector<4x8x32xf32> -> vector<4x8x32xf32>
    "tpu.trace_stop"() : () -> ()
    %cst_65 = arith.constant dense<0.000000e+00> : vector<8x32xf32>
    %119 = vector.multi_reduction <add>, %118, %cst_65 [0] : vector<4x8x32xf32> to vector<8x32xf32>
    %120 = vector.broadcast %76 : vector<1x32xf32> to vector<8x32xf32>
    %121 = arith.addf %119, %120 : vector<8x32xf32>
    %122 = arith.addf %1, %121 : vector<8x32xf32>
    %c0_66 = arith.constant 0 : index
    %c0_67 = arith.constant 0 : index
    %123 = vector.load %arg28[%c0_66, %c0_67] : memref<1x32xf32, #tpu.memory_space<vmem>>, vector<1x32xf32>
    %c0_68 = arith.constant 0 : index
    %c0_69 = arith.constant 0 : index
    %124 = vector.load %arg29[%c0_68, %c0_69] : memref<1x32xf32, #tpu.memory_space<vmem>>, vector<1x32xf32>
    %cst_70 = arith.constant dense<0.000000e+00> : vector<8xf32>
    %125 = vector.multi_reduction <add>, %122, %cst_70 [1] : vector<8x32xf32> to vector<8xf32>
    %126 = vector.shape_cast %125 : vector<8xf32> to vector<8x1xf32>
    %cst_71 = arith.constant 3.200000e+01 : f32
    %127 = vector.broadcast %cst_71 : f32 to vector<8x1xf32>
    %128 = arith.divf %126, %127 : vector<8x1xf32>
    %129 = vector.broadcast %128 : vector<8x1xf32> to vector<8x32xf32>
    %130 = arith.subf %122, %129 : vector<8x32xf32>
    %131 = arith.mulf %130, %130 : vector<8x32xf32>
    %cst_72 = arith.constant dense<0.000000e+00> : vector<8xf32>
    %132 = vector.multi_reduction <add>, %131, %cst_72 [1] : vector<8x32xf32> to vector<8xf32>
    %133 = vector.shape_cast %132 : vector<8xf32> to vector<8x1xf32>
    %cst_73 = arith.constant 3.200000e+01 : f32
    %134 = vector.broadcast %cst_73 : f32 to vector<8x1xf32>
    %135 = arith.divf %133, %134 : vector<8x1xf32>
    %136 = vector.broadcast %128 : vector<8x1xf32> to vector<8x32xf32>
    %137 = arith.subf %122, %136 : vector<8x32xf32>
    %cst_74 = arith.constant 9.99999997E-7 : f32
    %138 = vector.broadcast %cst_74 : f32 to vector<8x1xf32>
    %139 = arith.addf %135, %138 : vector<8x1xf32>
    %140 = math.rsqrt %139 : vector<8x1xf32>
    %141 = vector.broadcast %140 : vector<8x1xf32> to vector<8x32xf32>
    %142 = arith.mulf %137, %141 : vector<8x32xf32>
    %143 = vector.broadcast %123 : vector<1x32xf32> to vector<8x32xf32>
    %144 = arith.mulf %142, %143 : vector<8x32xf32>
    %145 = vector.broadcast %124 : vector<1x32xf32> to vector<8x32xf32>
    %146 = arith.addf %144, %145 : vector<8x32xf32>
    %c0_75 = arith.constant 0 : index
    %c0_76 = arith.constant 0 : index
    %c0_77 = arith.constant 0 : index
    %147 = vector.load %arg14[%c0_75, %c0_76, %c0_77] : memref<4x32x8xbf16, #tpu.memory_space<vmem>>, vector<4x32x8xbf16>
    %c0_78 = arith.constant 0 : index
    %c0_79 = arith.constant 0 : index
    %c0_80 = arith.constant 0 : index
    %148 = vector.load %arg15[%c0_78, %c0_79, %c0_80] : memref<4x1x8xf32, #tpu.memory_space<vmem>>, vector<4x1x8xf32>
    %c0_81 = arith.constant 0 : index
    %c0_82 = arith.constant 0 : index
    %c0_83 = arith.constant 0 : index
    %149 = vector.load %arg16[%c0_81, %c0_82, %c0_83] : memref<4x32x8xbf16, #tpu.memory_space<vmem>>, vector<4x32x8xbf16>
    %c0_84 = arith.constant 0 : index
    %c0_85 = arith.constant 0 : index
    %c0_86 = arith.constant 0 : index
    %150 = vector.load %arg17[%c0_84, %c0_85, %c0_86] : memref<4x1x8xf32, #tpu.memory_space<vmem>>, vector<4x1x8xf32>
    %c0_87 = arith.constant 0 : index
    %c0_88 = arith.constant 0 : index
    %c0_89 = arith.constant 0 : index
    %151 = vector.load %arg18[%c0_87, %c0_88, %c0_89] : memref<4x32x8xbf16, #tpu.memory_space<vmem>>, vector<4x32x8xbf16>
    %c0_90 = arith.constant 0 : index
    %c0_91 = arith.constant 0 : index
    %c0_92 = arith.constant 0 : index
    %152 = vector.load %arg19[%c0_90, %c0_91, %c0_92] : memref<4x1x8xf32, #tpu.memory_space<vmem>>, vector<4x1x8xf32>
    %c0_93 = arith.constant 0 : index
    %c0_94 = arith.constant 0 : index
    %c0_95 = arith.constant 0 : index
    %153 = vector.load %arg20[%c0_93, %c0_94, %c0_95] : memref<4x8x32xbf16, #tpu.memory_space<vmem>>, vector<4x8x32xbf16>
    %c0_96 = arith.constant 0 : index
    %c0_97 = arith.constant 0 : index
    %154 = vector.load %arg21[%c0_96, %c0_97] : memref<1x32xf32, #tpu.memory_space<vmem>>, vector<1x32xf32>
    %cst_98 = arith.constant 8.000000e+00 : f32
    %155 = math.sqrt %cst_98 : f32
    %cst_99 = arith.constant 1.000000e+00 : f32
    %156 = arith.divf %cst_99, %155 : f32
    %157 = arith.truncf %146 : vector<8x32xf32> to vector<8x32xbf16>
    %158 = vector.shape_cast %157 : vector<8x32xbf16> to vector<1x8x32xbf16>
    %159 = vector.shape_cast %158 : vector<1x8x32xbf16> to vector<1x8x32xbf16>
    %160 = vector.broadcast %159 : vector<1x8x32xbf16> to vector<4x8x32xbf16>
    %161 = arith.truncf %5 : vector<8x32xf32> to vector<8x32xbf16>
    %162 = vector.shape_cast %161 : vector<8x32xbf16> to vector<1x8x32xbf16>
    %163 = vector.shape_cast %162 : vector<1x8x32xbf16> to vector<1x8x32xbf16>
    %164 = vector.broadcast %163 : vector<1x8x32xbf16> to vector<4x8x32xbf16>
    "tpu.trace_start"() <{level = 10 : i32, message = "hld,hdk->hlk"}> : () -> ()
    %cst_100 = arith.constant dense<0.000000e+00> : vector<4x8x8xf32>
    %165 = tpu.matmul %160, %147, %cst_100 {dimension_numbers = #tpu.dot_dimension_numbers<[2], [1], [1], [2], [0, 0, 0, 1, 1, 2], [0], [0]>} : vector<4x8x32xbf16>, vector<4x32x8xbf16>, vector<4x8x8xf32> -> vector<4x8x8xf32>
    "tpu.trace_stop"() : () -> ()
    %166 = vector.broadcast %148 : vector<4x1x8xf32> to vector<4x8x8xf32>
    %167 = arith.addf %165, %166 : vector<4x8x8xf32>
    %168 = vector.broadcast %156 : f32 to vector<4x8x8xf32>
    %169 = arith.mulf %167, %168 : vector<4x8x8xf32>
    "tpu.trace_start"() <{level = 10 : i32, message = "hld,hdk->hlk"}> : () -> ()
    %cst_101 = arith.constant dense<0.000000e+00> : vector<4x8x8xf32>
    %170 = tpu.matmul %164, %149, %cst_101 {dimension_numbers = #tpu.dot_dimension_numbers<[2], [1], [1], [2], [0, 0, 0, 1, 1, 2], [0], [0]>} : vector<4x8x32xbf16>, vector<4x32x8xbf16>, vector<4x8x8xf32> -> vector<4x8x8xf32>
    "tpu.trace_stop"() : () -> ()
    %171 = vector.broadcast %150 : vector<4x1x8xf32> to vector<4x8x8xf32>
    %172 = arith.addf %170, %171 : vector<4x8x8xf32>
    "tpu.trace_start"() <{level = 10 : i32, message = "hld,hdk->hlk"}> : () -> ()
    %cst_102 = arith.constant dense<0.000000e+00> : vector<4x8x8xf32>
    %173 = tpu.matmul %164, %151, %cst_102 {dimension_numbers = #tpu.dot_dimension_numbers<[2], [1], [1], [2], [0, 0, 0, 1, 1, 2], [0], [0]>} : vector<4x8x32xbf16>, vector<4x32x8xbf16>, vector<4x8x8xf32> -> vector<4x8x8xf32>
    "tpu.trace_stop"() : () -> ()
    %174 = vector.broadcast %152 : vector<4x1x8xf32> to vector<4x8x8xf32>
    %175 = arith.addf %173, %174 : vector<4x8x8xf32>
    %176 = arith.truncf %169 : vector<4x8x8xf32> to vector<4x8x8xbf16>
    %177 = arith.truncf %172 : vector<4x8x8xf32> to vector<4x8x8xbf16>
    "tpu.trace_start"() <{level = 10 : i32, message = "hqd,hkd->hqk"}> : () -> ()
    %cst_103 = arith.constant dense<0.000000e+00> : vector<4x8x8xf32>
    %178 = tpu.matmul %176, %177, %cst_103 {dimension_numbers = #tpu.dot_dimension_numbers<[2], [2], [1], [1], [0, 0, 0, 1, 1, 1], [0], [0]>} : vector<4x8x8xbf16>, vector<4x8x8xbf16>, vector<4x8x8xf32> -> vector<4x8x8xf32>
    "tpu.trace_stop"() : () -> ()
    %179 = vector.shape_cast %20 : vector<1x8xf32> to vector<1x1x8xf32>
    %180 = vector.broadcast %179 : vector<1x1x8xf32> to vector<4x8x8xf32>
    %181 = arith.addf %178, %180 : vector<4x8x8xf32>
    %cst_104 = arith.constant dense<0xFF800000> : vector<4x8xf32>
    %182 = vector.multi_reduction <maximumf>, %181, %cst_104 [2] : vector<4x8x8xf32> to vector<4x8xf32>
    %183 = vector.shape_cast %182 : vector<4x8xf32> to vector<4x8x1xf32>
    %184 = vector.broadcast %183 : vector<4x8x1xf32> to vector<4x8x8xf32>
    %185 = arith.subf %181, %184 : vector<4x8x8xf32>
    %186 = math.exp %185 : vector<4x8x8xf32>
    %cst_105 = arith.constant dense<0.000000e+00> : vector<4x8xf32>
    %187 = vector.multi_reduction <add>, %186, %cst_105 [2] : vector<4x8x8xf32> to vector<4x8xf32>
    %188 = vector.shape_cast %187 : vector<4x8xf32> to vector<4x8x1xf32>
    %189 = tpu.reciprocal %188 {approx = true} : vector<4x8x1xf32> -> vector<4x8x1xf32>
    %190 = vector.broadcast %189 : vector<4x8x1xf32> to vector<4x8x8xf32>
    %191 = arith.mulf %186, %190 : vector<4x8x8xf32>
    %192 = arith.truncf %191 : vector<4x8x8xf32> to vector<4x8x8xbf16>
    %193 = arith.truncf %175 : vector<4x8x8xf32> to vector<4x8x8xbf16>
    "tpu.trace_start"() <{level = 10 : i32, message = "hqk,hkd->hqd"}> : () -> ()
    %cst_106 = arith.constant dense<0.000000e+00> : vector<4x8x8xf32>
    %194 = tpu.matmul %192, %193, %cst_106 {dimension_numbers = #tpu.dot_dimension_numbers<[2], [1], [1], [2], [0, 0, 0, 1, 1, 2], [0], [0]>} : vector<4x8x8xbf16>, vector<4x8x8xbf16>, vector<4x8x8xf32> -> vector<4x8x8xf32>
    "tpu.trace_stop"() : () -> ()
    %195 = arith.truncf %194 : vector<4x8x8xf32> to vector<4x8x8xbf16>
    "tpu.trace_start"() <{level = 10 : i32, message = "hqd,hdm->hqm"}> : () -> ()
    %cst_107 = arith.constant dense<0.000000e+00> : vector<4x8x32xf32>
    %196 = tpu.matmul %195, %153, %cst_107 {dimension_numbers = #tpu.dot_dimension_numbers<[2], [1], [1], [2], [0, 0, 0, 1, 1, 2], [0], [0]>} : vector<4x8x8xbf16>, vector<4x8x32xbf16>, vector<4x8x32xf32> -> vector<4x8x32xf32>
    "tpu.trace_stop"() : () -> ()
    %cst_108 = arith.constant dense<0.000000e+00> : vector<8x32xf32>
    %197 = vector.multi_reduction <add>, %196, %cst_108 [0] : vector<4x8x32xf32> to vector<8x32xf32>
    %198 = vector.broadcast %154 : vector<1x32xf32> to vector<8x32xf32>
    %199 = arith.addf %197, %198 : vector<8x32xf32>
    %200 = arith.addf %122, %199 : vector<8x32xf32>
    %c0_109 = arith.constant 0 : index
    %c0_110 = arith.constant 0 : index
    %201 = vector.load %arg30[%c0_109, %c0_110] : memref<1x32xf32, #tpu.memory_space<vmem>>, vector<1x32xf32>
    %c0_111 = arith.constant 0 : index
    %c0_112 = arith.constant 0 : index
    %202 = vector.load %arg31[%c0_111, %c0_112] : memref<1x32xf32, #tpu.memory_space<vmem>>, vector<1x32xf32>
    %cst_113 = arith.constant dense<0.000000e+00> : vector<8xf32>
    %203 = vector.multi_reduction <add>, %200, %cst_113 [1] : vector<8x32xf32> to vector<8xf32>
    %204 = vector.shape_cast %203 : vector<8xf32> to vector<8x1xf32>
    %cst_114 = arith.constant 3.200000e+01 : f32
    %205 = vector.broadcast %cst_114 : f32 to vector<8x1xf32>
    %206 = arith.divf %204, %205 : vector<8x1xf32>
    %207 = vector.broadcast %206 : vector<8x1xf32> to vector<8x32xf32>
    %208 = arith.subf %200, %207 : vector<8x32xf32>
    %209 = arith.mulf %208, %208 : vector<8x32xf32>
    %cst_115 = arith.constant dense<0.000000e+00> : vector<8xf32>
    %210 = vector.multi_reduction <add>, %209, %cst_115 [1] : vector<8x32xf32> to vector<8xf32>
    %211 = vector.shape_cast %210 : vector<8xf32> to vector<8x1xf32>
    %cst_116 = arith.constant 3.200000e+01 : f32
    %212 = vector.broadcast %cst_116 : f32 to vector<8x1xf32>
    %213 = arith.divf %211, %212 : vector<8x1xf32>
    %214 = vector.broadcast %206 : vector<8x1xf32> to vector<8x32xf32>
    %215 = arith.subf %200, %214 : vector<8x32xf32>
    %cst_117 = arith.constant 9.99999997E-7 : f32
    %216 = vector.broadcast %cst_117 : f32 to vector<8x1xf32>
    %217 = arith.addf %213, %216 : vector<8x1xf32>
    %218 = math.rsqrt %217 : vector<8x1xf32>
    %219 = vector.broadcast %218 : vector<8x1xf32> to vector<8x32xf32>
    %220 = arith.mulf %215, %219 : vector<8x32xf32>
    %221 = vector.broadcast %201 : vector<1x32xf32> to vector<8x32xf32>
    %222 = arith.mulf %220, %221 : vector<8x32xf32>
    %223 = vector.broadcast %202 : vector<1x32xf32> to vector<8x32xf32>
    %224 = arith.addf %222, %223 : vector<8x32xf32>
    %225 = arith.truncf %224 : vector<8x32xf32> to vector<8x32xbf16>
    %c0_118 = arith.constant 0 : index
    %c0_119 = arith.constant 0 : index
    %226 = vector.load %arg22[%c0_118, %c0_119] : memref<32x64xbf16, #tpu.memory_space<vmem>>, vector<32x64xbf16>
    %cst_120 = arith.constant dense<0.000000e+00> : vector<8x64xf32>
    %227 = tpu.matmul %225, %226, %cst_120 {dimension_numbers = #tpu.dot_dimension_numbers<[1], [0], [0], [1], [0, 0, 1, 1], [], []>} : vector<8x32xbf16>, vector<32x64xbf16>, vector<8x64xf32> -> vector<8x64xf32>
    %c0_121 = arith.constant 0 : index
    %c0_122 = arith.constant 0 : index
    %228 = vector.load %arg23[%c0_121, %c0_122] : memref<1x64xf32, #tpu.memory_space<vmem>>, vector<1x64xf32>
    %229 = vector.broadcast %228 : vector<1x64xf32> to vector<8x64xf32>
    %230 = arith.addf %227, %229 : vector<8x64xf32>
    %cst_123 = arith.constant 0.000000e+00 : f32
    %231 = vector.broadcast %cst_123 : f32 to vector<8x64xf32>
    %232 = arith.maximumf %230, %231 : vector<8x64xf32>
    %233 = arith.truncf %232 : vector<8x64xf32> to vector<8x64xbf16>
    %c0_124 = arith.constant 0 : index
    %c0_125 = arith.constant 0 : index
    %234 = vector.load %arg24[%c0_124, %c0_125] : memref<64x32xbf16, #tpu.memory_space<vmem>>, vector<64x32xbf16>
    %cst_126 = arith.constant dense<0.000000e+00> : vector<8x32xf32>
    %235 = tpu.matmul %233, %234, %cst_126 {dimension_numbers = #tpu.dot_dimension_numbers<[1], [0], [0], [1], [0, 0, 1, 1], [], []>} : vector<8x64xbf16>, vector<64x32xbf16>, vector<8x32xf32> -> vector<8x32xf32>
    %236 = arith.addf %200, %235 : vector<8x32xf32>
    %c0_127 = arith.constant 0 : index
    %c0_128 = arith.constant 0 : index
    %237 = vector.load %arg25[%c0_127, %c0_128] : memref<1x32xf32, #tpu.memory_space<vmem>>, vector<1x32xf32>
    %238 = vector.broadcast %237 : vector<1x32xf32> to vector<8x32xf32>
    %239 = arith.addf %236, %238 : vector<8x32xf32>
    %c0_129 = arith.constant 0 : index
    %c0_130 = arith.constant 0 : index
    %c0_131 = arith.constant 0 : index
    %240 = vector.load %arg32[%c0_129, %c0_130, %c0_131] : memref<1x8x32xf32, #tpu.memory_space<vmem>>, vector<1x8x32xf32>
    %241 = vector.shape_cast %240 : vector<1x8x32xf32> to vector<8x32xf32>
    %242 = vector.shape_cast %239 : vector<8x32xf32> to vector<1x8x32xf32>
    tpu.vector_store %arg32[%c0_129, %c0_130, %c0_131], %242 {strides = array<i32>} : memref<1x8x32xf32, #tpu.memory_space<vmem>>, vector<1x8x32xf32>,
    return
  }
  func.func @transform_0(%arg0: i32, %arg1: i32) -> (i32, i32, i32) {
    %c0_i32 = arith.constant 0 : i32
    %c0_i32_0 = arith.constant 0 : i32
    return %arg0, %arg1, %c0_i32 : i32, i32, i32
  }
  func.func @transform_1(%arg0: i32, %arg1: i32) -> (i32, i32, i32) {
    %c0_i32 = arith.constant 0 : i32
    %c0_i32_0 = arith.constant 0 : i32
    %c0_i32_1 = arith.constant 0 : i32
    return %arg0, %c0_i32, %c0_i32_0 : i32, i32, i32
  }
  func.func @transform_2(%arg0: i32, %arg1: i32) -> (i32, i32, i32) {
    %c0_i32 = arith.constant 0 : i32
    %c0_i32_0 = arith.constant 0 : i32
    %c0_i32_1 = arith.constant 0 : i32
    return %arg0, %c0_i32, %c0_i32_0 : i32, i32, i32
  }
  func.func @transform_3(%arg0: i32, %arg1: i32) -> (i32, i32) {
    %c0_i32 = arith.constant 0 : i32
    %c0_i32_0 = arith.constant 0 : i32
    %c0_i32_1 = arith.constant 0 : i32
    return %c0_i32, %c0_i32_0 : i32, i32
  }
  func.func @transform_4(%arg0: i32, %arg1: i32) -> (i32, i32, i32) {
    %c0_i32 = arith.constant 0 : i32
    %c0_i32_0 = arith.constant 0 : i32
    %c0_i32_1 = arith.constant 0 : i32
    %c0_i32_2 = arith.constant 0 : i32
    return %c0_i32, %c0_i32_0, %c0_i32_1 : i32, i32, i32
  }
  func.func @transform_5(%arg0: i32, %arg1: i32) -> (i32, i32, i32) {
    %c0_i32 = arith.constant 0 : i32
    %c0_i32_0 = arith.constant 0 : i32
    %c0_i32_1 = arith.constant 0 : i32
    %c0_i32_2 = arith.constant 0 : i32
    return %c0_i32, %c0_i32_0, %c0_i32_1 : i32, i32, i32
  }
  func.func @transform_6(%arg0: i32, %arg1: i32) -> (i32, i32, i32) {
    %c0_i32 = arith.constant 0 : i32
    %c0_i32_0 = arith.constant 0 : i32
    %c0_i32_1 = arith.constant 0 : i32
    %c0_i32_2 = arith.constant 0 : i32
    return %c0_i32, %c0_i32_0, %c0_i32_1 : i32, i32, i32
  }
  func.func @transform_7(%arg0: i32, %arg1: i32) -> (i32, i32, i32) {
    %c0_i32 = arith.constant 0 : i32
    %c0_i32_0 = arith.constant 0 : i32
    %c0_i32_1 = arith.constant 0 : i32
    %c0_i32_2 = arith.constant 0 : i32
    return %c0_i32, %c0_i32_0, %c0_i32_1 : i32, i32, i32
  }
  func.func @transform_8(%arg0: i32, %arg1: i32) -> (i32, i32, i32) {
    %c0_i32 = arith.constant 0 : i32
    %c0_i32_0 = arith.constant 0 : i32
    %c0_i32_1 = arith.constant 0 : i32
    %c0_i32_2 = arith.constant 0 : i32
    return %c0_i32, %c0_i32_0, %c0_i32_1 : i32, i32, i32
  }
  func.func @transform_9(%arg0: i32, %arg1: i32) -> (i32, i32, i32) {
    %c0_i32 = arith.constant 0 : i32
    %c0_i32_0 = arith.constant 0 : i32
    %c0_i32_1 = arith.constant 0 : i32
    %c0_i32_2 = arith.constant 0 : i32
    return %c0_i32, %c0_i32_0, %c0_i32_1 : i32, i32, i32
  }
  func.func @transform_10(%arg0: i32, %arg1: i32) -> (i32, i32, i32) {
    %c0_i32 = arith.constant 0 : i32
    %c0_i32_0 = arith.constant 0 : i32
    %c0_i32_1 = arith.constant 0 : i32
    %c0_i32_2 = arith.constant 0 : i32
    return %c0_i32, %c0_i32_0, %c0_i32_1 : i32, i32, i32
  }
  func.func @transform_11(%arg0: i32, %arg1: i32) -> (i32, i32) {
    %c0_i32 = arith.constant 0 : i32
    %c0_i32_0 = arith.constant 0 : i32
    %c0_i32_1 = arith.constant 0 : i32
    return %c0_i32, %c0_i32_0 : i32, i32
  }
  func.func @transform_12(%arg0: i32, %arg1: i32) -> (i32, i32, i32) {
    %c0_i32 = arith.constant 0 : i32
    %c0_i32_0 = arith.constant 0 : i32
    %c0_i32_1 = arith.constant 0 : i32
    %c0_i32_2 = arith.constant 0 : i32
    return %c0_i32, %c0_i32_0, %c0_i32_1 : i32, i32, i32
  }
  func.func @transform_13(%arg0: i32, %arg1: i32) -> (i32, i32, i32) {
    %c0_i32 = arith.constant 0 : i32
    %c0_i32_0 = arith.constant 0 : i32
    %c0_i32_1 = arith.constant 0 : i32
    %c0_i32_2 = arith.constant 0 : i32
    return %c0_i32, %c0_i32_0, %c0_i32_1 : i32, i32, i32
  }
  func.func @transform_14(%arg0: i32, %arg1: i32) -> (i32, i32, i32) {
    %c0_i32 = arith.constant 0 : i32
    %c0_i32_0 = arith.constant 0 : i32
    %c0_i32_1 = arith.constant 0 : i32
    %c0_i32_2 = arith.constant 0 : i32
    return %c0_i32, %c0_i32_0, %c0_i32_1 : i32, i32, i32
  }
  func.func @transform_15(%arg0: i32, %arg1: i32) -> (i32, i32, i32) {
    %c0_i32 = arith.constant 0 : i32
    %c0_i32_0 = arith.constant 0 : i32
    %c0_i32_1 = arith.constant 0 : i32
    %c0_i32_2 = arith.constant 0 : i32
    return %c0_i32, %c0_i32_0, %c0_i32_1 : i32, i32, i32
  }
  func.func @transform_16(%arg0: i32, %arg1: i32) -> (i32, i32, i32) {
    %c0_i32 = arith.constant 0 : i32
    %c0_i32_0 = arith.constant 0 : i32
    %c0_i32_1 = arith.constant 0 : i32
    %c0_i32_2 = arith.constant 0 : i32
    return %c0_i32, %c0_i32_0, %c0_i32_1 : i32, i32, i32
  }
  func.func @transform_17(%arg0: i32, %arg1: i32) -> (i32, i32, i32) {
    %c0_i32 = arith.constant 0 : i32
    %c0_i32_0 = arith.constant 0 : i32
    %c0_i32_1 = arith.constant 0 : i32
    %c0_i32_2 = arith.constant 0 : i32
    return %c0_i32, %c0_i32_0, %c0_i32_1 : i32, i32, i32
  }
  func.func @transform_18(%arg0: i32, %arg1: i32) -> (i32, i32, i32) {
    %c0_i32 = arith.constant 0 : i32
    %c0_i32_0 = arith.constant 0 : i32
    %c0_i32_1 = arith.constant 0 : i32
    %c0_i32_2 = arith.constant 0 : i32
    return %c0_i32, %c0_i32_0, %c0_i32_1 : i32, i32, i32
  }
  func.func @transform_19(%arg0: i32, %arg1: i32) -> (i32, i32) {
    %c0_i32 = arith.constant 0 : i32
    %c0_i32_0 = arith.constant 0 : i32
    %c0_i32_1 = arith.constant 0 : i32
    return %c0_i32, %c0_i32_0 : i32, i32
  }
  func.func @transform_20(%arg0: i32, %arg1: i32) -> (i32, i32) {
    %c0_i32 = arith.constant 0 : i32
    %c0_i32_0 = arith.constant 0 : i32
    %c0_i32_1 = arith.constant 0 : i32
    return %c0_i32, %c0_i32_0 : i32, i32
  }
  func.func @transform_21(%arg0: i32, %arg1: i32) -> (i32, i32) {
    %c0_i32 = arith.constant 0 : i32
    %c0_i32_0 = arith.constant 0 : i32
    %c0_i32_1 = arith.constant 0 : i32
    return %c0_i32, %c0_i32_0 : i32, i32
  }
  func.func @transform_22(%arg0: i32, %arg1: i32) -> (i32, i32) {
    %c0_i32 = arith.constant 0 : i32
    %c0_i32_0 = arith.constant 0 : i32
    %c0_i32_1 = arith.constant 0 : i32
    return %c0_i32, %c0_i32_0 : i32, i32
  }
  func.func @transform_23(%arg0: i32, %arg1: i32) -> (i32, i32) {
    %c0_i32 = arith.constant 0 : i32
    %c0_i32_0 = arith.constant 0 : i32
    %c0_i32_1 = arith.constant 0 : i32
    return %c0_i32, %c0_i32_0 : i32, i32
  }
  func.func @transform_24(%arg0: i32, %arg1: i32) -> (i32, i32) {
    %c0_i32 = arith.constant 0 : i32
    %c0_i32_0 = arith.constant 0 : i32
    %c0_i32_1 = arith.constant 0 : i32
    return %c0_i32, %c0_i32_0 : i32, i32
  }
  func.func @transform_25(%arg0: i32, %arg1: i32) -> (i32, i32) {
    %c0_i32 = arith.constant 0 : i32
    %c0_i32_0 = arith.constant 0 : i32
    %c0_i32_1 = arith.constant 0 : i32
    return %c0_i32, %c0_i32_0 : i32, i32
  }
  func.func @transform_26(%arg0: i32, %arg1: i32) -> (i32, i32) {
    %c0_i32 = arith.constant 0 : i32
    %c0_i32_0 = arith.constant 0 : i32
    %c0_i32_1 = arith.constant 0 : i32
    return %c0_i32, %c0_i32_0 : i32, i32
  }
  func.func @transform_27(%arg0: i32, %arg1: i32) -> (i32, i32) {
    %c0_i32 = arith.constant 0 : i32
    %c0_i32_0 = arith.constant 0 : i32
    %c0_i32_1 = arith.constant 0 : i32
    return %c0_i32, %c0_i32_0 : i32, i32
  }
  func.func @transform_28(%arg0: i32, %arg1: i32) -> (i32, i32) {
    %c0_i32 = arith.constant 0 : i32
    %c0_i32_0 = arith.constant 0 : i32
    %c0_i32_1 = arith.constant 0 : i32
    return %c0_i32, %c0_i32_0 : i32, i32
  }
  func.func @transform_29(%arg0: i32, %arg1: i32) -> (i32, i32) {
    %c0_i32 = arith.constant 0 : i32
    %c0_i32_0 = arith.constant 0 : i32
    %c0_i32_1 = arith.constant 0 : i32
    return %c0_i32, %c0_i32_0 : i32, i32
  }
  func.func @transform_30(%arg0: i32, %arg1: i32) -> (i32, i32, i32) {
    %c0_i32 = arith.constant 0 : i32
    %c0_i32_0 = arith.constant 0 : i32
    return %arg0, %arg1, %c0_i32 : i32, i32, i32
  }
}

</mosaic_0001>

<llo_original>
// kernel: tpu_custom_call.1
$region0: #{tpu_custom_call.1}
  #allocation0 [shape = 'u32[]', space=smem, size = 0x4, offset = 0x4, fixed_abs, tag = 'smem constant byte address 0x4 - core index']
  #allocation1 [shape = 'u32[72,128]{1,0:T(1,128)}', space=vmem, size = 0x9000, scoped, tag = 'internal scratch']
  %s0 = inlined_call_operand.smem [shape: u32[31], index: -1, kind: input, shape index: {}]
  %s1 = sld [smem:[%s0]]
  %s2 = scalar_lea.smem %s0, 1
  %s3 = sld [smem:[%s2]]
  %s4 = scalar_lea.smem %s0, 2
  %s5 = sld [smem:[%s4]]
  %s6 = scalar_lea.smem %s0, 3
  %s7 = sld [smem:[%s6]]
  %s8 = scalar_lea.smem %s0, 4
  %s9 = sld [smem:[%s8]]
  %s10 = scalar_lea.smem %s0, 5
  %s11 = sld [smem:[%s10]]
  %s12 = scalar_lea.smem %s0, 6
  %s13 = sld [smem:[%s12]]
  %s14 = scalar_lea.smem %s0, 7
  %s15 = sld [smem:[%s14]]
  %s16 = scalar_lea.smem %s0, 8
  %s17 = sld [smem:[%s16]]
  %s18 = scalar_lea.smem %s0, 9
  %s19 = sld [smem:[%s18]]
  %s20 = scalar_lea.smem %s0, 10
  %s21 = sld [smem:[%s20]]
  %s22 = scalar_lea.smem %s0, 11
  %s23 = sld [smem:[%s22]]
  %s24 = scalar_lea.smem %s0, 12
  %s25 = sld [smem:[%s24]]
  %s26 = scalar_lea.smem %s0, 13
  %s27 = sld [smem:[%s26]]
  %s28 = scalar_lea.smem %s0, 14
  %s29 = sld [smem:[%s28]]
  %s30 = scalar_lea.smem %s0, 15
  %s31 = sld [smem:[%s30]]
  %s32 = scalar_lea.smem %s0, 16
  %s33 = sld [smem:[%s32]]
  %s34 = scalar_lea.smem %s0, 17
  %s35 = sld [smem:[%s34]]
  %s36 = scalar_lea.smem %s0, 18
  %s37 = sld [smem:[%s36]]
  %s38 = scalar_lea.smem %s0, 19
  %s39 = sld [smem:[%s38]]
  %s40 = scalar_lea.smem %s0, 20
  %s41 = sld [smem:[%s40]]
  %s42 = scalar_lea.smem %s0, 21
  %s43 = sld [smem:[%s42]]
  %s44 = scalar_lea.smem %s0, 22
  %s45 = sld [smem:[%s44]]
  %s46 = scalar_lea.smem %s0, 23
  %s47 = sld [smem:[%s46]]
  %s48 = scalar_lea.smem %s0, 24
  %s49 = sld [smem:[%s48]]
  %s50 = scalar_lea.smem %s0, 25
  %s51 = sld [smem:[%s50]]
  %s52 = scalar_lea.smem %s0, 26
  %s53 = sld [smem:[%s52]]
  %s54 = scalar_lea.smem %s0, 27
  %s55 = sld [smem:[%s54]]
  %s56 = scalar_lea.smem %s0, 28
  %s57 = sld [smem:[%s56]]
  %s58 = scalar_lea.smem %s0, 29
  %s59 = sld [smem:[%s58]]
  %s60 = scalar_lea.smem %s0, 30
  %s61 = sld [smem:[%s60]]
  %s62 = sld [smem:[#allocation0]]
  $region153: #{tpu_custom_call.1} parent=0
    _
  %s64 = ssub.s32 1, %s62
  %s65 = scalar_select 0, %s64, %s62
  $region1: #{tpu_custom_call.1} parent=0
    #allocation2 [shape = 'u8[8192]{0}', space=vmem, size = 0x2000, scoped, tag = 'output window, operand 0']
    #allocation3 [shape = 's32[2]{0}', space=sflag, size = 0x8, scoped, tag = 'scoped memory for tpu_custom_call.1']
    %66 = vsyncpa [#allocation3], 0
    %s67 = scalar_lea.sflag [#allocation3], 1
    %68 = vsyncpa %s67, 0
    loop: start=0, step=1, limit=4
    $region2: #{tpu_custom_call.1} parent=1 // loop_pre_header
      _
    $region3: #{tpu_custom_call.1} parent=1 // loop_header
      %s70 = sphi 0, %s74
      %p71 = scmp.ge.s32.totalorder %s70, 4
      %s77 = sphi 0, %s89
      %s78 = sphi 0, %s85
      %s79 = sphi 0, %s77
      %s80 = sphi 0, %s78
      %s81 = sphi 0, %s79
      %s82 = sphi 0, %s80
      %s94 = sphi 0, %s96
      %s97 = sphi 0, %s94
      %s98 = sphi 0, %s97
      %s114 = sphi 0, %s98
      %s120 = sphi 0, %s122
      %s123 = sphi 0, %s120
      %s124 = sphi 0, %s123
      %s140 = sphi 0, %s124
      %s146 = sphi 0, %s148
      %s149 = sphi 0, %s146
      %s150 = sphi 0, %s149
      %s166 = sphi 0, %s150
      %s170 = sphi 0, %s170
      %s172 = sphi 0, %s170
      %s173 = sphi 0, %s172
      %s187 = sphi 0, %s173
      %s191 = sphi 0, %s191
      %s193 = sphi 0, %s191
      %s194 = sphi 0, %s193
      %s208 = sphi 0, %s194
      %s212 = sphi 0, %s212
      %s214 = sphi 0, %s212
      %s215 = sphi 0, %s214
      %s229 = sphi 0, %s215
      %s233 = sphi 0, %s233
      %s235 = sphi 0, %s233
      %s236 = sphi 0, %s235
      %s250 = sphi 0, %s236
      %s254 = sphi 0, %s254
      %s256 = sphi 0, %s254
      %s257 = sphi 0, %s256
      %s271 = sphi 0, %s257
      %s275 = sphi 0, %s275
      %s277 = sphi 0, %s275
      %s278 = sphi 0, %s277
      %s292 = sphi 0, %s278
      %s296 = sphi 0, %s296
      %s298 = sphi 0, %s296
      %s299 = sphi 0, %s298
      %s313 = sphi 0, %s299
      %s317 = sphi 0, %s317
      %s319 = sphi 0, %s317
      %s320 = sphi 0, %s319
      %s334 = sphi 0, %s320
      %s338 = sphi 0, %s338
      %s340 = sphi 0, %s338
      %s341 = sphi 0, %s340
      %s355 = sphi 0, %s341
      %s359 = sphi 0, %s359
      %s361 = sphi 0, %s359
      %s362 = sphi 0, %s361
      %s376 = sphi 0, %s362
      %s380 = sphi 0, %s380
      %s382 = sphi 0, %s380
      %s383 = sphi 0, %s382
      %s397 = sphi 0, %s383
      %s401 = sphi 0, %s401
      %s403 = sphi 0, %s401
      %s404 = sphi 0, %s403
      %s418 = sphi 0, %s404
      %s422 = sphi 0, %s422
      %s424 = sphi 0, %s422
      %s425 = sphi 0, %s424
      %s439 = sphi 0, %s425
      %s443 = sphi 0, %s443
      %s445 = sphi 0, %s443
      %s446 = sphi 0, %s445
      %s460 = sphi 0, %s446
      %s464 = sphi 0, %s464
      %s466 = sphi 0, %s464
      %s467 = sphi 0, %s466
      %s481 = sphi 0, %s467
      %s485 = sphi 0, %s485
      %s487 = sphi 0, %s485
      %s488 = sphi 0, %s487
      %s502 = sphi 0, %s488
      %s506 = sphi 0, %s506
      %s508 = sphi 0, %s506
      %s509 = sphi 0, %s508
      %s523 = sphi 0, %s509
      %s527 = sphi 0, %s527
      %s529 = sphi 0, %s527
      %s530 = sphi 0, %s529
      %s544 = sphi 0, %s530
      %s548 = sphi 0, %s548
      %s550 = sphi 0, %s548
      %s551 = sphi 0, %s550
      %s565 = sphi 0, %s551
      %s569 = sphi 0, %s569
      %s571 = sphi 0, %s569
      %s572 = sphi 0, %s571
      %s586 = sphi 0, %s572
      %s590 = sphi 0, %s590
      %s592 = sphi 0, %s590
      %s593 = sphi 0, %s592
      %s607 = sphi 0, %s593
      %s611 = sphi 0, %s611
      %s613 = sphi 0, %s611
      %s614 = sphi 0, %s613
      %s628 = sphi 0, %s614
      %s632 = sphi 0, %s632
      %s634 = sphi 0, %s632
      %s635 = sphi 0, %s634
      %s649 = sphi 0, %s635
      %s653 = sphi 0, %s653
      %s655 = sphi 0, %s653
      %s656 = sphi 0, %s655
      %s670 = sphi 0, %s656
      %s674 = sphi 0, %s674
      %s676 = sphi 0, %s674
      %s677 = sphi 0, %s676
      %s691 = sphi 0, %s677
      %s695 = sphi 0, %s695
      %s697 = sphi 0, %s695
      %s698 = sphi 0, %s697
      %s712 = sphi 0, %s698
      %s716 = sphi 0, %s716
      %s718 = sphi 0, %s716
      %s719 = sphi 0, %s718
      %s733 = sphi 0, %s719
      %s741 = sphi 0, %s743
      %s744 = sphi 0, %s741
      %s745 = sphi 0, %s744
      %s761 = sphi 0, %s745
    $region4: #{tpu_custom_call.1} parent=1 // loop_header_branch
      %73 = sbr.rel (%p71) target = $region8
    $region5: #{tpu_custom_call.1} parent=1 // loop_body
      %s75 = ssub.s32 %s70, 1
      %s76 = ssub.s32 %s70, 2
      %s83 = sadd.s32 1, %s78
      %p84 = scmp.ge.s32.totalorder %s83, 1
      %s85 = scalar_select %p84, 0, %s83
      %s86 = sadd.s32 1, %s77
      %s87 = scalar_select %p84, %s86, %s77
      %p88 = scmp.ge.s32.totalorder %s87, 2
      %s89 = scalar_select %p88, 0, %s87
      %s90 = ssub.s32 %s77, %s89
      %s91 = ssub.s32 %s78, %s85
      %s92 = sor.u32 %s90, %s91
      %p93 = scmp.eq.s32.totalorder %s92, 0
      %s95 = sadd.s32 %s94, 1
      %s96 = scalar_select %p93, %s94, %s95
      %p99 = pneg %p93
      %p100 = scmp.eq.s32.totalorder %s70, 1
      %p101 = por %p99, %p100
      %p102 = scmp.ne.s32.totalorder %s94, %s97
      %p103 = scmp.eq.s32.totalorder %s70, 0
      %p104 = por %p102, %p103
      %p105 = scmp.ne.s32.totalorder %s94, %s97
      %p106 = scmp.eq.s32.totalorder %s75, 1
      %p107 = por %p105, %p106
      %p108 = scmp.ne.s32.totalorder %s97, %s98
      %p109 = scmp.eq.s32.totalorder %s75, 0
      %p110 = por %p108, %p109
      %p111 = scmp.ne.s32.totalorder %s97, %s98
      %p112 = scmp.eq.s32.totalorder %s76, 1
      %p113 = por %p111, %p112
      %p115 = scmp.ne.s32.totalorder %s98, %s114
      %p116 = scmp.eq.s32.totalorder %s76, 0
      %p117 = por %p115, %p116
      %s118 = ssub.s32 %s77, %s89
      %p119 = scmp.eq.s32.totalorder %s118, 0
      %s121 = sadd.s32 %s120, 1
      %s122 = scalar_select %p119, %s120, %s121
      %p125 = pneg %p119
      %p126 = scmp.eq.s32.totalorder %s70, 1
      %p127 = por %p125, %p126
      %p128 = scmp.ne.s32.totalorder %s120, %s123
      %p129 = scmp.eq.s32.totalorder %s70, 0
      %p130 = por %p128, %p129
      %p131 = scmp.ne.s32.totalorder %s120, %s123
      %p132 = scmp.eq.s32.totalorder %s75, 1
      %p133 = por %p131, %p132
      %p134 = scmp.ne.s32.totalorder %s123, %s124
      %p135 = scmp.eq.s32.totalorder %s75, 0
      %p136 = por %p134, %p135
      %p137 = scmp.ne.s32.totalorder %s123, %s124
      %p138 = scmp.eq.s32.totalorder %s76, 1
      %p139 = por %p137, %p138
      %p141 = scmp.ne.s32.totalorder %s124, %s140
      %p142 = scmp.eq.s32.totalorder %s76, 0
      %p143 = por %p141, %p142
      %s144 = ssub.s32 %s77, %s89
      %p145 = scmp.eq.s32.totalorder %s144, 0
      %s147 = sadd.s32 %s146, 1
      %s148 = scalar_select %p145, %s146, %s147
      %p151 = pneg %p145
      %p152 = scmp.eq.s32.totalorder %s70, 1
      %p153 = por %p151, %p152
      %p154 = scmp.ne.s32.totalorder %s146, %s149
      %p155 = scmp.eq.s32.totalorder %s70, 0
      %p156 = por %p154, %p155
      %p157 = scmp.ne.s32.totalorder %s146, %s149
      %p158 = scmp.eq.s32.totalorder %s75, 1
      %p159 = por %p157, %p158
      %p160 = scmp.ne.s32.totalorder %s149, %s150
      %p161 = scmp.eq.s32.totalorder %s75, 0
      %p162 = por %p160, %p161
      %p163 = scmp.ne.s32.totalorder %s149, %s150
      %p164 = scmp.eq.s32.totalorder %s76, 1
      %p165 = por %p163, %p164
      %p167 = scmp.ne.s32.totalorder %s150, %s166
      %p168 = scmp.eq.s32.totalorder %s76, 0
      %p169 = por %p167, %p168
      %s171 = sadd.s32 %s170, 1
      %p174 = scmp.eq.s32.totalorder %s70, 1
      %p175 = scmp.ne.s32.totalorder %s170, %s172
      %p176 = scmp.eq.s32.totalorder %s70, 0
      %p177 = por %p175, %p176
      %p178 = scmp.ne.s32.totalorder %s170, %s172
      %p179 = scmp.eq.s32.totalorder %s75, 1
      %p180 = por %p178, %p179
      %p181 = scmp.ne.s32.totalorder %s172, %s173
      %p182 = scmp.eq.s32.totalorder %s75, 0
      %p183 = por %p181, %p182
      %p184 = scmp.ne.s32.totalorder %s172, %s173
      %p185 = scmp.eq.s32.totalorder %s76, 1
      %p186 = por %p184, %p185
      %p188 = scmp.ne.s32.totalorder %s173, %s187
      %p189 = scmp.eq.s32.totalorder %s76, 0
      %p190 = por %p188, %p189
      %s192 = sadd.s32 %s191, 1
      %p195 = scmp.eq.s32.totalorder %s70, 1
      %p196 = scmp.ne.s32.totalorder %s191, %s193
      %p197 = scmp.eq.s32.totalorder %s70, 0
      %p198 = por %p196, %p197
      %p199 = scmp.ne.s32.totalorder %s191, %s193
      %p200 = scmp.eq.s32.totalorder %s75, 1
      %p201 = por %p199, %p200
      %p202 = scmp.ne.s32.totalorder %s193, %s194
      %p203 = scmp.eq.s32.totalorder %s75, 0
      %p204 = por %p202, %p203
      %p205 = scmp.ne.s32.totalorder %s193, %s194
      %p206 = scmp.eq.s32.totalorder %s76, 1
      %p207 = por %p205, %p206
      %p209 = scmp.ne.s32.totalorder %s194, %s208
      %p210 = scmp.eq.s32.totalorder %s76, 0
      %p211 = por %p209, %p210
      %s213 = sadd.s32 %s212, 1
      %p216 = scmp.eq.s32.totalorder %s70, 1
      %p217 = scmp.ne.s32.totalorder %s212, %s214
      %p218 = scmp.eq.s32.totalorder %s70, 0
      %p219 = por %p217, %p218
      %p220 = scmp.ne.s32.totalorder %s212, %s214
      %p221 = scmp.eq.s32.totalorder %s75, 1
      %p222 = por %p220, %p221
      %p223 = scmp.ne.s32.totalorder %s214, %s215
      %p224 = scmp.eq.s32.totalorder %s75, 0
      %p225 = por %p223, %p224
      %p226 = scmp.ne.s32.totalorder %s214, %s215
      %p227 = scmp.eq.s32.totalorder %s76, 1
      %p228 = por %p226, %p227
      %p230 = scmp.ne.s32.totalorder %s215, %s229
      %p231 = scmp.eq.s32.totalorder %s76, 0
      %p232 = por %p230, %p231
      %s234 = sadd.s32 %s233, 1
      %p237 = scmp.eq.s32.totalorder %s70, 1
      %p238 = scmp.ne.s32.totalorder %s233, %s235
      %p239 = scmp.eq.s32.totalorder %s70, 0
      %p240 = por %p238, %p239
      %p241 = scmp.ne.s32.totalorder %s233, %s235
      %p242 = scmp.eq.s32.totalorder %s75, 1
      %p243 = por %p241, %p242
      %p244 = scmp.ne.s32.totalorder %s235, %s236
      %p245 = scmp.eq.s32.totalorder %s75, 0
      %p246 = por %p244, %p245
      %p247 = scmp.ne.s32.totalorder %s235, %s236
      %p248 = scmp.eq.s32.totalorder %s76, 1
      %p249 = por %p247, %p248
      %p251 = scmp.ne.s32.totalorder %s236, %s250
      %p252 = scmp.eq.s32.totalorder %s76, 0
      %p253 = por %p251, %p252
      %s255 = sadd.s32 %s254, 1
      %p258 = scmp.eq.s32.totalorder %s70, 1
      %p259 = scmp.ne.s32.totalorder %s254, %s256
      %p260 = scmp.eq.s32.totalorder %s70, 0
      %p261 = por %p259, %p260
      %p262 = scmp.ne.s32.totalorder %s254, %s256
      %p263 = scmp.eq.s32.totalorder %s75, 1
      %p264 = por %p262, %p263
      %p265 = scmp.ne.s32.totalorder %s256, %s257
      %p266 = scmp.eq.s32.totalorder %s75, 0
      %p267 = por %p265, %p266
      %p268 = scmp.ne.s32.totalorder %s256, %s257
      %p269 = scmp.eq.s32.totalorder %s76, 1
      %p270 = por %p268, %p269
      %p272 = scmp.ne.s32.totalorder %s257, %s271
      %p273 = scmp.eq.s32.totalorder %s76, 0
      %p274 = por %p272, %p273
      %s276 = sadd.s32 %s275, 1
      %p279 = scmp.eq.s32.totalorder %s70, 1
      %p280 = scmp.ne.s32.totalorder %s275, %s277
      %p281 = scmp.eq.s32.totalorder %s70, 0
      %p282 = por %p280, %p281
      %p283 = scmp.ne.s32.totalorder %s275, %s277
      %p284 = scmp.eq.s32.totalorder %s75, 1
      %p285 = por %p283, %p284
      %p286 = scmp.ne.s32.totalorder %s277, %s278
      %p287 = scmp.eq.s32.totalorder %s75, 0
      %p288 = por %p286, %p287
      %p289 = scmp.ne.s32.totalorder %s277, %s278
      %p290 = scmp.eq.s32.totalorder %s76, 1
      %p291 = por %p289, %p290
      %p293 = scmp.ne.s32.totalorder %s278, %s292
      %p294 = scmp.eq.s32.totalorder %s76, 0
      %p295 = por %p293, %p294
      %s297 = sadd.s32 %s296, 1
      %p300 = scmp.eq.s32.totalorder %s70, 1
      %p301 = scmp.ne.s32.totalorder %s296, %s298
      %p302 = scmp.eq.s32.totalorder %s70, 0
      %p303 = por %p301, %p302
      %p304 = scmp.ne.s32.totalorder %s296, %s298
      %p305 = scmp.eq.s32.totalorder %s75, 1
      %p306 = por %p304, %p305
      %p307 = scmp.ne.s32.totalorder %s298, %s299
      %p308 = scmp.eq.s32.totalorder %s75, 0
      %p309 = por %p307, %p308
      %p310 = scmp.ne.s32.totalorder %s298, %s299
      %p311 = scmp.eq.s32.totalorder %s76, 1
      %p312 = por %p310, %p311
      %p314 = scmp.ne.s32.totalorder %s299, %s313
      %p315 = scmp.eq.s32.totalorder %s76, 0
      %p316 = por %p314, %p315
      %s318 = sadd.s32 %s317, 1
      %p321 = scmp.eq.s32.totalorder %s70, 1
      %p322 = scmp.ne.s32.totalorder %s317, %s319
      %p323 = scmp.eq.s32.totalorder %s70, 0
      %p324 = por %p322, %p323
      %p325 = scmp.ne.s32.totalorder %s317, %s319
      %p326 = scmp.eq.s32.totalorder %s75, 1
      %p327 = por %p325, %p326
      %p328 = scmp.ne.s32.totalorder %s319, %s320
      %p329 = scmp.eq.s32.totalorder %s75, 0
      %p330 = por %p328, %p329
      %p331 = scmp.ne.s32.totalorder %s319, %s320
      %p332 = scmp.eq.s32.totalorder %s76, 1
      %p333 = por %p331, %p332
      %p335 = scmp.ne.s32.totalorder %s320, %s334
      %p336 = scmp.eq.s32.totalorder %s76, 0
      %p337 = por %p335, %p336
      %s339 = sadd.s32 %s338, 1
      %p342 = scmp.eq.s32.totalorder %s70, 1
      %p343 = scmp.ne.s32.totalorder %s338, %s340
      %p344 = scmp.eq.s32.totalorder %s70, 0
      %p345 = por %p343, %p344
      %p346 = scmp.ne.s32.totalorder %s338, %s340
      %p347 = scmp.eq.s32.totalorder %s75, 1
      %p348 = por %p346, %p347
      %p349 = scmp.ne.s32.totalorder %s340, %s341
      %p350 = scmp.eq.s32.totalorder %s75, 0
      %p351 = por %p349, %p350
      %p352 = scmp.ne.s32.totalorder %s340, %s341
      %p353 = scmp.eq.s32.totalorder %s76, 1
      %p354 = por %p352, %p353
      %p356 = scmp.ne.s32.totalorder %s341, %s355
      %p357 = scmp.eq.s32.totalorder %s76, 0
      %p358 = por %p356, %p357
      %s360 = sadd.s32 %s359, 1
      %p363 = scmp.eq.s32.totalorder %s70, 1
      %p364 = scmp.ne.s32.totalorder %s359, %s361
      %p365 = scmp.eq.s32.totalorder %s70, 0
      %p366 = por %p364, %p365
      %p367 = scmp.ne.s32.totalorder %s359, %s361
      %p368 = scmp.eq.s32.totalorder %s75, 1
      %p369 = por %p367, %p368
      %p370 = scmp.ne.s32.totalorder %s361, %s362
      %p371 = scmp.eq.s32.totalorder %s75, 0
      %p372 = por %p370, %p371
      %p373 = scmp.ne.s32.totalorder %s361, %s362
      %p374 = scmp.eq.s32.totalorder %s76, 1
      %p375 = por %p373, %p374
      %p377 = scmp.ne.s32.totalorder %s362, %s376
      %p378 = scmp.eq.s32.totalorder %s76, 0
      %p379 = por %p377, %p378
      %s381 = sadd.s32 %s380, 1
      %p384 = scmp.eq.s32.totalorder %s70, 1
      %p385 = scmp.ne.s32.totalorder %s380, %s382
      %p386 = scmp.eq.s32.totalorder %s70, 0
      %p387 = por %p385, %p386
      %p388 = scmp.ne.s32.totalorder %s380, %s382
      %p389 = scmp.eq.s32.totalorder %s75, 1
      %p390 = por %p388, %p389
      %p391 = scmp.ne.s32.totalorder %s382, %s383
      %p392 = scmp.eq.s32.totalorder %s75, 0
      %p393 = por %p391, %p392
      %p394 = scmp.ne.s32.totalorder %s382, %s383
      %p395 = scmp.eq.s32.totalorder %s76, 1
      %p396 = por %p394, %p395
      %p398 = scmp.ne.s32.totalorder %s383, %s397
      %p399 = scmp.eq.s32.totalorder %s76, 0
      %p400 = por %p398, %p399
      %s402 = sadd.s32 %s401, 1
      %p405 = scmp.eq.s32.totalorder %s70, 1
      %p406 = scmp.ne.s32.totalorder %s401, %s403
      %p407 = scmp.eq.s32.totalorder %s70, 0
      %p408 = por %p406, %p407
      %p409 = scmp.ne.s32.totalorder %s401, %s403
      %p410 = scmp.eq.s32.totalorder %s75, 1
      %p411 = por %p409, %p410
      %p412 = scmp.ne.s32.totalorder %s403, %s404
      %p413 = scmp.eq.s32.totalorder %s75, 0
      %p414 = por %p412, %p413
      %p415 = scmp.ne.s32.totalorder %s403, %s404
      %p416 = scmp.eq.s32.totalorder %s76, 1
      %p417 = por %p415, %p416
      %p419 = scmp.ne.s32.totalorder %s404, %s418
      %p420 = scmp.eq.s32.totalorder %s76, 0
      %p421 = por %p419, %p420
      %s423 = sadd.s32 %s422, 1
      %p426 = scmp.eq.s32.totalorder %s70, 1
      %p427 = scmp.ne.s32.totalorder %s422, %s424
      %p428 = scmp.eq.s32.totalorder %s70, 0
      %p429 = por %p427, %p428
      %p430 = scmp.ne.s32.totalorder %s422, %s424
      %p431 = scmp.eq.s32.totalorder %s75, 1
      %p432 = por %p430, %p431
      %p433 = scmp.ne.s32.totalorder %s424, %s425
      %p434 = scmp.eq.s32.totalorder %s75, 0
      %p435 = por %p433, %p434
      %p436 = scmp.ne.s32.totalorder %s424, %s425
      %p437 = scmp.eq.s32.totalorder %s76, 1
      %p438 = por %p436, %p437
      %p440 = scmp.ne.s32.totalorder %s425, %s439
      %p441 = scmp.eq.s32.totalorder %s76, 0
      %p442 = por %p440, %p441
      %s444 = sadd.s32 %s443, 1
      %p447 = scmp.eq.s32.totalorder %s70, 1
      %p448 = scmp.ne.s32.totalorder %s443, %s445
      %p449 = scmp.eq.s32.totalorder %s70, 0
      %p450 = por %p448, %p449
      %p451 = scmp.ne.s32.totalorder %s443, %s445
      %p452 = scmp.eq.s32.totalorder %s75, 1
      %p453 = por %p451, %p452
      %p454 = scmp.ne.s32.totalorder %s445, %s446
      %p455 = scmp.eq.s32.totalorder %s75, 0
      %p456 = por %p454, %p455
      %p457 = scmp.ne.s32.totalorder %s445, %s446
      %p458 = scmp.eq.s32.totalorder %s76, 1
      %p459 = por %p457, %p458
      %p461 = scmp.ne.s32.totalorder %s446, %s460
      %p462 = scmp.eq.s32.totalorder %s76, 0
      %p463 = por %p461, %p462
      %s465 = sadd.s32 %s464, 1
      %p468 = scmp.eq.s32.totalorder %s70, 1
      %p469 = scmp.ne.s32.totalorder %s464, %s466
      %p470 = scmp.eq.s32.totalorder %s70, 0
      %p471 = por %p469, %p470
      %p472 = scmp.ne.s32.totalorder %s464, %s466
      %p473 = scmp.eq.s32.totalorder %s75, 1
      %p474 = por %p472, %p473
      %p475 = scmp.ne.s32.totalorder %s466, %s467
      %p476 = scmp.eq.s32.totalorder %s75, 0
      %p477 = por %p475, %p476
      %p478 = scmp.ne.s32.totalorder %s466, %s467
      %p479 = scmp.eq.s32.totalorder %s76, 1
      %p480 = por %p478, %p479
      %p482 = scmp.ne.s32.totalorder %s467, %s481
      %p483 = scmp.eq.s32.totalorder %s76, 0
      %p484 = por %p482, %p483
      %s486 = sadd.s32 %s485, 1
      %p489 = scmp.eq.s32.totalorder %s70, 1
      %p490 = scmp.ne.s32.totalorder %s485, %s487
      %p491 = scmp.eq.s32.totalorder %s70, 0
      %p492 = por %p490, %p491
      %p493 = scmp.ne.s32.totalorder %s485, %s487
      %p494 = scmp.eq.s32.totalorder %s75, 1
      %p495 = por %p493, %p494
      %p496 = scmp.ne.s32.totalorder %s487, %s488
      %p497 = scmp.eq.s32.totalorder %s75, 0
      %p498 = por %p496, %p497
      %p499 = scmp.ne.s32.totalorder %s487, %s488
      %p500 = scmp.eq.s32.totalorder %s76, 1
      %p501 = por %p499, %p500
      %p503 = scmp.ne.s32.totalorder %s488, %s502
      %p504 = scmp.eq.s32.totalorder %s76, 0
      %p505 = por %p503, %p504
      %s507 = sadd.s32 %s506, 1
      %p510 = scmp.eq.s32.totalorder %s70, 1
      %p511 = scmp.ne.s32.totalorder %s506, %s508
      %p512 = scmp.eq.s32.totalorder %s70, 0
      %p513 = por %p511, %p512
      %p514 = scmp.ne.s32.totalorder %s506, %s508
      %p515 = scmp.eq.s32.totalorder %s75, 1
      %p516 = por %p514, %p515
      %p517 = scmp.ne.s32.totalorder %s508, %s509
      %p518 = scmp.eq.s32.totalorder %s75, 0
      %p519 = por %p517, %p518
      %p520 = scmp.ne.s32.totalorder %s508, %s509
      %p521 = scmp.eq.s32.totalorder %s76, 1
      %p522 = por %p520, %p521
      %p524 = scmp.ne.s32.totalorder %s509, %s523
      %p525 = scmp.eq.s32.totalorder %s76, 0
      %p526 = por %p524, %p525
      %s528 = sadd.s32 %s527, 1
      %p531 = scmp.eq.s32.totalorder %s70, 1
      %p532 = scmp.ne.s32.totalorder %s527, %s529
      %p533 = scmp.eq.s32.totalorder %s70, 0
      %p534 = por %p532, %p533
      %p535 = scmp.ne.s32.totalorder %s527, %s529
      %p536 = scmp.eq.s32.totalorder %s75, 1
      %p537 = por %p535, %p536
      %p538 = scmp.ne.s32.totalorder %s529, %s530
      %p539 = scmp.eq.s32.totalorder %s75, 0
      %p540 = por %p538, %p539
      %p541 = scmp.ne.s32.totalorder %s529, %s530
      %p542 = scmp.eq.s32.totalorder %s76, 1
      %p543 = por %p541, %p542
      %p545 = scmp.ne.s32.totalorder %s530, %s544
      %p546 = scmp.eq.s32.totalorder %s76, 0
      %p547 = por %p545, %p546
      %s549 = sadd.s32 %s548, 1
      %p552 = scmp.eq.s32.totalorder %s70, 1
      %p553 = scmp.ne.s32.totalorder %s548, %s550
      %p554 = scmp.eq.s32.totalorder %s70, 0
      %p555 = por %p553, %p554
      %p556 = scmp.ne.s32.totalorder %s548, %s550
      %p557 = scmp.eq.s32.totalorder %s75, 1
      %p558 = por %p556, %p557
      %p559 = scmp.ne.s32.totalorder %s550, %s551
      %p560 = scmp.eq.s32.totalorder %s75, 0
      %p561 = por %p559, %p560
      %p562 = scmp.ne.s32.totalorder %s550, %s551
      %p563 = scmp.eq.s32.totalorder %s76, 1
      %p564 = por %p562, %p563
      %p566 = scmp.ne.s32.totalorder %s551, %s565
      %p567 = scmp.eq.s32.totalorder %s76, 0
      %p568 = por %p566, %p567
      %s570 = sadd.s32 %s569, 1
      %p573 = scmp.eq.s32.totalorder %s70, 1
      %p574 = scmp.ne.s32.totalorder %s569, %s571
      %p575 = scmp.eq.s32.totalorder %s70, 0
      %p576 = por %p574, %p575
      %p577 = scmp.ne.s32.totalorder %s569, %s571
      %p578 = scmp.eq.s32.totalorder %s75, 1
      %p579 = por %p577, %p578
      %p580 = scmp.ne.s32.totalorder %s571, %s572
      %p581 = scmp.eq.s32.totalorder %s75, 0
      %p582 = por %p580, %p581
      %p583 = scmp.ne.s32.totalorder %s571, %s572
      %p584 = scmp.eq.s32.totalorder %s76, 1
      %p585 = por %p583, %p584
      %p587 = scmp.ne.s32.totalorder %s572, %s586
      %p588 = scmp.eq.s32.totalorder %s76, 0
      %p589 = por %p587, %p588
      %s591 = sadd.s32 %s590, 1
      %p594 = scmp.eq.s32.totalorder %s70, 1
      %p595 = scmp.ne.s32.totalorder %s590, %s592
      %p596 = scmp.eq.s32.totalorder %s70, 0
      %p597 = por %p595, %p596
      %p598 = scmp.ne.s32.totalorder %s590, %s592
      %p599 = scmp.eq.s32.totalorder %s75, 1
      %p600 = por %p598, %p599
      %p601 = scmp.ne.s32.totalorder %s592, %s593
      %p602 = scmp.eq.s32.totalorder %s75, 0
      %p603 = por %p601, %p602
      %p604 = scmp.ne.s32.totalorder %s592, %s593
      %p605 = scmp.eq.s32.totalorder %s76, 1
      %p606 = por %p604, %p605
      %p608 = scmp.ne.s32.totalorder %s593, %s607
      %p609 = scmp.eq.s32.totalorder %s76, 0
      %p610 = por %p608, %p609
      %s612 = sadd.s32 %s611, 1
      %p615 = scmp.eq.s32.totalorder %s70, 1
      %p616 = scmp.ne.s32.totalorder %s611, %s613
      %p617 = scmp.eq.s32.totalorder %s70, 0
      %p618 = por %p616, %p617
      %p619 = scmp.ne.s32.totalorder %s611, %s613
      %p620 = scmp.eq.s32.totalorder %s75, 1
      %p621 = por %p619, %p620
      %p622 = scmp.ne.s32.totalorder %s613, %s614
      %p623 = scmp.eq.s32.totalorder %s75, 0
      %p624 = por %p622, %p623
      %p625 = scmp.ne.s32.totalorder %s613, %s614
      %p626 = scmp.eq.s32.totalorder %s76, 1
      %p627 = por %p625, %p626
      %p629 = scmp.ne.s32.totalorder %s614, %s628
      %p630 = scmp.eq.s32.totalorder %s76, 0
      %p631 = por %p629, %p630
      %s633 = sadd.s32 %s632, 1
      %p636 = scmp.eq.s32.totalorder %s70, 1
      %p637 = scmp.ne.s32.totalorder %s632, %s634
      %p638 = scmp.eq.s32.totalorder %s70, 0
      %p639 = por %p637, %p638
      %p640 = scmp.ne.s32.totalorder %s632, %s634
      %p641 = scmp.eq.s32.totalorder %s75, 1
      %p642 = por %p640, %p641
      %p643 = scmp.ne.s32.totalorder %s634, %s635
      %p644 = scmp.eq.s32.totalorder %s75, 0
      %p645 = por %p643, %p644
      %p646 = scmp.ne.s32.totalorder %s634, %s635
      %p647 = scmp.eq.s32.totalorder %s76, 1
      %p648 = por %p646, %p647
      %p650 = scmp.ne.s32.totalorder %s635, %s649
      %p651 = scmp.eq.s32.totalorder %s76, 0
      %p652 = por %p650, %p651
      %s654 = sadd.s32 %s653, 1
      %p657 = scmp.eq.s32.totalorder %s70, 1
      %p658 = scmp.ne.s32.totalorder %s653, %s655
      %p659 = scmp.eq.s32.totalorder %s70, 0
      %p660 = por %p658, %p659
      %p661 = scmp.ne.s32.totalorder %s653, %s655
      %p662 = scmp.eq.s32.totalorder %s75, 1
      %p663 = por %p661, %p662
      %p664 = scmp.ne.s32.totalorder %s655, %s656
      %p665 = scmp.eq.s32.totalorder %s75, 0
      %p666 = por %p664, %p665
      %p667 = scmp.ne.s32.totalorder %s655, %s656
      %p668 = scmp.eq.s32.totalorder %s76, 1
      %p669 = por %p667, %p668
      %p671 = scmp.ne.s32.totalorder %s656, %s670
      %p672 = scmp.eq.s32.totalorder %s76, 0
      %p673 = por %p671, %p672
      %s675 = sadd.s32 %s674, 1
      %p678 = scmp.eq.s32.totalorder %s70, 1
      %p679 = scmp.ne.s32.totalorder %s674, %s676
      %p680 = scmp.eq.s32.totalorder %s70, 0
      %p681 = por %p679, %p680
      %p682 = scmp.ne.s32.totalorder %s674, %s676
      %p683 = scmp.eq.s32.totalorder %s75, 1
      %p684 = por %p682, %p683
      %p685 = scmp.ne.s32.totalorder %s676, %s677
      %p686 = scmp.eq.s32.totalorder %s75, 0
      %p687 = por %p685, %p686
      %p688 = scmp.ne.s32.totalorder %s676, %s677
      %p689 = scmp.eq.s32.totalorder %s76, 1
      %p690 = por %p688, %p689
      %p692 = scmp.ne.s32.totalorder %s677, %s691
      %p693 = scmp.eq.s32.totalorder %s76, 0
      %p694 = por %p692, %p693
      %s696 = sadd.s32 %s695, 1
      %p699 = scmp.eq.s32.totalorder %s70, 1
      %p700 = scmp.ne.s32.totalorder %s695, %s697
      %p701 = scmp.eq.s32.totalorder %s70, 0
      %p702 = por %p700, %p701
      %p703 = scmp.ne.s32.totalorder %s695, %s697
      %p704 = scmp.eq.s32.totalorder %s75, 1
      %p705 = por %p703, %p704
      %p706 = scmp.ne.s32.totalorder %s697, %s698
      %p707 = scmp.eq.s32.totalorder %s75, 0
      %p708 = por %p706, %p707
      %p709 = scmp.ne.s32.totalorder %s697, %s698
      %p710 = scmp.eq.s32.totalorder %s76, 1
      %p711 = por %p709, %p710
      %p713 = scmp.ne.s32.totalorder %s698, %s712
      %p714 = scmp.eq.s32.totalorder %s76, 0
      %p715 = por %p713, %p714
      %s717 = sadd.s32 %s716, 1
      %p720 = scmp.eq.s32.totalorder %s70, 1
      %p721 = scmp.ne.s32.totalorder %s716, %s718
      %p722 = scmp.eq.s32.totalorder %s70, 0
      %p723 = por %p721, %p722
      %p724 = scmp.ne.s32.totalorder %s716, %s718
      %p725 = scmp.eq.s32.totalorder %s75, 1
      %p726 = por %p724, %p725
      %p727 = scmp.ne.s32.totalorder %s718, %s719
      %p728 = scmp.eq.s32.totalorder %s75, 0
      %p729 = por %p727, %p728
      %p730 = scmp.ne.s32.totalorder %s718, %s719
      %p731 = scmp.eq.s32.totalorder %s76, 1
      %p732 = por %p730, %p731
      %p734 = scmp.ne.s32.totalorder %s719, %s733
      %p735 = scmp.eq.s32.totalorder %s76, 0
      %p736 = por %p734, %p735
      %s737 = ssub.s32 %s77, %s89
      %s738 = ssub.s32 %s78, %s85
      %s739 = sor.u32 %s737, %s738
      %p740 = scmp.eq.s32.totalorder %s739, 0
      %s742 = sadd.s32 %s741, 1
      %s743 = scalar_select %p740, %s741, %s742
      %p746 = pneg %p740
      %p747 = scmp.eq.s32.totalorder %s70, 1
      %p748 = por %p746, %p747
      %p749 = scmp.ne.s32.totalorder %s741, %s744
      %p750 = scmp.eq.s32.totalorder %s70, 0
      %p751 = por %p749, %p750
      %p752 = scmp.ne.s32.totalorder %s741, %s744
      %p753 = scmp.eq.s32.totalorder %s75, 1
      %p754 = por %p752, %p753
      %p755 = scmp.ne.s32.totalorder %s744, %s745
      %p756 = scmp.eq.s32.totalorder %s75, 0
      %p757 = por %p755, %p756
      %p758 = scmp.ne.s32.totalorder %s744, %s745
      %p759 = scmp.eq.s32.totalorder %s76, 1
      %p760 = por %p758, %p759
      %p762 = scmp.ne.s32.totalorder %s745, %s761
      %p763 = scmp.eq.s32.totalorder %s76, 0
      %p764 = por %p762, %p763
      %p765 = scmp.le.s32.totalorder 1, %s70
      %p766 = scmp.lt.s32.totalorder %s70, 3
      %p767 = pnand %p765, %p766
      %p768 = pneg %p767
      // Predicated region
      $region9: #{tpu_custom_call.1} parent=5 // pred_check
        _
      $region10: #{tpu_custom_call.1} parent=5 // pred_check_branch
        %770 = sbr.rel (%p767) target = $region12
      $region11: #{tpu_custom_call.1} parent=5 // pred_region
        %s771 = ssub.s32 %s70, 1
        // Predicated region
        $region13: #{tpu_custom_call.1} parent=11 // pred_check
          %p772 = pneg %p183
        $region14: #{tpu_custom_call.1} parent=11 // pred_check_branch
          %774 = sbr.rel (%p772) target = $region16
        $region15: #{tpu_custom_call.1} parent=11 // pred_region
          _
        $region16: #{tpu_custom_call.1} parent=11 // pred_fallthru
          _
        // Predicated region
        $region17: #{tpu_custom_call.1} parent=11 // pred_check
          %p775 = pneg %p204
        $region18: #{tpu_custom_call.1} parent=11 // pred_check_branch
          %777 = sbr.rel (%p775) target = $region20
        $region19: #{tpu_custom_call.1} parent=11 // pred_region
          _
        $region20: #{tpu_custom_call.1} parent=11 // pred_fallthru
          _
        // Predicated region
        $region21: #{tpu_custom_call.1} parent=11 // pred_check
          %p778 = pneg %p225
        $region22: #{tpu_custom_call.1} parent=11 // pred_check_branch
          %780 = sbr.rel (%p778) target = $region24
        $region23: #{tpu_custom_call.1} parent=11 // pred_region
          _
        $region24: #{tpu_custom_call.1} parent=11 // pred_fallthru
          _
        // Predicated region
        $region25: #{tpu_custom_call.1} parent=11 // pred_check
          %p781 = pneg %p246
        $region26: #{tpu_custom_call.1} parent=11 // pred_check_branch
          %783 = sbr.rel (%p781) target = $region28
        $region27: #{tpu_custom_call.1} parent=11 // pred_region
          _
        $region28: #{tpu_custom_call.1} parent=11 // pred_fallthru
          _
        // Predicated region
        $region29: #{tpu_custom_call.1} parent=11 // pred_check
          %p784 = pneg %p267
        $region30: #{tpu_custom_call.1} parent=11 // pred_check_branch
          %786 = sbr.rel (%p784) target = $region32
        $region31: #{tpu_custom_call.1} parent=11 // pred_region
          _
        $region32: #{tpu_custom_call.1} parent=11 // pred_fallthru
          _
        // Predicated region
        $region33: #{tpu_custom_call.1} parent=11 // pred_check
          %p787 = pneg %p288
        $region34: #{tpu_custom_call.1} parent=11 // pred_check_branch
          %789 = sbr.rel (%p787) target = $region36
        $region35: #{tpu_custom_call.1} parent=11 // pred_region
          _
        $region36: #{tpu_custom_call.1} parent=11 // pred_fallthru
          _
        // Predicated region
        $region37: #{tpu_custom_call.1} parent=11 // pred_check
          %p790 = pneg %p309
        $region38: #{tpu_custom_call.1} parent=11 // pred_check_branch
          %792 = sbr.rel (%p790) target = $region40
        $region39: #{tpu_custom_call.1} parent=11 // pred_region
          _
        $region40: #{tpu_custom_call.1} parent=11 // pred_fallthru
          _
        // Predicated region
        $region41: #{tpu_custom_call.1} parent=11 // pred_check
          %p793 = pneg %p330
        $region42: #{tpu_custom_call.1} parent=11 // pred_check_branch
          %795 = sbr.rel (%p793) target = $region44
        $region43: #{tpu_custom_call.1} parent=11 // pred_region
          _
        $region44: #{tpu_custom_call.1} parent=11 // pred_fallthru
          _
        // Predicated region
        $region45: #{tpu_custom_call.1} parent=11 // pred_check
          %p796 = pneg %p351
        $region46: #{tpu_custom_call.1} parent=11 // pred_check_branch
          %798 = sbr.rel (%p796) target = $region48
        $region47: #{tpu_custom_call.1} parent=11 // pred_region
          _
        $region48: #{tpu_custom_call.1} parent=11 // pred_fallthru
          _
        // Predicated region
        $region49: #{tpu_custom_call.1} parent=11 // pred_check
          %p799 = pneg %p372
        $region50: #{tpu_custom_call.1} parent=11 // pred_check_branch
          %801 = sbr.rel (%p799) target = $region52
        $region51: #{tpu_custom_call.1} parent=11 // pred_region
          _
        $region52: #{tpu_custom_call.1} parent=11 // pred_fallthru
          _
        // Predicated region
        $region53: #{tpu_custom_call.1} parent=11 // pred_check
          %p802 = pneg %p393
        $region54: #{tpu_custom_call.1} parent=11 // pred_check_branch
          %804 = sbr.rel (%p802) target = $region56
        $region55: #{tpu_custom_call.1} parent=11 // pred_region
          _
        $region56: #{tpu_custom_call.1} parent=11 // pred_fallthru
          _
        // Predicated region
        $region57: #{tpu_custom_call.1} parent=11 // pred_check
          %p805 = pneg %p414
        $region58: #{tpu_custom_call.1} parent=11 // pred_check_branch
          %807 = sbr.rel (%p805) target = $region60
        $region59: #{tpu_custom_call.1} parent=11 // pred_region
          _
        $region60: #{tpu_custom_call.1} parent=11 // pred_fallthru
          _
        // Predicated region
        $region61: #{tpu_custom_call.1} parent=11 // pred_check
          %p808 = pneg %p435
        $region62: #{tpu_custom_call.1} parent=11 // pred_check_branch
          %810 = sbr.rel (%p808) target = $region64
        $region63: #{tpu_custom_call.1} parent=11 // pred_region
          _
        $region64: #{tpu_custom_call.1} parent=11 // pred_fallthru
          _
        // Predicated region
        $region65: #{tpu_custom_call.1} parent=11 // pred_check
          %p811 = pneg %p456
        $region66: #{tpu_custom_call.1} parent=11 // pred_check_branch
          %813 = sbr.rel (%p811) target = $region68
        $region67: #{tpu_custom_call.1} parent=11 // pred_region
          _
        $region68: #{tpu_custom_call.1} parent=11 // pred_fallthru
          _
        // Predicated region
        $region69: #{tpu_custom_call.1} parent=11 // pred_check
          %p814 = pneg %p477
        $region70: #{tpu_custom_call.1} parent=11 // pred_check_branch
          %816 = sbr.rel (%p814) target = $region72
        $region71: #{tpu_custom_call.1} parent=11 // pred_region
          _
        $region72: #{tpu_custom_call.1} parent=11 // pred_fallthru
          _
        // Predicated region
        $region73: #{tpu_custom_call.1} parent=11 // pred_check
          %p817 = pneg %p498
        $region74: #{tpu_custom_call.1} parent=11 // pred_check_branch
          %819 = sbr.rel (%p817) target = $region76
        $region75: #{tpu_custom_call.1} parent=11 // pred_region
          _
        $region76: #{tpu_custom_call.1} parent=11 // pred_fallthru
          _
        // Predicated region
        $region77: #{tpu_custom_call.1} parent=11 // pred_check
          %p820 = pneg %p519
        $region78: #{tpu_custom_call.1} parent=11 // pred_check_branch
          %822 = sbr.rel (%p820) target = $region80
        $region79: #{tpu_custom_call.1} parent=11 // pred_region
          _
        $region80: #{tpu_custom_call.1} parent=11 // pred_fallthru
          _
        // Predicated region
        $region81: #{tpu_custom_call.1} parent=11 // pred_check
          %p823 = pneg %p540
        $region82: #{tpu_custom_call.1} parent=11 // pred_check_branch
          %825 = sbr.rel (%p823) target = $region84
        $region83: #{tpu_custom_call.1} parent=11 // pred_region
          _
        $region84: #{tpu_custom_call.1} parent=11 // pred_fallthru
          _
        // Predicated region
        $region85: #{tpu_custom_call.1} parent=11 // pred_check
          %p826 = pneg %p561
        $region86: #{tpu_custom_call.1} parent=11 // pred_check_branch
          %828 = sbr.rel (%p826) target = $region88
        $region87: #{tpu_custom_call.1} parent=11 // pred_region
          _
        $region88: #{tpu_custom_call.1} parent=11 // pred_fallthru
          _
        // Predicated region
        $region89: #{tpu_custom_call.1} parent=11 // pred_check
          %p829 = pneg %p582
        $region90: #{tpu_custom_call.1} parent=11 // pred_check_branch
          %831 = sbr.rel (%p829) target = $region92
        $region91: #{tpu_custom_call.1} parent=11 // pred_region
          _
        $region92: #{tpu_custom_call.1} parent=11 // pred_fallthru
          _
        // Predicated region
        $region93: #{tpu_custom_call.1} parent=11 // pred_check
          %p832 = pneg %p603
        $region94: #{tpu_custom_call.1} parent=11 // pred_check_branch
          %834 = sbr.rel (%p832) target = $region96
        $region95: #{tpu_custom_call.1} parent=11 // pred_region
          _
        $region96: #{tpu_custom_call.1} parent=11 // pred_fallthru
          _
        // Predicated region
        $region97: #{tpu_custom_call.1} parent=11 // pred_check
          %p835 = pneg %p624
        $region98: #{tpu_custom_call.1} parent=11 // pred_check_branch
          %837 = sbr.rel (%p835) target = $region100
        $region99: #{tpu_custom_call.1} parent=11 // pred_region
          _
        $region100: #{tpu_custom_call.1} parent=11 // pred_fallthru
          _
        // Predicated region
        $region101: #{tpu_custom_call.1} parent=11 // pred_check
          %p838 = pneg %p645
        $region102: #{tpu_custom_call.1} parent=11 // pred_check_branch
          %840 = sbr.rel (%p838) target = $region104
        $region103: #{tpu_custom_call.1} parent=11 // pred_region
          _
        $region104: #{tpu_custom_call.1} parent=11 // pred_fallthru
          _
        // Predicated region
        $region105: #{tpu_custom_call.1} parent=11 // pred_check
          %p841 = pneg %p666
        $region106: #{tpu_custom_call.1} parent=11 // pred_check_branch
          %843 = sbr.rel (%p841) target = $region108
        $region107: #{tpu_custom_call.1} parent=11 // pred_region
          _
        $region108: #{tpu_custom_call.1} parent=11 // pred_fallthru
          _
        // Predicated region
        $region109: #{tpu_custom_call.1} parent=11 // pred_check
          %p844 = pneg %p687
        $region110: #{tpu_custom_call.1} parent=11 // pred_check_branch
          %846 = sbr.rel (%p844) target = $region112
        $region111: #{tpu_custom_call.1} parent=11 // pred_region
          _
        $region112: #{tpu_custom_call.1} parent=11 // pred_fallthru
          _
        // Predicated region
        $region113: #{tpu_custom_call.1} parent=11 // pred_check
          %p847 = pneg %p708
        $region114: #{tpu_custom_call.1} parent=11 // pred_check_branch
          %849 = sbr.rel (%p847) target = $region116
        $region115: #{tpu_custom_call.1} parent=11 // pred_region
          _
        $region116: #{tpu_custom_call.1} parent=11 // pred_fallthru
          _
        // Predicated region
        $region117: #{tpu_custom_call.1} parent=11 // pred_check
          %p850 = pneg %p729
        $region118: #{tpu_custom_call.1} parent=11 // pred_check_branch
          %852 = sbr.rel (%p850) target = $region120
        $region119: #{tpu_custom_call.1} parent=11 // pred_region
          _
        $region120: #{tpu_custom_call.1} parent=11 // pred_fallthru
          _
      $region12: #{tpu_custom_call.1} parent=5 // pred_fallthru
        _
      %p853 = scmp.lt.s32.totalorder %s70, 2
      // Predicated region
      $region121: #{tpu_custom_call.1} parent=5 // pred_check
        %p854 = pneg %p853
      $region122: #{tpu_custom_call.1} parent=5 // pred_check_branch
        %856 = sbr.rel (%p854) target = $region124
      $region123: #{tpu_custom_call.1} parent=5 // pred_region
        // Predicated region
        $region125: #{tpu_custom_call.1} parent=123 // pred_check
          %p857 = pneg %p104
        $region126: #{tpu_custom_call.1} parent=123 // pred_check_branch
          %859 = sbr.rel (%p857) target = $region128
        $region127: #{tpu_custom_call.1} parent=123 // pred_region
          %p860 = scmp.lt.s32.totalorder %s77, 1
          %s861 = scalar_select %p860, %s77, 1
          %p862 = scmp.lt.s32.totalorder %s78, 0
          %s863 = scalar_select %p862, %s78, 0
          %s864 = sadd.s32 %s863, %s861
          %s865 = smul.addr %s864, 8
          %s866 = scalar_lea.vmem %s1, %s865
        $region128: #{tpu_custom_call.1} parent=123 // pred_fallthru
          _
        // Predicated region
        $region129: #{tpu_custom_call.1} parent=123 // pred_check
          %p867 = pneg %p130
        $region130: #{tpu_custom_call.1} parent=123 // pred_check_branch
          %869 = sbr.rel (%p867) target = $region132
        $region131: #{tpu_custom_call.1} parent=123 // pred_region
          %p870 = scmp.lt.s32.totalorder %s77, 1
          %s871 = scalar_select %p870, %s77, 1
          %s872 = smul.addr %s871, 8
          %s873 = scalar_lea.vmem %s3, %s872
        $region132: #{tpu_custom_call.1} parent=123 // pred_fallthru
          _
        // Predicated region
        $region133: #{tpu_custom_call.1} parent=123 // pred_check
          %p874 = pneg %p156
        $region134: #{tpu_custom_call.1} parent=123 // pred_check_branch
          %876 = sbr.rel (%p874) target = $region136
        $region135: #{tpu_custom_call.1} parent=123 // pred_region
          %p877 = scmp.lt.s32.totalorder %s77, 1
          %s878 = scalar_select %p877, %s77, 1
          %s879 = smul.addr %s878, 8
          %s880 = scalar_lea.vmem %s5, %s879
        $region136: #{tpu_custom_call.1} parent=123 // pred_fallthru
          _
      $region124: #{tpu_custom_call.1} parent=5 // pred_fallthru
        _
      %p881 = scmp.le.s32.totalorder 1, %s70
      %p882 = scmp.lt.s32.totalorder %s70, 3
      %p883 = pnand %p881, %p882
      %p884 = pneg %p883
      // Predicated region
      $region137: #{tpu_custom_call.1} parent=5 // pred_check
        _
      $region138: #{tpu_custom_call.1} parent=5 // pred_check_branch
        %886 = sbr.rel (%p883) target = $region140
      $region139: #{tpu_custom_call.1} parent=5 // pred_region
        %s887 = ssub.s32 %s70, 1
        %p888 = scmp.lt.s32.totalorder %s79, 1
        %s889 = scalar_select %p888, %s79, 1
        %p890 = scmp.lt.s32.totalorder %s80, 0
        %s891 = scalar_select %p890, %s80, 0
        %s892 = sadd.s32 %s891, %s889
        %s893 = smul.addr %s892, 8
        %s894 = scalar_lea.vmem %s1, %s893
        %p895 = pneg %p110
        %p896 = pneg %p107
        %p897 = scmp.lt.s32.totalorder %s79, 1
        %s898 = scalar_select %p897, %s79, 1
        %s899 = smul.addr %s898, 8
        %s900 = scalar_lea.vmem %s3, %s899
        %p901 = pneg %p136
        %p902 = pneg %p133
        %p903 = scmp.lt.s32.totalorder %s79, 1
        %s904 = scalar_select %p903, %s79, 1
        %s905 = smul.addr %s904, 8
        %s906 = scalar_lea.vmem %s5, %s905
        %p907 = pneg %p162
        %p908 = pneg %p159
        %p909 = pneg %p183
        %p910 = pneg %p180
        %p911 = pneg %p204
        %p912 = pneg %p201
        %p913 = pneg %p225
        %p914 = pneg %p222
        %p915 = pneg %p246
        %p916 = pneg %p243
        %p917 = pneg %p267
        %p918 = pneg %p264
        %p919 = pneg %p288
        %p920 = pneg %p285
        %p921 = pneg %p309
        %p922 = pneg %p306
        %p923 = pneg %p330
        %p924 = pneg %p327
        %p925 = pneg %p351
        %p926 = pneg %p348
        %p927 = pneg %p372
        %p928 = pneg %p369
        %p929 = pneg %p393
        %p930 = pneg %p390
        %p931 = pneg %p414
        %p932 = pneg %p411
        %p933 = pneg %p435
        %p934 = pneg %p432
        %p935 = pneg %p456
        %p936 = pneg %p453
        %p937 = pneg %p477
        %p938 = pneg %p474
        %p939 = pneg %p498
        %p940 = pneg %p495
        %p941 = pneg %p519
        %p942 = pneg %p516
        %p943 = pneg %p540
        %p944 = pneg %p537
        %p945 = pneg %p561
        %p946 = pneg %p558
        %p947 = pneg %p582
        %p948 = pneg %p579
        %p949 = pneg %p603
        %p950 = pneg %p600
        %p951 = pneg %p624
        %p952 = pneg %p621
        %p953 = pneg %p645
        %p954 = pneg %p642
        %p955 = pneg %p666
        %p956 = pneg %p663
        %p957 = pneg %p687
        %p958 = pneg %p684
        %p959 = pneg %p708
        %p960 = pneg %p705
        %p961 = pneg %p729
        %p962 = pneg %p726
        %p963 = pneg %p757
        %p964 = pneg %p754
        %s965 = sand.u32 %s744, 1
        %s966 = scalar_lea.sflag [#allocation3], %s965
        %s967 = sand.u32 %s744, 1
        %s968 = smul.addr %s967, 8
        %s969 = scalar_lea.vmem [#allocation2], %s968
        %p970 = scmp.lt.s32.totalorder %s79, 1
        %s971 = scalar_select %p970, %s79, 1
        %p972 = scmp.lt.s32.totalorder %s80, 0
        %s973 = scalar_select %p972, %s80, 0
        %s974 = sadd.s32 %s973, %s971
        %s975 = smul.addr %s974, 8
        %s976 = scalar_lea.vmem %s1, %s975
        %p977 = scmp.lt.s32.totalorder %s79, 1
        %s978 = scalar_select %p977, %s79, 1
        %s979 = smul.addr %s978, 8
        %s980 = scalar_lea.vmem %s3, %s979
        %p981 = scmp.lt.s32.totalorder %s79, 1
        %s982 = scalar_select %p981, %s79, 1
        %s983 = smul.addr %s982, 8
        %s984 = scalar_lea.vmem %s5, %s983
        %v986 = vld [vmem:[%s976] sm:$0xff]
        %v987 = vld [vmem:[%s980] sm:$0xff]
        %v988 = vld [vmem:[%s984] sm:$0xff]
        %s989 = smul.u32 %s80, 8
        %v990 = vlaneseq
        %v991 = vshrl.u32 %v990, 7
        %v992 = vstv %s989
        %v993 = vadd.s32 %v992, %v991
        %v994 = vlaneseq
        %v995 = vand.u32 %v994, 127
        %vm996 = vcmp.le.s32.totalorder %v995, %v993
        %v997 = vsel %vm996, 0.0, -1e+09
        %v998 = vld [vmem:[%s7] sm:$0x1]
        %vm999 = vcmp.gt.f32.partialorder %v998, 0.0
        %v1000 = vsel %vm999, 0.0, -1e+09
        %v1001 = vld [vmem:[%s49] sm:$0x1]
        %v1002 = vld [vmem:[%s51] sm:$0x1]
        %vm1003 = vcmask 261120
        %v1004 = vsel %vm1003, %v986, 0.0
        %1005 = vadd.xlane.f32.xlu0 %v1004
        %v1006 = vpop.xlane.xlu0 %1005
        %v1007 = vrcp.pop 32.0
        %v1008 = vmul.f32 32.0, %v1007
        %v1009 = vsub.f32 1.0, %v1008
        %v1010 = vmul.f32 %v1007, %v1009
        %v1011 = vadd.f32 %v1007, %v1010
        %vm1012 = vweird.f32 %v1007
        %v1013 = vsel %vm1012, %v1007, %v1011
        %v1014 = vmul.f32 %v1006, %v1013
        %v1015 = vsub.f32 %v986, %v1014
        %v1016 = vmul.f32 %v1015, %v1015
        %v1017 = vsel %vm1003, %v1016, 0.0
        %1018 = vadd.xlane.f32.xlu0 %v1017
        %v1019 = vpop.xlane.xlu0 %1018
        %v1020 = vmul.f32 %v1019, %v1013
        %v1021 = vadd.f32 %v1020, 1e-06
        %v1022 = vrsqrt.pop %v1021
        %v1023 = vmul.f32 %v1022, %v1021
        %v1024 = vmul.f32 %v1023, %v1022
        %v1025 = vmul.f32 0.5, %v1024
        %v1026 = vsub.f32 1.5, %v1025
        %v1027 = vmul.f32 %v1022, %v1026
        %vm1028 = vweird.f32 %v1021
        %vm1029 = vweird.f32 %v1022
        %vm1030 = vmor %vm1028, %vm1029
        %v1031 = vsel %vm1030, %v1022, %v1027
        %v1032 = vmul.f32 %v1015, %v1031
        %v1034 = vperm.slane %v1001, 0
        %v1036 = vmul.f32 %v1032, %v1034
        %v1038 = vperm.slane %v1002, 0
        %v1040 = vadd.f32 %v1036, %v1038
        %v1041 = vsel %vm1003, %v987, 0.0
        %1042 = vadd.xlane.f32.xlu0 %v1041
        %v1043 = vpop.xlane.xlu0 %1042
        %v1044 = vmul.f32 %v1043, %v1013
        %v1045 = vsub.f32 %v987, %v1044
        %v1046 = vmul.f32 %v1045, %v1045
        %v1047 = vsel %vm1003, %v1046, 0.0
        %1048 = vadd.xlane.f32.xlu0 %v1047
        %v1049 = vpop.xlane.xlu0 %1048
        %v1050 = vmul.f32 %v1049, %v1013
        %v1051 = vadd.f32 %v1050, 1e-06
        %v1052 = vrsqrt.pop %v1051
        %v1053 = vmul.f32 %v1052, %v1051
        %v1054 = vmul.f32 %v1053, %v1052
        %v1055 = vmul.f32 0.5, %v1054
        %v1056 = vsub.f32 1.5, %v1055
        %v1057 = vmul.f32 %v1052, %v1056
        %vm1058 = vweird.f32 %v1051
        %vm1059 = vweird.f32 %v1052
        %vm1060 = vmor %vm1058, %vm1059
        %v1061 = vsel %vm1060, %v1052, %v1057
        %v1062 = vmul.f32 %v1045, %v1061
        %v1063 = vmul.f32 %v1062, %v1034
        %v1064 = vadd.f32 %v1063, %v1038
        %v1065 = vld [vmem:[%s9] sm:$0xf]
        %v1066 = vld [vmem:[%s9 + $0x4] sm:$0xf]
        %v1067 = vld [vmem:[%s9 + $0x8] sm:$0xf]
        %v1068 = vld [vmem:[%s9 + $0xc] sm:$0xf]
        %v1069 = vld [vmem:[%s9 + $0x10] sm:$0xf]
        %v1070 = vld [vmem:[%s9 + $0x14] sm:$0xf]
        %v1071 = vld [vmem:[%s9 + $0x18] sm:$0xf]
        %v1072 = vld [vmem:[%s9 + $0x1c] sm:$0xf]
        %v1073 = vld [vmem:[%s9 + $0x20] sm:$0xf]
        %v1074 = vld [vmem:[%s9 + $0x24] sm:$0xf]
        %v1075 = vld [vmem:[%s9 + $0x28] sm:$0xf]
        %v1076 = vld [vmem:[%s9 + $0x2c] sm:$0xf]
        %v1077 = vld [vmem:[%s9 + $0x30] sm:$0xf]
        %v1078 = vld [vmem:[%s9 + $0x34] sm:$0xf]
        %v1079 = vld [vmem:[%s9 + $0x38] sm:$0xf]
        %v1080 = vld [vmem:[%s9 + $0x3c] sm:$0xf]
        %v1081 = vld [vmem:[%s11] sm:$0x1]
        %v1082 = vld [vmem:[%s11 + $0x1] sm:$0x1]
        %v1083 = vld [vmem:[%s11 + $0x2] sm:$0x1]
        %v1084 = vld [vmem:[%s11 + $0x3] sm:$0x1]
        %v1085 = vld [vmem:[%s13] sm:$0xf]
        %v1086 = vld [vmem:[%s13 + $0x4] sm:$0xf]
        %v1087 = vld [vmem:[%s13 + $0x8] sm:$0xf]
        %v1088 = vld [vmem:[%s13 + $0xc] sm:$0xf]
        %v1089 = vld [vmem:[%s13 + $0x10] sm:$0xf]
        %v1090 = vld [vmem:[%s13 + $0x14] sm:$0xf]
        %v1091 = vld [vmem:[%s13 + $0x18] sm:$0xf]
        %v1092 = vld [vmem:[%s13 + $0x1c] sm:$0xf]
        %v1093 = vld [vmem:[%s13 + $0x20] sm:$0xf]
        %v1094 = vld [vmem:[%s13 + $0x24] sm:$0xf]
        %v1095 = vld [vmem:[%s13 + $0x28] sm:$0xf]
        %v1096 = vld [vmem:[%s13 + $0x2c] sm:$0xf]
        %v1097 = vld [vmem:[%s13 + $0x30] sm:$0xf]
        %v1098 = vld [vmem:[%s13 + $0x34] sm:$0xf]
        %v1099 = vld [vmem:[%s13 + $0x38] sm:$0xf]
        %v1100 = vld [vmem:[%s13 + $0x3c] sm:$0xf]
        %v1101 = vld [vmem:[%s15] sm:$0x1]
        %v1102 = vld [vmem:[%s15 + $0x1] sm:$0x1]
        %v1103 = vld [vmem:[%s15 + $0x2] sm:$0x1]
        %v1104 = vld [vmem:[%s15 + $0x3] sm:$0x1]
        %v1105 = vld [vmem:[%s17] sm:$0xf]
        %v1106 = vld [vmem:[%s17 + $0x4] sm:$0xf]
        %v1107 = vld [vmem:[%s17 + $0x8] sm:$0xf]
        %v1108 = vld [vmem:[%s17 + $0xc] sm:$0xf]
        %v1109 = vld [vmem:[%s17 + $0x10] sm:$0xf]
        %v1110 = vld [vmem:[%s17 + $0x14] sm:$0xf]
        %v1111 = vld [vmem:[%s17 + $0x18] sm:$0xf]
        %v1112 = vld [vmem:[%s17 + $0x1c] sm:$0xf]
        %v1113 = vld [vmem:[%s17 + $0x20] sm:$0xf]
        %v1114 = vld [vmem:[%s17 + $0x24] sm:$0xf]
        %v1115 = vld [vmem:[%s17 + $0x28] sm:$0xf]
        %v1116 = vld [vmem:[%s17 + $0x2c] sm:$0xf]
        %v1117 = vld [vmem:[%s17 + $0x30] sm:$0xf]
        %v1118 = vld [vmem:[%s17 + $0x34] sm:$0xf]
        %v1119 = vld [vmem:[%s17 + $0x38] sm:$0xf]
        %v1120 = vld [vmem:[%s17 + $0x3c] sm:$0xf]
        %v1121 = vld [vmem:[%s19] sm:$0x1]
        %v1122 = vld [vmem:[%s19 + $0x1] sm:$0x1]
        %v1123 = vld [vmem:[%s19 + $0x2] sm:$0x1]
        %v1124 = vld [vmem:[%s19 + $0x3] sm:$0x1]
        %v1125 = vld [vmem:[%s21] sm:$0xf]
        %v1126 = vld [vmem:[%s21 + $0x4] sm:$0xf]
        %v1127 = vld [vmem:[%s21 + $0x8] sm:$0xf]
        %v1128 = vld [vmem:[%s21 + $0xc] sm:$0xf]
        %v1129 = vld [vmem:[%s23] sm:$0x1]
        %v1130 = vpack.c.bf16 %v1040, %v1040
        %v1131 = vpack.c.bf16 %v1064, %v1064
        %v1136 = vperm.slane %v1081, 0
        %v1137 = vperm.slane %v1082, 0
        %v1138 = vperm.slane %v1083, 0
        %v1139 = vperm.slane %v1084, 0
        %v1148 = vunpack.c.l.b16 %v1065
        %v1149 = vunpack.c.l.b16 %v1066
        %v1150 = vunpack.c.l.b16 %v1067
        %v1151 = vunpack.c.l.b16 %v1068
        %v1152 = vpack.c.b16 %v1149, %v1148
        %v1153 = vpack.c.b16 %v1151, %v1150
        %v1157 = vsel %vm1003, %v1130, 0
        %1159 = vmatpush.bf16.msra.mxu0 0
        %1160 = vmatpush.bf16.msra.mxu0 0
        %1161 = vmatpush.bf16.msra.mxu0 0
        %1162 = vmatpush.bf16.msra.mxu0 0
        %1163 = vmatpush.bf16.msra.mxu0 0
        %1164 = vmatpush.bf16.msra.mxu0 0
        %1165 = vmatpush.bf16.msra.mxu0 %v1153
        %1166 = vmatpush.bf16.msra.mxu0 %v1152
        %1167 = vmatmul.bf16.gmra.mxu0 %v1157
        %v1168 = vpop.f32.mrf.mxu0
        %v1169 = vadd.f32 %v1136, %v1168
        %v1170 = vpop.f32.mrf.mxu0
        %1171 = vdwg.mxu0
        %v1176 = vunpack.c.l.b16 %v1069
        %v1177 = vunpack.c.l.b16 %v1070
        %v1178 = vunpack.c.l.b16 %v1071
        %v1179 = vunpack.c.l.b16 %v1072
        %v1180 = vpack.c.b16 %v1177, %v1176
        %v1181 = vpack.c.b16 %v1179, %v1178
        %1184 = vmatpush.bf16.msra.mxu0 0
        %1185 = vmatpush.bf16.msra.mxu0 0
        %1186 = vmatpush.bf16.msra.mxu0 0
        %1187 = vmatpush.bf16.msra.mxu0 0
        %1188 = vmatpush.bf16.msra.mxu0 0
        %1189 = vmatpush.bf16.msra.mxu0 0
        %1190 = vmatpush.bf16.msra.mxu0 %v1181
        %1191 = vmatpush.bf16.msra.mxu0 %v1180
        %1192 = vmatmul.bf16.gmra.mxu0 %v1157
        %v1193 = vpop.f32.mrf.mxu0
        %v1194 = vadd.f32 %v1137, %v1193
        %v1195 = vpop.f32.mrf.mxu0
        %1196 = vdwg.mxu0
        %v1201 = vunpack.c.l.b16 %v1073
        %v1202 = vunpack.c.l.b16 %v1074
        %v1203 = vunpack.c.l.b16 %v1075
        %v1204 = vunpack.c.l.b16 %v1076
        %v1205 = vpack.c.b16 %v1202, %v1201
        %v1206 = vpack.c.b16 %v1204, %v1203
        %1209 = vmatpush.bf16.msra.mxu0 0
        %1210 = vmatpush.bf16.msra.mxu0 0
        %1211 = vmatpush.bf16.msra.mxu0 0
        %1212 = vmatpush.bf16.msra.mxu0 0
        %1213 = vmatpush.bf16.msra.mxu0 0
        %1214 = vmatpush.bf16.msra.mxu0 0
        %1215 = vmatpush.bf16.msra.mxu0 %v1206
        %1216 = vmatpush.bf16.msra.mxu0 %v1205
        %1217 = vmatmul.bf16.gmra.mxu0 %v1157
        %v1218 = vpop.f32.mrf.mxu0
        %v1219 = vadd.f32 %v1138, %v1218
        %v1220 = vpop.f32.mrf.mxu0
        %1221 = vdwg.mxu0
        %v1226 = vunpack.c.l.b16 %v1077
        %v1227 = vunpack.c.l.b16 %v1078
        %v1228 = vunpack.c.l.b16 %v1079
        %v1229 = vunpack.c.l.b16 %v1080
        %v1230 = vpack.c.b16 %v1227, %v1226
        %v1231 = vpack.c.b16 %v1229, %v1228
        %1234 = vmatpush.bf16.msra.mxu0 0
        %1235 = vmatpush.bf16.msra.mxu0 0
        %1236 = vmatpush.bf16.msra.mxu0 0
        %1237 = vmatpush.bf16.msra.mxu0 0
        %1238 = vmatpush.bf16.msra.mxu0 0
        %1239 = vmatpush.bf16.msra.mxu0 0
        %1240 = vmatpush.bf16.msra.mxu0 %v1231
        %1241 = vmatpush.bf16.msra.mxu0 %v1230
        %1242 = vmatmul.bf16.gmra.mxu0 %v1157
        %v1243 = vpop.f32.mrf.mxu0
        %v1244 = vadd.f32 %v1139, %v1243
        %v1245 = vpop.f32.mrf.mxu0
        %1246 = vdwg.mxu0
        %v1247 = vmul.f32 %v1169, 0.35355338
        %v1248 = vmul.f32 %v1194, 0.35355338
        %v1249 = vmul.f32 %v1219, 0.35355338
        %v1250 = vmul.f32 %v1244, 0.35355338
        %v1255 = vperm.slane %v1101, 0
        %v1256 = vperm.slane %v1102, 0
        %v1257 = vperm.slane %v1103, 0
        %v1258 = vperm.slane %v1104, 0
        %v1267 = vunpack.c.l.b16 %v1085
        %v1268 = vunpack.c.l.b16 %v1086
        %v1269 = vunpack.c.l.b16 %v1087
        %v1270 = vunpack.c.l.b16 %v1088
        %v1271 = vpack.c.b16 %v1268, %v1267
        %v1272 = vpack.c.b16 %v1270, %v1269
        %v1276 = vsel %vm1003, %v1131, 0
        %1278 = vmatpush.bf16.msra.mxu0 0
        %1279 = vmatpush.bf16.msra.mxu0 0
        %1280 = vmatpush.bf16.msra.mxu0 0
        %1281 = vmatpush.bf16.msra.mxu0 0
        %1282 = vmatpush.bf16.msra.mxu0 0
        %1283 = vmatpush.bf16.msra.mxu0 0
        %1284 = vmatpush.bf16.msra.mxu0 %v1272
        %1285 = vmatpush.bf16.msra.mxu0 %v1271
        %1286 = vmatmul.bf16.gmra.mxu0 %v1276
        %v1287 = vpop.f32.mrf.mxu0
        %v1288 = vadd.f32 %v1255, %v1287
        %v1289 = vpop.f32.mrf.mxu0
        %1290 = vdwg.mxu0
        %v1295 = vunpack.c.l.b16 %v1089
        %v1296 = vunpack.c.l.b16 %v1090
        %v1297 = vunpack.c.l.b16 %v1091
        %v1298 = vunpack.c.l.b16 %v1092
        %v1299 = vpack.c.b16 %v1296, %v1295
        %v1300 = vpack.c.b16 %v1298, %v1297
        %1303 = vmatpush.bf16.msra.mxu0 0
        %1304 = vmatpush.bf16.msra.mxu0 0
        %1305 = vmatpush.bf16.msra.mxu0 0
        %1306 = vmatpush.bf16.msra.mxu0 0
        %1307 = vmatpush.bf16.msra.mxu0 0
        %1308 = vmatpush.bf16.msra.mxu0 0
        %1309 = vmatpush.bf16.msra.mxu0 %v1300
        %1310 = vmatpush.bf16.msra.mxu0 %v1299
        %1311 = vmatmul.bf16.gmra.mxu0 %v1276
        %v1312 = vpop.f32.mrf.mxu0
        %v1313 = vadd.f32 %v1256, %v1312
        %v1314 = vpop.f32.mrf.mxu0
        %1315 = vdwg.mxu0
        %v1320 = vunpack.c.l.b16 %v1093
        %v1321 = vunpack.c.l.b16 %v1094
        %v1322 = vunpack.c.l.b16 %v1095
        %v1323 = vunpack.c.l.b16 %v1096
        %v1324 = vpack.c.b16 %v1321, %v1320
        %v1325 = vpack.c.b16 %v1323, %v1322
        %1328 = vmatpush.bf16.msra.mxu0 0
        %1329 = vmatpush.bf16.msra.mxu0 0
        %1330 = vmatpush.bf16.msra.mxu0 0
        %1331 = vmatpush.bf16.msra.mxu0 0
        %1332 = vmatpush.bf16.msra.mxu0 0
        %1333 = vmatpush.bf16.msra.mxu0 0
        %1334 = vmatpush.bf16.msra.mxu0 %v1325
        %1335 = vmatpush.bf16.msra.mxu0 %v1324
        %1336 = vmatmul.bf16.gmra.mxu0 %v1276
        %v1337 = vpop.f32.mrf.mxu0
        %v1338 = vadd.f32 %v1257, %v1337
        %v1339 = vpop.f32.mrf.mxu0
        %1340 = vdwg.mxu0
        %v1345 = vunpack.c.l.b16 %v1097
        %v1346 = vunpack.c.l.b16 %v1098
        %v1347 = vunpack.c.l.b16 %v1099
        %v1348 = vunpack.c.l.b16 %v1100
        %v1349 = vpack.c.b16 %v1346, %v1345
        %v1350 = vpack.c.b16 %v1348, %v1347
        %1353 = vmatpush.bf16.msra.mxu0 0
        %1354 = vmatpush.bf16.msra.mxu0 0
        %1355 = vmatpush.bf16.msra.mxu0 0
        %1356 = vmatpush.bf16.msra.mxu0 0
        %1357 = vmatpush.bf16.msra.mxu0 0
        %1358 = vmatpush.bf16.msra.mxu0 0
        %1359 = vmatpush.bf16.msra.mxu0 %v1350
        %1360 = vmatpush.bf16.msra.mxu0 %v1349
        %1361 = vmatmul.bf16.gmra.mxu0 %v1276
        %v1362 = vpop.f32.mrf.mxu0
        %v1363 = vadd.f32 %v1258, %v1362
        %v1364 = vpop.f32.mrf.mxu0
        %1365 = vdwg.mxu0
        %v1370 = vperm.slane %v1121, 0
        %v1371 = vperm.slane %v1122, 0
        %v1372 = vperm.slane %v1123, 0
        %v1373 = vperm.slane %v1124, 0
        %v1382 = vunpack.c.l.b16 %v1105
        %v1383 = vunpack.c.l.b16 %v1106
        %v1384 = vunpack.c.l.b16 %v1107
        %v1385 = vunpack.c.l.b16 %v1108
        %v1386 = vpack.c.b16 %v1383, %v1382
        %v1387 = vpack.c.b16 %v1385, %v1384
        %1390 = vmatpush.bf16.msra.mxu0 0
        %1391 = vmatpush.bf16.msra.mxu0 0
        %1392 = vmatpush.bf16.msra.mxu0 0
        %1393 = vmatpush.bf16.msra.mxu0 0
        %1394 = vmatpush.bf16.msra.mxu0 0
        %1395 = vmatpush.bf16.msra.mxu0 0
        %1396 = vmatpush.bf16.msra.mxu0 %v1387
        %1397 = vmatpush.bf16.msra.mxu0 %v1386
        %1398 = vmatmul.bf16.gmra.mxu0 %v1276
        %v1399 = vpop.f32.mrf.mxu0
        %v1400 = vadd.f32 %v1370, %v1399
        %v1401 = vpop.f32.mrf.mxu0
        %1402 = vdwg.mxu0
        %v1407 = vunpack.c.l.b16 %v1109
        %v1408 = vunpack.c.l.b16 %v1110
        %v1409 = vunpack.c.l.b16 %v1111
        %v1410 = vunpack.c.l.b16 %v1112
        %v1411 = vpack.c.b16 %v1408, %v1407
        %v1412 = vpack.c.b16 %v1410, %v1409
        %1415 = vmatpush.bf16.msra.mxu0 0
        %1416 = vmatpush.bf16.msra.mxu0 0
        %1417 = vmatpush.bf16.msra.mxu0 0
        %1418 = vmatpush.bf16.msra.mxu0 0
        %1419 = vmatpush.bf16.msra.mxu0 0
        %1420 = vmatpush.bf16.msra.mxu0 0
        %1421 = vmatpush.bf16.msra.mxu0 %v1412
        %1422 = vmatpush.bf16.msra.mxu0 %v1411
        %1423 = vmatmul.bf16.gmra.mxu0 %v1276
        %v1424 = vpop.f32.mrf.mxu0
        %v1425 = vadd.f32 %v1371, %v1424
        %v1426 = vpop.f32.mrf.mxu0
        %1427 = vdwg.mxu0
        %v1432 = vunpack.c.l.b16 %v1113
        %v1433 = vunpack.c.l.b16 %v1114
        %v1434 = vunpack.c.l.b16 %v1115
        %v1435 = vunpack.c.l.b16 %v1116
        %v1436 = vpack.c.b16 %v1433, %v1432
        %v1437 = vpack.c.b16 %v1435, %v1434
        %1440 = vmatpush.bf16.msra.mxu0 0
        %1441 = vmatpush.bf16.msra.mxu0 0
        %1442 = vmatpush.bf16.msra.mxu0 0
        %1443 = vmatpush.bf16.msra.mxu0 0
        %1444 = vmatpush.bf16.msra.mxu0 0
        %1445 = vmatpush.bf16.msra.mxu0 0
        %1446 = vmatpush.bf16.msra.mxu0 %v1437
        %1447 = vmatpush.bf16.msra.mxu0 %v1436
        %1448 = vmatmul.bf16.gmra.mxu0 %v1276
        %v1449 = vpop.f32.mrf.mxu0
        %v1450 = vadd.f32 %v1372, %v1449
        %v1451 = vpop.f32.mrf.mxu0
        %1452 = vdwg.mxu0
        %v1457 = vunpack.c.l.b16 %v1117
        %v1458 = vunpack.c.l.b16 %v1118
        %v1459 = vunpack.c.l.b16 %v1119
        %v1460 = vunpack.c.l.b16 %v1120
        %v1461 = vpack.c.b16 %v1458, %v1457
        %v1462 = vpack.c.b16 %v1460, %v1459
        %1465 = vmatpush.bf16.msra.mxu0 0
        %1466 = vmatpush.bf16.msra.mxu0 0
        %1467 = vmatpush.bf16.msra.mxu0 0
        %1468 = vmatpush.bf16.msra.mxu0 0
        %1469 = vmatpush.bf16.msra.mxu0 0
        %1470 = vmatpush.bf16.msra.mxu0 0
        %1471 = vmatpush.bf16.msra.mxu0 %v1462
        %1472 = vmatpush.bf16.msra.mxu0 %v1461
        %1473 = vmatmul.bf16.gmra.mxu0 %v1276
        %v1474 = vpop.f32.mrf.mxu0
        %v1475 = vadd.f32 %v1373, %v1474
        %v1476 = vpop.f32.mrf.mxu0
        %1477 = vdwg.mxu0
        %v1478 = vpack.c.bf16 %v1247, %v1247
        %v1479 = vpack.c.bf16 %v1248, %v1248
        %v1480 = vpack.c.bf16 %v1249, %v1249
        %v1481 = vpack.c.bf16 %v1250, %v1250
        %v1482 = vpack.c.bf16 %v1288, %v1288
        %v1483 = vpack.c.bf16 %v1313, %v1313
        %v1484 = vpack.c.bf16 %v1338, %v1338
        %v1485 = vpack.c.bf16 %v1363, %v1363
        %vm1486 = vcmask 64512
        %v1488 = vsel %vm1486, %v1478, 0
        %v1491 = vsel %vm1486, %v1482, 0
        %1493 = vmatpush.bf16.xpose.msra.mxu0 0
        %1494 = vmatpush.bf16.xpose.msra.mxu0 0
        %1495 = vmatpush.bf16.xpose.msra.mxu0 0
        %1496 = vmatpush.bf16.xpose.msra.mxu0 0
        %1497 = vmatpush.bf16.xpose.msra.mxu0 0
        %1498 = vmatpush.bf16.xpose.msra.mxu0 0
        %1499 = vmatpush.bf16.xpose.msra.mxu0 0
        %1500 = vmatpush.bf16.xpose.msra.mxu0 %v1491
        %1501 = vmatmul.bf16.gmra.mxu0 %v1488
        %v1502 = vpop.f32.mrf.mxu0
        %v1503 = vadd.f32 %v997, %v1502
        %v1504 = vpop.f32.mrf.mxu0
        %1505 = vdwg.mxu0
        %v1507 = vsel %vm1486, %v1479, 0
        %v1510 = vsel %vm1486, %v1483, 0
        %1512 = vmatpush.bf16.xpose.msra.mxu0 0
        %1513 = vmatpush.bf16.xpose.msra.mxu0 0
        %1514 = vmatpush.bf16.xpose.msra.mxu0 0
        %1515 = vmatpush.bf16.xpose.msra.mxu0 0
        %1516 = vmatpush.bf16.xpose.msra.mxu0 0
        %1517 = vmatpush.bf16.xpose.msra.mxu0 0
        %1518 = vmatpush.bf16.xpose.msra.mxu0 0
        %1519 = vmatpush.bf16.xpose.msra.mxu0 %v1510
        %1520 = vmatmul.bf16.gmra.mxu0 %v1507
        %v1521 = vpop.f32.mrf.mxu0
        %v1522 = vadd.f32 %v997, %v1521
        %v1523 = vpop.f32.mrf.mxu0
        %1524 = vdwg.mxu0
        %v1526 = vsel %vm1486, %v1480, 0
        %v1529 = vsel %vm1486, %v1484, 0
        %1531 = vmatpush.bf16.xpose.msra.mxu0 0
        %1532 = vmatpush.bf16.xpose.msra.mxu0 0
        %1533 = vmatpush.bf16.xpose.msra.mxu0 0
        %1534 = vmatpush.bf16.xpose.msra.mxu0 0
        %1535 = vmatpush.bf16.xpose.msra.mxu0 0
        %1536 = vmatpush.bf16.xpose.msra.mxu0 0
        %1537 = vmatpush.bf16.xpose.msra.mxu0 0
        %1538 = vmatpush.bf16.xpose.msra.mxu0 %v1529
        %1539 = vmatmul.bf16.gmra.mxu0 %v1526
        %v1540 = vpop.f32.mrf.mxu0
        %v1541 = vadd.f32 %v997, %v1540
        %v1542 = vpop.f32.mrf.mxu0
        %1543 = vdwg.mxu0
        %v1545 = vsel %vm1486, %v1481, 0
        %v1548 = vsel %vm1486, %v1485, 0
        %1550 = vmatpush.bf16.xpose.msra.mxu0 0
        %1551 = vmatpush.bf16.xpose.msra.mxu0 0
        %1552 = vmatpush.bf16.xpose.msra.mxu0 0
        %1553 = vmatpush.bf16.xpose.msra.mxu0 0
        %1554 = vmatpush.bf16.xpose.msra.mxu0 0
        %1555 = vmatpush.bf16.xpose.msra.mxu0 0
        %1556 = vmatpush.bf16.xpose.msra.mxu0 0
        %1557 = vmatpush.bf16.xpose.msra.mxu0 %v1548
        %1558 = vmatmul.bf16.gmra.mxu0 %v1545
        %v1559 = vpop.f32.mrf.mxu0
        %v1560 = vadd.f32 %v997, %v1559
        %v1561 = vpop.f32.mrf.mxu0
        %1562 = vdwg.mxu0
        %v1563 = vsel %vm1486, %v1503, -inf
        %1564 = vmax.xlane.f32.xlu0 %v1563
        %v1565 = vpop.xlane.xlu0 %1564
        %v1566 = vsel %vm1486, %v1522, -inf
        %1567 = vmax.xlane.f32.xlu0 %v1566
        %v1568 = vpop.xlane.xlu0 %1567
        %v1569 = vsel %vm1486, %v1541, -inf
        %1570 = vmax.xlane.f32.xlu0 %v1569
        %v1571 = vpop.xlane.xlu0 %1570
        %v1572 = vsel %vm1486, %v1560, -inf
        %1573 = vmax.xlane.f32.xlu0 %v1572
        %v1574 = vpop.xlane.xlu0 %1573
        %v1575 = vsub.f32 %v1503, %v1565
        %v1576 = vsub.f32 %v1522, %v1568
        %v1577 = vsub.f32 %v1541, %v1571
        %v1578 = vsub.f32 %v1560, %v1574
        %v1579 = vmul.f32 %v1575, 1.442695
        %v1580 = vpow.pop %v1579
        %v1581 = vmul.f32 %v1576, 1.442695
        %v1582 = vpow.pop %v1581
        %v1583 = vmul.f32 %v1577, 1.442695
        %v1584 = vpow.pop %v1583
        %v1585 = vmul.f32 %v1578, 1.442695
        %v1586 = vpow.pop %v1585
        %v1587 = vsel %vm1486, %v1580, 0.0
        %1588 = vadd.xlane.f32.xlu0 %v1587
        %v1589 = vpop.xlane.xlu0 %1588
        %v1590 = vsel %vm1486, %v1582, 0.0
        %1591 = vadd.xlane.f32.xlu0 %v1590
        %v1592 = vpop.xlane.xlu0 %1591
        %v1593 = vsel %vm1486, %v1584, 0.0
        %1594 = vadd.xlane.f32.xlu0 %v1593
        %v1595 = vpop.xlane.xlu0 %1594
        %v1596 = vsel %vm1486, %v1586, 0.0
        %1597 = vadd.xlane.f32.xlu0 %v1596
        %v1598 = vpop.xlane.xlu0 %1597
        %v1599 = vrcp.pop %v1589
        %v1600 = vrcp.pop %v1592
        %v1601 = vrcp.pop %v1595
        %v1602 = vrcp.pop %v1598
        %v1603 = vmul.f32 %v1580, %v1599
        %v1604 = vmul.f32 %v1582, %v1600
        %v1605 = vmul.f32 %v1584, %v1601
        %v1606 = vmul.f32 %v1586, %v1602
        %v1607 = vpack.c.bf16 %v1603, %v1603
        %v1608 = vpack.c.bf16 %v1604, %v1604
        %v1609 = vpack.c.bf16 %v1605, %v1605
        %v1610 = vpack.c.bf16 %v1606, %v1606
        %v1611 = vpack.c.bf16 %v1400, %v1400
        %v1612 = vpack.c.bf16 %v1425, %v1425
        %v1613 = vpack.c.bf16 %v1450, %v1450
        %v1614 = vpack.c.bf16 %v1475, %v1475
        %v1616 = vsel %vm1486, %v1607, 0
        %vm1618 = vcmask 1043456
        %v1620 = vsel %vm1618, %v1611, 0
        %1622 = vmatpush.bf16.msra.mxu0 0
        %1623 = vmatpush.bf16.msra.mxu0 0
        %1624 = vmatpush.bf16.msra.mxu0 0
        %1625 = vmatpush.bf16.msra.mxu0 0
        %1626 = vmatpush.bf16.msra.mxu0 0
        %1627 = vmatpush.bf16.msra.mxu0 0
        %1628 = vmatpush.bf16.msra.mxu0 0
        %1629 = vmatpush.bf16.msra.mxu0 %v1620
        %1630 = vmatmul.bf16.gmra.mxu0 %v1616
        %v1631 = vpop.f32.mrf.mxu0
        %v1632 = vadd.f32 0.0, %v1631
        %v1633 = vpop.f32.mrf.mxu0
        %1634 = vdwg.mxu0
        %v1636 = vsel %vm1486, %v1608, 0
        %v1639 = vsel %vm1618, %v1612, 0
        %1641 = vmatpush.bf16.msra.mxu0 0
        %1642 = vmatpush.bf16.msra.mxu0 0
        %1643 = vmatpush.bf16.msra.mxu0 0
        %1644 = vmatpush.bf16.msra.mxu0 0
        %1645 = vmatpush.bf16.msra.mxu0 0
        %1646 = vmatpush.bf16.msra.mxu0 0
        %1647 = vmatpush.bf16.msra.mxu0 0
        %1648 = vmatpush.bf16.msra.mxu0 %v1639
        %1649 = vmatmul.bf16.gmra.mxu0 %v1636
        %v1650 = vpop.f32.mrf.mxu0
        %v1651 = vadd.f32 0.0, %v1650
        %v1652 = vpop.f32.mrf.mxu0
        %1653 = vdwg.mxu0
        %v1655 = vsel %vm1486, %v1609, 0
        %v1658 = vsel %vm1618, %v1613, 0
        %1660 = vmatpush.bf16.msra.mxu0 0
        %1661 = vmatpush.bf16.msra.mxu0 0
        %1662 = vmatpush.bf16.msra.mxu0 0
        %1663 = vmatpush.bf16.msra.mxu0 0
        %1664 = vmatpush.bf16.msra.mxu0 0
        %1665 = vmatpush.bf16.msra.mxu0 0
        %1666 = vmatpush.bf16.msra.mxu0 0
        %1667 = vmatpush.bf16.msra.mxu0 %v1658
        %1668 = vmatmul.bf16.gmra.mxu0 %v1655
        %v1669 = vpop.f32.mrf.mxu0
        %v1670 = vadd.f32 0.0, %v1669
        %v1671 = vpop.f32.mrf.mxu0
        %1672 = vdwg.mxu0
        %v1674 = vsel %vm1486, %v1610, 0
        %v1677 = vsel %vm1618, %v1614, 0
        %1679 = vmatpush.bf16.msra.mxu0 0
        %1680 = vmatpush.bf16.msra.mxu0 0
        %1681 = vmatpush.bf16.msra.mxu0 0
        %1682 = vmatpush.bf16.msra.mxu0 0
        %1683 = vmatpush.bf16.msra.mxu0 0
        %1684 = vmatpush.bf16.msra.mxu0 0
        %1685 = vmatpush.bf16.msra.mxu0 0
        %1686 = vmatpush.bf16.msra.mxu0 %v1677
        %1687 = vmatmul.bf16.gmra.mxu0 %v1674
        %v1688 = vpop.f32.mrf.mxu0
        %v1689 = vadd.f32 0.0, %v1688
        %v1690 = vpop.f32.mrf.mxu0
        %1691 = vdwg.mxu0
        %v1692 = vpack.c.bf16 %v1632, %v1632
        %v1693 = vpack.c.bf16 %v1651, %v1651
        %v1694 = vpack.c.bf16 %v1670, %v1670
        %v1695 = vpack.c.bf16 %v1689, %v1689
        %v1697 = vsel %vm1486, %v1692, 0
        %v1700 = vsel %vm1618, %v1125, 0
        %1702 = vmatpush.bf16.msra.mxu0 0
        %1703 = vmatpush.bf16.msra.mxu0 0
        %1704 = vmatpush.bf16.msra.mxu0 0
        %1705 = vmatpush.bf16.msra.mxu0 0
        %1706 = vmatpush.bf16.msra.mxu0 0
        %1707 = vmatpush.bf16.msra.mxu0 0
        %1708 = vmatpush.bf16.msra.mxu0 0
        %1709 = vmatpush.bf16.msra.mxu0 %v1700
        %1710 = vmatmul.bf16.gmra.mxu0 %v1697
        %v1711 = vpop.f32.mrf.mxu0
        %v1712 = vadd.f32 0.0, %v1711
        %v1713 = vpop.f32.mrf.mxu0
        %1714 = vdwg.mxu0
        %v1716 = vsel %vm1486, %v1693, 0
        %v1719 = vsel %vm1618, %v1126, 0
        %1721 = vmatpush.bf16.msra.mxu0 0
        %1722 = vmatpush.bf16.msra.mxu0 0
        %1723 = vmatpush.bf16.msra.mxu0 0
        %1724 = vmatpush.bf16.msra.mxu0 0
        %1725 = vmatpush.bf16.msra.mxu0 0
        %1726 = vmatpush.bf16.msra.mxu0 0
        %1727 = vmatpush.bf16.msra.mxu0 0
        %1728 = vmatpush.bf16.msra.mxu0 %v1719
        %1729 = vmatmul.bf16.gmra.mxu0 %v1716
        %v1730 = vpop.f32.mrf.mxu0
        %v1731 = vadd.f32 0.0, %v1730
        %v1732 = vpop.f32.mrf.mxu0
        %1733 = vdwg.mxu0
        %v1735 = vsel %vm1486, %v1694, 0
        %v1738 = vsel %vm1618, %v1127, 0
        %1740 = vmatpush.bf16.msra.mxu0 0
        %1741 = vmatpush.bf16.msra.mxu0 0
        %1742 = vmatpush.bf16.msra.mxu0 0
        %1743 = vmatpush.bf16.msra.mxu0 0
        %1744 = vmatpush.bf16.msra.mxu0 0
        %1745 = vmatpush.bf16.msra.mxu0 0
        %1746 = vmatpush.bf16.msra.mxu0 0
        %1747 = vmatpush.bf16.msra.mxu0 %v1738
        %1748 = vmatmul.bf16.gmra.mxu0 %v1735
        %v1749 = vpop.f32.mrf.mxu0
        %v1750 = vadd.f32 0.0, %v1749
        %v1751 = vpop.f32.mrf.mxu0
        %1752 = vdwg.mxu0
        %v1754 = vsel %vm1486, %v1695, 0
        %v1757 = vsel %vm1618, %v1128, 0
        %1759 = vmatpush.bf16.msra.mxu0 0
        %1760 = vmatpush.bf16.msra.mxu0 0
        %1761 = vmatpush.bf16.msra.mxu0 0
        %1762 = vmatpush.bf16.msra.mxu0 0
        %1763 = vmatpush.bf16.msra.mxu0 0
        %1764 = vmatpush.bf16.msra.mxu0 0
        %1765 = vmatpush.bf16.msra.mxu0 0
        %1766 = vmatpush.bf16.msra.mxu0 %v1757
        %1767 = vmatmul.bf16.gmra.mxu0 %v1754
        %v1768 = vpop.f32.mrf.mxu0
        %v1769 = vadd.f32 0.0, %v1768
        %v1770 = vpop.f32.mrf.mxu0
        %1771 = vdwg.mxu0
        %v1772 = vsel %vm1003, %v1712, 0.0
        %v1773 = vsel %vm1003, %v1731, 0.0
        %v1774 = vadd.f32 %v1772, %v1773
        %v1775 = vsel %vm1003, %v1750, 0.0
        %v1776 = vadd.f32 %v1774, %v1775
        %v1777 = vsel %vm1003, %v1769, 0.0
        %v1778 = vadd.f32 %v1776, %v1777
        %v1780 = vperm.slane %v1129, 0
        %v1782 = vadd.f32 %v1778, %v1780
        %v1783 = vadd.f32 %v986, %v1782
        %v1784 = vld [vmem:[%s53] sm:$0x1]
        %v1785 = vld [vmem:[%s55] sm:$0x1]
        %v1786 = vsel %vm1003, %v1783, 0.0
        %1787 = vadd.xlane.f32.xlu0 %v1786
        %v1788 = vpop.xlane.xlu0 %1787
        %v1789 = vmul.f32 %v1788, %v1013
        %v1790 = vsub.f32 %v1783, %v1789
        %v1791 = vmul.f32 %v1790, %v1790
        %v1792 = vsel %vm1003, %v1791, 0.0
        %1793 = vadd.xlane.f32.xlu0 %v1792
        %v1794 = vpop.xlane.xlu0 %1793
        %v1795 = vmul.f32 %v1794, %v1013
        %v1796 = vadd.f32 %v1795, 1e-06
        %v1797 = vrsqrt.pop %v1796
        %v1798 = vmul.f32 %v1797, %v1796
        %v1799 = vmul.f32 %v1798, %v1797
        %v1800 = vmul.f32 0.5, %v1799
        %v1801 = vsub.f32 1.5, %v1800
        %v1802 = vmul.f32 %v1797, %v1801
        %vm1803 = vweird.f32 %v1796
        %vm1804 = vweird.f32 %v1797
        %vm1805 = vmor %vm1803, %vm1804
        %v1806 = vsel %vm1805, %v1797, %v1802
        %v1807 = vmul.f32 %v1790, %v1806
        %v1809 = vperm.slane %v1784, 0
        %v1811 = vmul.f32 %v1807, %v1809
        %v1813 = vperm.slane %v1785, 0
        %v1815 = vadd.f32 %v1811, %v1813
        %v1816 = vld [vmem:[%s25] sm:$0xf]
        %v1817 = vld [vmem:[%s25 + $0x4] sm:$0xf]
        %v1818 = vld [vmem:[%s25 + $0x8] sm:$0xf]
        %v1819 = vld [vmem:[%s25 + $0xc] sm:$0xf]
        %v1820 = vld [vmem:[%s25 + $0x10] sm:$0xf]
        %v1821 = vld [vmem:[%s25 + $0x14] sm:$0xf]
        %v1822 = vld [vmem:[%s25 + $0x18] sm:$0xf]
        %v1823 = vld [vmem:[%s25 + $0x1c] sm:$0xf]
        %v1824 = vld [vmem:[%s25 + $0x20] sm:$0xf]
        %v1825 = vld [vmem:[%s25 + $0x24] sm:$0xf]
        %v1826 = vld [vmem:[%s25 + $0x28] sm:$0xf]
        %v1827 = vld [vmem:[%s25 + $0x2c] sm:$0xf]
        %v1828 = vld [vmem:[%s25 + $0x30] sm:$0xf]
        %v1829 = vld [vmem:[%s25 + $0x34] sm:$0xf]
        %v1830 = vld [vmem:[%s25 + $0x38] sm:$0xf]
        %v1831 = vld [vmem:[%s25 + $0x3c] sm:$0xf]
        %v1832 = vld [vmem:[%s27] sm:$0x1]
        %v1833 = vld [vmem:[%s27 + $0x1] sm:$0x1]
        %v1834 = vld [vmem:[%s27 + $0x2] sm:$0x1]
        %v1835 = vld [vmem:[%s27 + $0x3] sm:$0x1]
        %v1836 = vld [vmem:[%s29] sm:$0xf]
        %v1837 = vld [vmem:[%s29 + $0x4] sm:$0xf]
        %v1838 = vld [vmem:[%s29 + $0x8] sm:$0xf]
        %v1839 = vld [vmem:[%s29 + $0xc] sm:$0xf]
        %v1840 = vld [vmem:[%s29 + $0x10] sm:$0xf]
        %v1841 = vld [vmem:[%s29 + $0x14] sm:$0xf]
        %v1842 = vld [vmem:[%s29 + $0x18] sm:$0xf]
        %v1843 = vld [vmem:[%s29 + $0x1c] sm:$0xf]
        %v1844 = vld [vmem:[%s29 + $0x20] sm:$0xf]
        %v1845 = vld [vmem:[%s29 + $0x24] sm:$0xf]
        %v1846 = vld [vmem:[%s29 + $0x28] sm:$0xf]
        %v1847 = vld [vmem:[%s29 + $0x2c] sm:$0xf]
        %v1848 = vld [vmem:[%s29 + $0x30] sm:$0xf]
        %v1849 = vld [vmem:[%s29 + $0x34] sm:$0xf]
        %v1850 = vld [vmem:[%s29 + $0x38] sm:$0xf]
        %v1851 = vld [vmem:[%s29 + $0x3c] sm:$0xf]
        %v1852 = vld [vmem:[%s31] sm:$0x1]
        %v1853 = vld [vmem:[%s31 + $0x1] sm:$0x1]
        %v1854 = vld [vmem:[%s31 + $0x2] sm:$0x1]
        %v1855 = vld [vmem:[%s31 + $0x3] sm:$0x1]
        %v1856 = vld [vmem:[%s33] sm:$0xf]
        %v1857 = vld [vmem:[%s33 + $0x4] sm:$0xf]
        %v1858 = vld [vmem:[%s33 + $0x8] sm:$0xf]
        %v1859 = vld [vmem:[%s33 + $0xc] sm:$0xf]
        %v1860 = vld [vmem:[%s33 + $0x10] sm:$0xf]
        %v1861 = vld [vmem:[%s33 + $0x14] sm:$0xf]
        %v1862 = vld [vmem:[%s33 + $0x18] sm:$0xf]
        %v1863 = vld [vmem:[%s33 + $0x1c] sm:$0xf]
        %v1864 = vld [vmem:[%s33 + $0x20] sm:$0xf]
        %v1865 = vld [vmem:[%s33 + $0x24] sm:$0xf]
        %v1866 = vld [vmem:[%s33 + $0x28] sm:$0xf]
        %v1867 = vld [vmem:[%s33 + $0x2c] sm:$0xf]
        %v1868 = vld [vmem:[%s33 + $0x30] sm:$0xf]
        %v1869 = vld [vmem:[%s33 + $0x34] sm:$0xf]
        %v1870 = vld [vmem:[%s33 + $0x38] sm:$0xf]
        %v1871 = vld [vmem:[%s33 + $0x3c] sm:$0xf]
        %v1872 = vld [vmem:[%s35] sm:$0x1]
        %v1873 = vld [vmem:[%s35 + $0x1] sm:$0x1]
        %v1874 = vld [vmem:[%s35 + $0x2] sm:$0x1]
        %v1875 = vld [vmem:[%s35 + $0x3] sm:$0x1]
        %v1876 = vld [vmem:[%s37] sm:$0xf]
        %v1877 = vld [vmem:[%s37 + $0x4] sm:$0xf]
        %v1878 = vld [vmem:[%s37 + $0x8] sm:$0xf]
        %v1879 = vld [vmem:[%s37 + $0xc] sm:$0xf]
        %v1880 = vld [vmem:[%s39] sm:$0x1]
        %v1881 = vpack.c.bf16 %v1815, %v1815
        %v1882 = vpack.c.bf16 %v988, %v988
        %v1887 = vperm.slane %v1832, 0
        %v1888 = vperm.slane %v1833, 0
        %v1889 = vperm.slane %v1834, 0
        %v1890 = vperm.slane %v1835, 0
        %v1899 = vunpack.c.l.b16 %v1816
        %v1900 = vunpack.c.l.b16 %v1817
        %v1901 = vunpack.c.l.b16 %v1818
        %v1902 = vunpack.c.l.b16 %v1819
        %v1903 = vpack.c.b16 %v1900, %v1899
        %v1904 = vpack.c.b16 %v1902, %v1901
        %v1908 = vsel %vm1003, %v1881, 0
        %1910 = vmatpush.bf16.msra.mxu0 0
        %1911 = vmatpush.bf16.msra.mxu0 0
        %1912 = vmatpush.bf16.msra.mxu0 0
        %1913 = vmatpush.bf16.msra.mxu0 0
        %1914 = vmatpush.bf16.msra.mxu0 0
        %1915 = vmatpush.bf16.msra.mxu0 0
        %1916 = vmatpush.bf16.msra.mxu0 %v1904
        %1917 = vmatpush.bf16.msra.mxu0 %v1903
        %1918 = vmatmul.bf16.gmra.mxu0 %v1908
        %v1919 = vpop.f32.mrf.mxu0
        %v1920 = vadd.f32 %v1887, %v1919
        %v1921 = vpop.f32.mrf.mxu0
        %1922 = vdwg.mxu0
        %v1927 = vunpack.c.l.b16 %v1820
        %v1928 = vunpack.c.l.b16 %v1821
        %v1929 = vunpack.c.l.b16 %v1822
        %v1930 = vunpack.c.l.b16 %v1823
        %v1931 = vpack.c.b16 %v1928, %v1927
        %v1932 = vpack.c.b16 %v1930, %v1929
        %1935 = vmatpush.bf16.msra.mxu0 0
        %1936 = vmatpush.bf16.msra.mxu0 0
        %1937 = vmatpush.bf16.msra.mxu0 0
        %1938 = vmatpush.bf16.msra.mxu0 0
        %1939 = vmatpush.bf16.msra.mxu0 0
        %1940 = vmatpush.bf16.msra.mxu0 0
        %1941 = vmatpush.bf16.msra.mxu0 %v1932
        %1942 = vmatpush.bf16.msra.mxu0 %v1931
        %1943 = vmatmul.bf16.gmra.mxu0 %v1908
        %v1944 = vpop.f32.mrf.mxu0
        %v1945 = vadd.f32 %v1888, %v1944
        %v1946 = vpop.f32.mrf.mxu0
        %1947 = vdwg.mxu0
        %v1952 = vunpack.c.l.b16 %v1824
        %v1953 = vunpack.c.l.b16 %v1825
        %v1954 = vunpack.c.l.b16 %v1826
        %v1955 = vunpack.c.l.b16 %v1827
        %v1956 = vpack.c.b16 %v1953, %v1952
        %v1957 = vpack.c.b16 %v1955, %v1954
        %1960 = vmatpush.bf16.msra.mxu0 0
        %1961 = vmatpush.bf16.msra.mxu0 0
        %1962 = vmatpush.bf16.msra.mxu0 0
        %1963 = vmatpush.bf16.msra.mxu0 0
        %1964 = vmatpush.bf16.msra.mxu0 0
        %1965 = vmatpush.bf16.msra.mxu0 0
        %1966 = vmatpush.bf16.msra.mxu0 %v1957
        %1967 = vmatpush.bf16.msra.mxu0 %v1956
        %1968 = vmatmul.bf16.gmra.mxu0 %v1908
        %v1969 = vpop.f32.mrf.mxu0
        %v1970 = vadd.f32 %v1889, %v1969
        %v1971 = vpop.f32.mrf.mxu0
        %1972 = vdwg.mxu0
        %v1977 = vunpack.c.l.b16 %v1828
        %v1978 = vunpack.c.l.b16 %v1829
        %v1979 = vunpack.c.l.b16 %v1830
        %v1980 = vunpack.c.l.b16 %v1831
        %v1981 = vpack.c.b16 %v1978, %v1977
        %v1982 = vpack.c.b16 %v1980, %v1979
        %1985 = vmatpush.bf16.msra.mxu0 0
        %1986 = vmatpush.bf16.msra.mxu0 0
        %1987 = vmatpush.bf16.msra.mxu0 0
        %1988 = vmatpush.bf16.msra.mxu0 0
        %1989 = vmatpush.bf16.msra.mxu0 0
        %1990 = vmatpush.bf16.msra.mxu0 0
        %1991 = vmatpush.bf16.msra.mxu0 %v1982
        %1992 = vmatpush.bf16.msra.mxu0 %v1981
        %1993 = vmatmul.bf16.gmra.mxu0 %v1908
        %v1994 = vpop.f32.mrf.mxu0
        %v1995 = vadd.f32 %v1890, %v1994
        %v1996 = vpop.f32.mrf.mxu0
        %1997 = vdwg.mxu0
        %v1998 = vmul.f32 %v1920, 0.35355338
        %v1999 = vmul.f32 %v1945, 0.35355338
        %v2000 = vmul.f32 %v1970, 0.35355338
        %v2001 = vmul.f32 %v1995, 0.35355338
        %v2006 = vperm.slane %v1852, 0
        %v2007 = vperm.slane %v1853, 0
        %v2008 = vperm.slane %v1854, 0
        %v2009 = vperm.slane %v1855, 0
        %v2018 = vunpack.c.l.b16 %v1836
        %v2019 = vunpack.c.l.b16 %v1837
        %v2020 = vunpack.c.l.b16 %v1838
        %v2021 = vunpack.c.l.b16 %v1839
        %v2022 = vpack.c.b16 %v2019, %v2018
        %v2023 = vpack.c.b16 %v2021, %v2020
        %v2027 = vsel %vm1003, %v1882, 0
        %2029 = vmatpush.bf16.msra.mxu0 0
        %2030 = vmatpush.bf16.msra.mxu0 0
        %2031 = vmatpush.bf16.msra.mxu0 0
        %2032 = vmatpush.bf16.msra.mxu0 0
        %2033 = vmatpush.bf16.msra.mxu0 0
        %2034 = vmatpush.bf16.msra.mxu0 0
        %2035 = vmatpush.bf16.msra.mxu0 %v2023
        %2036 = vmatpush.bf16.msra.mxu0 %v2022
        %2037 = vmatmul.bf16.gmra.mxu0 %v2027
        %v2038 = vpop.f32.mrf.mxu0
        %v2039 = vadd.f32 %v2006, %v2038
        %v2040 = vpop.f32.mrf.mxu0
        %2041 = vdwg.mxu0
        %v2046 = vunpack.c.l.b16 %v1840
        %v2047 = vunpack.c.l.b16 %v1841
        %v2048 = vunpack.c.l.b16 %v1842
        %v2049 = vunpack.c.l.b16 %v1843
        %v2050 = vpack.c.b16 %v2047, %v2046
        %v2051 = vpack.c.b16 %v2049, %v2048
        %2054 = vmatpush.bf16.msra.mxu0 0
        %2055 = vmatpush.bf16.msra.mxu0 0
        %2056 = vmatpush.bf16.msra.mxu0 0
        %2057 = vmatpush.bf16.msra.mxu0 0
        %2058 = vmatpush.bf16.msra.mxu0 0
        %2059 = vmatpush.bf16.msra.mxu0 0
        %2060 = vmatpush.bf16.msra.mxu0 %v2051
        %2061 = vmatpush.bf16.msra.mxu0 %v2050
        %2062 = vmatmul.bf16.gmra.mxu0 %v2027
        %v2063 = vpop.f32.mrf.mxu0
        %v2064 = vadd.f32 %v2007, %v2063
        %v2065 = vpop.f32.mrf.mxu0
        %2066 = vdwg.mxu0
        %v2071 = vunpack.c.l.b16 %v1844
        %v2072 = vunpack.c.l.b16 %v1845
        %v2073 = vunpack.c.l.b16 %v1846
        %v2074 = vunpack.c.l.b16 %v1847
        %v2075 = vpack.c.b16 %v2072, %v2071
        %v2076 = vpack.c.b16 %v2074, %v2073
        %2079 = vmatpush.bf16.msra.mxu0 0
        %2080 = vmatpush.bf16.msra.mxu0 0
        %2081 = vmatpush.bf16.msra.mxu0 0
        %2082 = vmatpush.bf16.msra.mxu0 0
        %2083 = vmatpush.bf16.msra.mxu0 0
        %2084 = vmatpush.bf16.msra.mxu0 0
        %2085 = vmatpush.bf16.msra.mxu0 %v2076
        %2086 = vmatpush.bf16.msra.mxu0 %v2075
        %2087 = vmatmul.bf16.gmra.mxu0 %v2027
        %v2088 = vpop.f32.mrf.mxu0
        %v2089 = vadd.f32 %v2008, %v2088
        %v2090 = vpop.f32.mrf.mxu0
        %2091 = vdwg.mxu0
        %v2096 = vunpack.c.l.b16 %v1848
        %v2097 = vunpack.c.l.b16 %v1849
        %v2098 = vunpack.c.l.b16 %v1850
        %v2099 = vunpack.c.l.b16 %v1851
        %v2100 = vpack.c.b16 %v2097, %v2096
        %v2101 = vpack.c.b16 %v2099, %v2098
        %2104 = vmatpush.bf16.msra.mxu0 0
        %2105 = vmatpush.bf16.msra.mxu0 0
        %2106 = vmatpush.bf16.msra.mxu0 0
        %2107 = vmatpush.bf16.msra.mxu0 0
        %2108 = vmatpush.bf16.msra.mxu0 0
        %2109 = vmatpush.bf16.msra.mxu0 0
        %2110 = vmatpush.bf16.msra.mxu0 %v2101
        %2111 = vmatpush.bf16.msra.mxu0 %v2100
        %2112 = vmatmul.bf16.gmra.mxu0 %v2027
        %v2113 = vpop.f32.mrf.mxu0
        %v2114 = vadd.f32 %v2009, %v2113
        %v2115 = vpop.f32.mrf.mxu0
        %2116 = vdwg.mxu0
        %v2121 = vperm.slane %v1872, 0
        %v2122 = vperm.slane %v1873, 0
        %v2123 = vperm.slane %v1874, 0
        %v2124 = vperm.slane %v1875, 0
        %v2133 = vunpack.c.l.b16 %v1856
        %v2134 = vunpack.c.l.b16 %v1857
        %v2135 = vunpack.c.l.b16 %v1858
        %v2136 = vunpack.c.l.b16 %v1859
        %v2137 = vpack.c.b16 %v2134, %v2133
        %v2138 = vpack.c.b16 %v2136, %v2135
        %2141 = vmatpush.bf16.msra.mxu0 0
        %2142 = vmatpush.bf16.msra.mxu0 0
        %2143 = vmatpush.bf16.msra.mxu0 0
        %2144 = vmatpush.bf16.msra.mxu0 0
        %2145 = vmatpush.bf16.msra.mxu0 0
        %2146 = vmatpush.bf16.msra.mxu0 0
        %2147 = vmatpush.bf16.msra.mxu0 %v2138
        %2148 = vmatpush.bf16.msra.mxu0 %v2137
        %2149 = vmatmul.bf16.gmra.mxu0 %v2027
        %v2150 = vpop.f32.mrf.mxu0
        %v2151 = vadd.f32 %v2121, %v2150
        %v2152 = vpop.f32.mrf.mxu0
        %2153 = vdwg.mxu0
        %v2158 = vunpack.c.l.b16 %v1860
        %v2159 = vunpack.c.l.b16 %v1861
        %v2160 = vunpack.c.l.b16 %v1862
        %v2161 = vunpack.c.l.b16 %v1863
        %v2162 = vpack.c.b16 %v2159, %v2158
        %v2163 = vpack.c.b16 %v2161, %v2160
        %2166 = vmatpush.bf16.msra.mxu0 0
        %2167 = vmatpush.bf16.msra.mxu0 0
        %2168 = vmatpush.bf16.msra.mxu0 0
        %2169 = vmatpush.bf16.msra.mxu0 0
        %2170 = vmatpush.bf16.msra.mxu0 0
        %2171 = vmatpush.bf16.msra.mxu0 0
        %2172 = vmatpush.bf16.msra.mxu0 %v2163
        %2173 = vmatpush.bf16.msra.mxu0 %v2162
        %2174 = vmatmul.bf16.gmra.mxu0 %v2027
        %v2175 = vpop.f32.mrf.mxu0
        %v2176 = vadd.f32 %v2122, %v2175
        %v2177 = vpop.f32.mrf.mxu0
        %2178 = vdwg.mxu0
        %v2183 = vunpack.c.l.b16 %v1864
        %v2184 = vunpack.c.l.b16 %v1865
        %v2185 = vunpack.c.l.b16 %v1866
        %v2186 = vunpack.c.l.b16 %v1867
        %v2187 = vpack.c.b16 %v2184, %v2183
        %v2188 = vpack.c.b16 %v2186, %v2185
        %2191 = vmatpush.bf16.msra.mxu0 0
        %2192 = vmatpush.bf16.msra.mxu0 0
        %2193 = vmatpush.bf16.msra.mxu0 0
        %2194 = vmatpush.bf16.msra.mxu0 0
        %2195 = vmatpush.bf16.msra.mxu0 0
        %2196 = vmatpush.bf16.msra.mxu0 0
        %2197 = vmatpush.bf16.msra.mxu0 %v2188
        %2198 = vmatpush.bf16.msra.mxu0 %v2187
        %2199 = vmatmul.bf16.gmra.mxu0 %v2027
        %v2200 = vpop.f32.mrf.mxu0
        %v2201 = vadd.f32 %v2123, %v2200
        %v2202 = vpop.f32.mrf.mxu0
        %2203 = vdwg.mxu0
        %v2208 = vunpack.c.l.b16 %v1868
        %v2209 = vunpack.c.l.b16 %v1869
        %v2210 = vunpack.c.l.b16 %v1870
        %v2211 = vunpack.c.l.b16 %v1871
        %v2212 = vpack.c.b16 %v2209, %v2208
        %v2213 = vpack.c.b16 %v2211, %v2210
        %2216 = vmatpush.bf16.msra.mxu0 0
        %2217 = vmatpush.bf16.msra.mxu0 0
        %2218 = vmatpush.bf16.msra.mxu0 0
        %2219 = vmatpush.bf16.msra.mxu0 0
        %2220 = vmatpush.bf16.msra.mxu0 0
        %2221 = vmatpush.bf16.msra.mxu0 0
        %2222 = vmatpush.bf16.msra.mxu0 %v2213
        %2223 = vmatpush.bf16.msra.mxu0 %v2212
        %2224 = vmatmul.bf16.gmra.mxu0 %v2027
        %v2225 = vpop.f32.mrf.mxu0
        %v2226 = vadd.f32 %v2124, %v2225
        %v2227 = vpop.f32.mrf.mxu0
        %2228 = vdwg.mxu0
        %v2229 = vpack.c.bf16 %v1998, %v1998
        %v2230 = vpack.c.bf16 %v1999, %v1999
        %v2231 = vpack.c.bf16 %v2000, %v2000
        %v2232 = vpack.c.bf16 %v2001, %v2001
        %v2233 = vpack.c.bf16 %v2039, %v2039
        %v2234 = vpack.c.bf16 %v2064, %v2064
        %v2235 = vpack.c.bf16 %v2089, %v2089
        %v2236 = vpack.c.bf16 %v2114, %v2114
        %v2238 = vperm.slane %v1000, 0
        %v2241 = vsel %vm1486, %v2229, 0
        %v2244 = vsel %vm1486, %v2233, 0
        %2246 = vmatpush.bf16.xpose.msra.mxu0 0
        %2247 = vmatpush.bf16.xpose.msra.mxu0 0
        %2248 = vmatpush.bf16.xpose.msra.mxu0 0
        %2249 = vmatpush.bf16.xpose.msra.mxu0 0
        %2250 = vmatpush.bf16.xpose.msra.mxu0 0
        %2251 = vmatpush.bf16.xpose.msra.mxu0 0
        %2252 = vmatpush.bf16.xpose.msra.mxu0 0
        %2253 = vmatpush.bf16.xpose.msra.mxu0 %v2244
        %2254 = vmatmul.bf16.gmra.mxu0 %v2241
        %v2255 = vpop.f32.mrf.mxu0
        %v2256 = vadd.f32 %v2238, %v2255
        %v2257 = vpop.f32.mrf.mxu0
        %2258 = vdwg.mxu0
        %v2260 = vsel %vm1486, %v2230, 0
        %v2263 = vsel %vm1486, %v2234, 0
        %2265 = vmatpush.bf16.xpose.msra.mxu0 0
        %2266 = vmatpush.bf16.xpose.msra.mxu0 0
        %2267 = vmatpush.bf16.xpose.msra.mxu0 0
        %2268 = vmatpush.bf16.xpose.msra.mxu0 0
        %2269 = vmatpush.bf16.xpose.msra.mxu0 0
        %2270 = vmatpush.bf16.xpose.msra.mxu0 0
        %2271 = vmatpush.bf16.xpose.msra.mxu0 0
        %2272 = vmatpush.bf16.xpose.msra.mxu0 %v2263
        %2273 = vmatmul.bf16.gmra.mxu0 %v2260
        %v2274 = vpop.f32.mrf.mxu0
        %v2275 = vadd.f32 %v2238, %v2274
        %v2276 = vpop.f32.mrf.mxu0
        %2277 = vdwg.mxu0
        %v2279 = vsel %vm1486, %v2231, 0
        %v2282 = vsel %vm1486, %v2235, 0
        %2284 = vmatpush.bf16.xpose.msra.mxu0 0
        %2285 = vmatpush.bf16.xpose.msra.mxu0 0
        %2286 = vmatpush.bf16.xpose.msra.mxu0 0
        %2287 = vmatpush.bf16.xpose.msra.mxu0 0
        %2288 = vmatpush.bf16.xpose.msra.mxu0 0
        %2289 = vmatpush.bf16.xpose.msra.mxu0 0
        %2290 = vmatpush.bf16.xpose.msra.mxu0 0
        %2291 = vmatpush.bf16.xpose.msra.mxu0 %v2282
        %2292 = vmatmul.bf16.gmra.mxu0 %v2279
        %v2293 = vpop.f32.mrf.mxu0
        %v2294 = vadd.f32 %v2238, %v2293
        %v2295 = vpop.f32.mrf.mxu0
        %2296 = vdwg.mxu0
        %v2298 = vsel %vm1486, %v2232, 0
        %v2301 = vsel %vm1486, %v2236, 0
        %2303 = vmatpush.bf16.xpose.msra.mxu0 0
        %2304 = vmatpush.bf16.xpose.msra.mxu0 0
        %2305 = vmatpush.bf16.xpose.msra.mxu0 0
        %2306 = vmatpush.bf16.xpose.msra.mxu0 0
        %2307 = vmatpush.bf16.xpose.msra.mxu0 0
        %2308 = vmatpush.bf16.xpose.msra.mxu0 0
        %2309 = vmatpush.bf16.xpose.msra.mxu0 0
        %2310 = vmatpush.bf16.xpose.msra.mxu0 %v2301
        %2311 = vmatmul.bf16.gmra.mxu0 %v2298
        %v2312 = vpop.f32.mrf.mxu0
        %v2313 = vadd.f32 %v2238, %v2312
        %v2314 = vpop.f32.mrf.mxu0
        %2315 = vdwg.mxu0
        %v2316 = vsel %vm1486, %v2256, -inf
        %2317 = vmax.xlane.f32.xlu0 %v2316
        %v2318 = vpop.xlane.xlu0 %2317
        %v2319 = vsel %vm1486, %v2275, -inf
        %2320 = vmax.xlane.f32.xlu0 %v2319
        %v2321 = vpop.xlane.xlu0 %2320
        %v2322 = vsel %vm1486, %v2294, -inf
        %2323 = vmax.xlane.f32.xlu0 %v2322
        %v2324 = vpop.xlane.xlu0 %2323
        %v2325 = vsel %vm1486, %v2313, -inf
        %2326 = vmax.xlane.f32.xlu0 %v2325
        %v2327 = vpop.xlane.xlu0 %2326
        %v2328 = vsub.f32 %v2256, %v2318
        %v2329 = vsub.f32 %v2275, %v2321
        %v2330 = vsub.f32 %v2294, %v2324
        %v2331 = vsub.f32 %v2313, %v2327
        %v2332 = vmul.f32 %v2328, 1.442695
        %v2333 = vpow.pop %v2332
        %v2334 = vmul.f32 %v2329, 1.442695
        %v2335 = vpow.pop %v2334
        %v2336 = vmul.f32 %v2330, 1.442695
        %v2337 = vpow.pop %v2336
        %v2338 = vmul.f32 %v2331, 1.442695
        %v2339 = vpow.pop %v2338
        %v2340 = vsel %vm1486, %v2333, 0.0
        %2341 = vadd.xlane.f32.xlu0 %v2340
        %v2342 = vpop.xlane.xlu0 %2341
        %v2343 = vsel %vm1486, %v2335, 0.0
        %2344 = vadd.xlane.f32.xlu0 %v2343
        %v2345 = vpop.xlane.xlu0 %2344
        %v2346 = vsel %vm1486, %v2337, 0.0
        %2347 = vadd.xlane.f32.xlu0 %v2346
        %v2348 = vpop.xlane.xlu0 %2347
        %v2349 = vsel %vm1486, %v2339, 0.0
        %2350 = vadd.xlane.f32.xlu0 %v2349
        %v2351 = vpop.xlane.xlu0 %2350
        %v2352 = vrcp.pop %v2342
        %v2353 = vrcp.pop %v2345
        %v2354 = vrcp.pop %v2348
        %v2355 = vrcp.pop %v2351
        %v2356 = vmul.f32 %v2333, %v2352
        %v2357 = vmul.f32 %v2335, %v2353
        %v2358 = vmul.f32 %v2337, %v2354
        %v2359 = vmul.f32 %v2339, %v2355
        %v2360 = vpack.c.bf16 %v2356, %v2356
        %v2361 = vpack.c.bf16 %v2357, %v2357
        %v2362 = vpack.c.bf16 %v2358, %v2358
        %v2363 = vpack.c.bf16 %v2359, %v2359
        %v2364 = vpack.c.bf16 %v2151, %v2151
        %v2365 = vpack.c.bf16 %v2176, %v2176
        %v2366 = vpack.c.bf16 %v2201, %v2201
        %v2367 = vpack.c.bf16 %v2226, %v2226
        %v2369 = vsel %vm1486, %v2360, 0
        %v2372 = vsel %vm1618, %v2364, 0
        %2374 = vmatpush.bf16.msra.mxu0 0
        %2375 = vmatpush.bf16.msra.mxu0 0
        %2376 = vmatpush.bf16.msra.mxu0 0
        %2377 = vmatpush.bf16.msra.mxu0 0
        %2378 = vmatpush.bf16.msra.mxu0 0
        %2379 = vmatpush.bf16.msra.mxu0 0
        %2380 = vmatpush.bf16.msra.mxu0 0
        %2381 = vmatpush.bf16.msra.mxu0 %v2372
        %2382 = vmatmul.bf16.gmra.mxu0 %v2369
        %v2383 = vpop.f32.mrf.mxu0
        %v2384 = vadd.f32 0.0, %v2383
        %v2385 = vpop.f32.mrf.mxu0
        %2386 = vdwg.mxu0
        %v2388 = vsel %vm1486, %v2361, 0
        %v2391 = vsel %vm1618, %v2365, 0
        %2393 = vmatpush.bf16.msra.mxu0 0
        %2394 = vmatpush.bf16.msra.mxu0 0
        %2395 = vmatpush.bf16.msra.mxu0 0
        %2396 = vmatpush.bf16.msra.mxu0 0
        %2397 = vmatpush.bf16.msra.mxu0 0
        %2398 = vmatpush.bf16.msra.mxu0 0
        %2399 = vmatpush.bf16.msra.mxu0 0
        %2400 = vmatpush.bf16.msra.mxu0 %v2391
        %2401 = vmatmul.bf16.gmra.mxu0 %v2388
        %v2402 = vpop.f32.mrf.mxu0
        %v2403 = vadd.f32 0.0, %v2402
        %v2404 = vpop.f32.mrf.mxu0
        %2405 = vdwg.mxu0
        %v2407 = vsel %vm1486, %v2362, 0
        %v2410 = vsel %vm1618, %v2366, 0
        %2412 = vmatpush.bf16.msra.mxu0 0
        %2413 = vmatpush.bf16.msra.mxu0 0
        %2414 = vmatpush.bf16.msra.mxu0 0
        %2415 = vmatpush.bf16.msra.mxu0 0
        %2416 = vmatpush.bf16.msra.mxu0 0
        %2417 = vmatpush.bf16.msra.mxu0 0
        %2418 = vmatpush.bf16.msra.mxu0 0
        %2419 = vmatpush.bf16.msra.mxu0 %v2410
        %2420 = vmatmul.bf16.gmra.mxu0 %v2407
        %v2421 = vpop.f32.mrf.mxu0
        %v2422 = vadd.f32 0.0, %v2421
        %v2423 = vpop.f32.mrf.mxu0
        %2424 = vdwg.mxu0
        %v2426 = vsel %vm1486, %v2363, 0
        %v2429 = vsel %vm1618, %v2367, 0
        %2431 = vmatpush.bf16.msra.mxu0 0
        %2432 = vmatpush.bf16.msra.mxu0 0
        %2433 = vmatpush.bf16.msra.mxu0 0
        %2434 = vmatpush.bf16.msra.mxu0 0
        %2435 = vmatpush.bf16.msra.mxu0 0
        %2436 = vmatpush.bf16.msra.mxu0 0
        %2437 = vmatpush.bf16.msra.mxu0 0
        %2438 = vmatpush.bf16.msra.mxu0 %v2429
        %2439 = vmatmul.bf16.gmra.mxu0 %v2426
        %v2440 = vpop.f32.mrf.mxu0
        %v2441 = vadd.f32 0.0, %v2440
        %v2442 = vpop.f32.mrf.mxu0
        %2443 = vdwg.mxu0
        %v2444 = vpack.c.bf16 %v2384, %v2384
        %v2445 = vpack.c.bf16 %v2403, %v2403
        %v2446 = vpack.c.bf16 %v2422, %v2422
        %v2447 = vpack.c.bf16 %v2441, %v2441
        %v2449 = vsel %vm1486, %v2444, 0
        %v2452 = vsel %vm1618, %v1876, 0
        %2454 = vmatpush.bf16.msra.mxu0 0
        %2455 = vmatpush.bf16.msra.mxu0 0
        %2456 = vmatpush.bf16.msra.mxu0 0
        %2457 = vmatpush.bf16.msra.mxu0 0
        %2458 = vmatpush.bf16.msra.mxu0 0
        %2459 = vmatpush.bf16.msra.mxu0 0
        %2460 = vmatpush.bf16.msra.mxu0 0
        %2461 = vmatpush.bf16.msra.mxu0 %v2452
        %2462 = vmatmul.bf16.gmra.mxu0 %v2449
        %v2463 = vpop.f32.mrf.mxu0
        %v2464 = vadd.f32 0.0, %v2463
        %v2465 = vpop.f32.mrf.mxu0
        %2466 = vdwg.mxu0
        %v2468 = vsel %vm1486, %v2445, 0
        %v2471 = vsel %vm1618, %v1877, 0
        %2473 = vmatpush.bf16.msra.mxu0 0
        %2474 = vmatpush.bf16.msra.mxu0 0
        %2475 = vmatpush.bf16.msra.mxu0 0
        %2476 = vmatpush.bf16.msra.mxu0 0
        %2477 = vmatpush.bf16.msra.mxu0 0
        %2478 = vmatpush.bf16.msra.mxu0 0
        %2479 = vmatpush.bf16.msra.mxu0 0
        %2480 = vmatpush.bf16.msra.mxu0 %v2471
        %2481 = vmatmul.bf16.gmra.mxu0 %v2468
        %v2482 = vpop.f32.mrf.mxu0
        %v2483 = vadd.f32 0.0, %v2482
        %v2484 = vpop.f32.mrf.mxu0
        %2485 = vdwg.mxu0
        %v2487 = vsel %vm1486, %v2446, 0
        %v2490 = vsel %vm1618, %v1878, 0
        %2492 = vmatpush.bf16.msra.mxu0 0
        %2493 = vmatpush.bf16.msra.mxu0 0
        %2494 = vmatpush.bf16.msra.mxu0 0
        %2495 = vmatpush.bf16.msra.mxu0 0
        %2496 = vmatpush.bf16.msra.mxu0 0
        %2497 = vmatpush.bf16.msra.mxu0 0
        %2498 = vmatpush.bf16.msra.mxu0 0
        %2499 = vmatpush.bf16.msra.mxu0 %v2490
        %2500 = vmatmul.bf16.gmra.mxu0 %v2487
        %v2501 = vpop.f32.mrf.mxu0
        %v2502 = vadd.f32 0.0, %v2501
        %v2503 = vpop.f32.mrf.mxu0
        %2504 = vdwg.mxu0
        %v2506 = vsel %vm1486, %v2447, 0
        %v2509 = vsel %vm1618, %v1879, 0
        %2511 = vmatpush.bf16.msra.mxu0 0
        %2512 = vmatpush.bf16.msra.mxu0 0
        %2513 = vmatpush.bf16.msra.mxu0 0
        %2514 = vmatpush.bf16.msra.mxu0 0
        %2515 = vmatpush.bf16.msra.mxu0 0
        %2516 = vmatpush.bf16.msra.mxu0 0
        %2517 = vmatpush.bf16.msra.mxu0 0
        %2518 = vmatpush.bf16.msra.mxu0 %v2509
        %2519 = vmatmul.bf16.gmra.mxu0 %v2506
        %v2520 = vpop.f32.mrf.mxu0
        %v2521 = vadd.f32 0.0, %v2520
        %v2522 = vpop.f32.mrf.mxu0
        %2523 = vdwg.mxu0
        %v2524 = vsel %vm1003, %v2464, 0.0
        %v2525 = vsel %vm1003, %v2483, 0.0
        %v2526 = vadd.f32 %v2524, %v2525
        %v2527 = vsel %vm1003, %v2502, 0.0
        %v2528 = vadd.f32 %v2526, %v2527
        %v2529 = vsel %vm1003, %v2521, 0.0
        %v2530 = vadd.f32 %v2528, %v2529
        %v2532 = vperm.slane %v1880, 0
        %v2534 = vadd.f32 %v2530, %v2532
        %v2535 = vadd.f32 %v1783, %v2534
        %v2536 = vld [vmem:[%s57] sm:$0x1]
        %v2537 = vld [vmem:[%s59] sm:$0x1]
        %v2538 = vsel %vm1003, %v2535, 0.0
        %2539 = vadd.xlane.f32.xlu0 %v2538
        %v2540 = vpop.xlane.xlu0 %2539
        %v2541 = vmul.f32 %v2540, %v1013
        %v2542 = vsub.f32 %v2535, %v2541
        %v2543 = vmul.f32 %v2542, %v2542
        %v2544 = vsel %vm1003, %v2543, 0.0
        %2545 = vadd.xlane.f32.xlu0 %v2544
        %v2546 = vpop.xlane.xlu0 %2545
        %v2547 = vmul.f32 %v2546, %v1013
        %v2548 = vadd.f32 %v2547, 1e-06
        %v2549 = vrsqrt.pop %v2548
        %v2550 = vmul.f32 %v2549, %v2548
        %v2551 = vmul.f32 %v2550, %v2549
        %v2552 = vmul.f32 0.5, %v2551
        %v2553 = vsub.f32 1.5, %v2552
        %v2554 = vmul.f32 %v2549, %v2553
        %vm2555 = vweird.f32 %v2548
        %vm2556 = vweird.f32 %v2549
        %vm2557 = vmor %vm2555, %vm2556
        %v2558 = vsel %vm2557, %v2549, %v2554
        %v2559 = vmul.f32 %v2542, %v2558
        %v2561 = vperm.slane %v2536, 0
        %v2563 = vmul.f32 %v2559, %v2561
        %v2565 = vperm.slane %v2537, 0
        %v2567 = vadd.f32 %v2563, %v2565
        %v2568 = vpack.c.bf16 %v2567, %v2567
        %v2569 = vld [vmem:[%s41] sm:$0xf]
        %v2570 = vld [vmem:[%s41 + $0x4] sm:$0xf]
        %v2571 = vld [vmem:[%s41 + $0x8] sm:$0xf]
        %v2572 = vld [vmem:[%s41 + $0xc] sm:$0xf]
        %v2573 = vld [vmem:[%s43] sm:$0x1]
        %v2575 = vperm.slane %v2573, 0
        %v2581 = vunpack.c.l.b16 %v2569
        %v2582 = vunpack.c.l.b16 %v2570
        %v2583 = vunpack.c.l.b16 %v2571
        %v2584 = vunpack.c.l.b16 %v2572
        %v2585 = vpack.c.b16 %v2582, %v2581
        %v2586 = vpack.c.b16 %v2584, %v2583
        %v2590 = vsel %vm1003, %v2568, 0
        %2592 = vmatpush.bf16.msra.mxu0 0
        %2593 = vmatpush.bf16.msra.mxu0 0
        %2594 = vmatpush.bf16.msra.mxu0 0
        %2595 = vmatpush.bf16.msra.mxu0 0
        %2596 = vmatpush.bf16.msra.mxu0 0
        %2597 = vmatpush.bf16.msra.mxu0 0
        %2598 = vmatpush.bf16.msra.mxu0 %v2586
        %2599 = vmatpush.bf16.msra.mxu0 %v2585
        %2600 = vmatmul.bf16.gmra.mxu0 %v2590
        %v2601 = vpop.f32.mrf.mxu0
        %v2602 = vadd.f32 %v2575, %v2601
        %v2603 = vpop.f32.mrf.mxu0
        %2604 = vdwg.mxu0
        %v2605 = vmax.f32 %v2602, 0.0
        %v2606 = vpack.c.bf16 %v2605, %v2605
        %v2607 = vld [vmem:[%s45] sm:$0xf]
        %v2608 = vld [vmem:[%s45 + $0x4] sm:$0xf]
        %v2609 = vld [vmem:[%s45 + $0x8] sm:$0xf]
        %v2610 = vld [vmem:[%s45 + $0xc] sm:$0xf]
        %v2611 = vld [vmem:[%s45 + $0x10] sm:$0xf]
        %v2612 = vld [vmem:[%s45 + $0x14] sm:$0xf]
        %v2613 = vld [vmem:[%s45 + $0x18] sm:$0xf]
        %v2614 = vld [vmem:[%s45 + $0x1c] sm:$0xf]
        %v2623 = vunpack.c.l.b16 %v2607
        %v2624 = vunpack.c.l.b16 %v2608
        %v2625 = vunpack.c.l.b16 %v2609
        %v2626 = vunpack.c.l.b16 %v2610
        %v2627 = vunpack.c.l.b16 %v2611
        %v2628 = vunpack.c.l.b16 %v2612
        %v2629 = vunpack.c.l.b16 %v2613
        %v2630 = vunpack.c.l.b16 %v2614
        %v2631 = vpack.c.b16 %v2624, %v2623
        %v2632 = vpack.c.b16 %v2626, %v2625
        %v2633 = vpack.c.b16 %v2628, %v2627
        %v2634 = vpack.c.b16 %v2630, %v2629
        %vm2639 = vcmask 523264
        %v2641 = vsel %vm2639, %v2606, 0
        %2643 = vmatpush.bf16.msra.mxu0 0
        %2644 = vmatpush.bf16.msra.mxu0 0
        %2645 = vmatpush.bf16.msra.mxu0 0
        %2646 = vmatpush.bf16.msra.mxu0 0
        %2647 = vmatpush.bf16.msra.mxu0 %v2634
        %2648 = vmatpush.bf16.msra.mxu0 %v2633
        %2649 = vmatpush.bf16.msra.mxu0 %v2632
        %2650 = vmatpush.bf16.msra.mxu0 %v2631
        %2651 = vmatmul.bf16.gmra.mxu0 %v2641
        %v2652 = vpop.f32.mrf.mxu0
        %v2653 = vadd.f32 0.0, %v2652
        %v2654 = vpop.f32.mrf.mxu0
        %2655 = vdwg.mxu0
        %v2656 = vadd.f32 %v2535, %v2653
        %v2657 = vld [vmem:[%s47] sm:$0x1]
        %v2659 = vperm.slane %v2657, 0
        %v2661 = vadd.f32 %v2656, %v2659
        %2662 = vst.msk [vmem:[%s969] sm:$0xff] %vm1003, %v2661
        %s2663 = sand.u32 %s744, 1
        %s2664 = scalar_lea.sflag [#allocation3], %s2663
        %s2665 = sand.u32 %s744, 1
        %s2666 = smul.addr %s2665, 8
        %s2667 = scalar_lea.vmem [#allocation2], %s2666
        // Predicated region
        $region141: #{tpu_custom_call.1} parent=139 // pred_check
          %p2668 = pneg %p754
        $region142: #{tpu_custom_call.1} parent=139 // pred_check_branch
          %2670 = sbr.rel (%p2668) target = $region144
        $region143: #{tpu_custom_call.1} parent=139 // pred_region
          %2672 = vsyncadd %s2664, 0
          %s2673 = sadd.s32 %s80, %s79
          %s2674 = smul.addr %s2673, 8
          %s2675 = scalar_lea.hbm %s61, %s2674
          %s2677 = sshll.u32 %s2667, 4
          %s2678 = int_to_ptr.vmem [resolvable:$true] %s2677
          %s2679 = sshll.u32 %s2675, 4
          %s2680 = int_to_ptr.hbm [resolvable:$true] %s2679
          %2682 = dma.vmem_to_hbm [thread:$0]  %s2678, 128, %s2680, %s2664
        $region144: #{tpu_custom_call.1} parent=139 // pred_fallthru
          _
      $region140: #{tpu_custom_call.1} parent=5 // pred_fallthru
        _
      %p2683 = scmp.le.s32.totalorder 2, %s70
      // Predicated region
      $region145: #{tpu_custom_call.1} parent=5 // pred_check
        %p2684 = pneg %p2683
      $region146: #{tpu_custom_call.1} parent=5 // pred_check_branch
        %2686 = sbr.rel (%p2684) target = $region148
      $region147: #{tpu_custom_call.1} parent=5 // pred_region
        %s2687 = ssub.s32 %s70, 2
        // Predicated region
        $region149: #{tpu_custom_call.1} parent=147 // pred_check
          %p2688 = pneg %p760
        $region150: #{tpu_custom_call.1} parent=147 // pred_check_branch
          %2690 = sbr.rel (%p2688) target = $region152
        $region151: #{tpu_custom_call.1} parent=147 // pred_region
          %s2691 = sand.u32 %s745, 1
          %s2692 = scalar_lea.sflag [#allocation3], %s2691
          %s2693 = sand.u32 %s745, 1
          %s2694 = smul.addr %s2693, 8
          %s2695 = scalar_lea.vmem [#allocation2], %s2694
          %2697 = dma.done %s2692, 128
        $region152: #{tpu_custom_call.1} parent=147 // pred_fallthru
          _
      $region148: #{tpu_custom_call.1} parent=5 // pred_fallthru
        _
    $region6: #{tpu_custom_call.1} parent=1 // loop_footer
      %s74 = sadd.s32 1, %s70
    $region7: #{tpu_custom_call.1} parent=1 // loop_footer_branch
      %69 = sbr.rel target = $region3
    $region8: #{tpu_custom_call.1} parent=1 // loop_exit
      _
    %2698 = vsyncpa [#allocation3], 1
    %s2699 = scalar_lea.sflag [#allocation3], 1
    %2700 = vsyncpa %s2699, 1

</llo_original>
